<compile_context>
chip_gen: v7x
topology: tpu7x:2x2x1
jax: 0.10.0
libtpu: 0.0.40
codegen_flags: <defaults>
</compile_context>

<pallas_src>
import jax
import jax.numpy as jnp
from jax.experimental import pallas as pl
from jax.experimental.pallas import tpu as pltpu

# ----------------------------------------------------------------------------
# Model configuration (small, synthetic ViT backbone)
# ----------------------------------------------------------------------------
IMG = 16
IN_CH = 3
PATCH = 8
GRID = IMG // PATCH
N_PATCH = GRID * GRID              # 4 patches
SEQ = N_PATCH + 1                  # 5 tokens (CLS + patches)
HIDDEN = 32
HEADS = 4
HEAD_DIM = HIDDEN // HEADS         # 8
MLP = 64
DEPTH = 2
BACKBONE_OUT = 1000                # ViT head (ImageNet-1k logits) == class-head input
NUM_CLASS = 5
PATCH_DIM = IN_CH * PATCH * PATCH  # 192

BACKBONE_PAD = 1024                # 1000 -> 1024  (lane-dense output)
CLASS_PAD = 128                    # 5    -> 128   (lane-dense output)
ATTN_SCALE = 1.0 / float(HEAD_DIM) ** 0.5
LN_EPS = 1e-6                      # torchvision ViT LayerNorm eps


# ----------------------------------------------------------------------------
# In-kernel helpers
# ----------------------------------------------------------------------------
def _layernorm(x, g, b):
    mu = jnp.mean(x, axis=-1, keepdims=True)
    xc = x - mu
    var = jnp.mean(xc * xc, axis=-1, keepdims=True)
    return xc * jax.lax.rsqrt(var + LN_EPS) * g + b


def _erf(x):
    # Abramowitz & Stegun 7.1.26 polynomial (|err| < 1.5e-7): matches exact-erf
    # GELU to float precision using only exp/abs/where (safe Mosaic lowering).
    p = 0.3275911
    a1, a2, a3, a4, a5 = (0.254829592, -0.284496736, 1.421413741,
                          -1.453152027, 1.061405429)
    sgn = jnp.where(x >= 0.0, 1.0, -1.0)
    ax = jnp.abs(x)
    t = 1.0 / (1.0 + p * ax)
    poly = t * (a1 + t * (a2 + t * (a3 + t * (a4 + t * a5))))
    return sgn * (1.0 - poly * jnp.exp(-ax * ax))


def _gelu(x):
    return 0.5 * x * (1.0 + _erf(x * 0.7071067811865476))


def _linear(x_f32, w_bf16, b_f32):
    # bf16 MXU matmul with f32 accumulation + f32 bias.
    return jnp.dot(x_f32.astype(jnp.bfloat16), w_bf16,
                   preferred_element_type=jnp.float32) + b_f32


# ----------------------------------------------------------------------------
# Fused forward kernel (one batch element per grid step)
# ----------------------------------------------------------------------------
def _fused_vit_kernel(
    patches_ref,
    patch_w_ref, patch_b_ref, cls_pos_ref,
    ln1_g_ref, ln1_b_ref, qkv_w_ref, qkv_b_ref, proj_w_ref, proj_b_ref,
    ln2_g_ref, ln2_b_ref, fc1_w_ref, fc1_b_ref, fc2_w_ref, fc2_b_ref,
    ln_f_g_ref, ln_f_b_ref, head_w_ref, head_b_ref,
    cls_head_w_ref, cls_head_b_ref,
    emb_ref, cls_out_ref,
):
    # ---- patch embedding: [N_PATCH, PATCH_DIM] @ [PATCH_DIM, HIDDEN] ----------
    patches = patches_ref[0]                                         # [4, 192]
    tok = _linear(patches, patch_w_ref[...], patch_b_ref[...])       # [4, 32]

    # ---- prepend CLS token; (cls + pos[0]) pre-folded into cls_pos row 0 ------
    tokens = jnp.concatenate([jnp.zeros((1, HIDDEN), jnp.float32), tok], axis=0)
    tokens = tokens + cls_pos_ref[...]                               # [SEQ, 32]

    # ---- transformer encoder (statically unrolled, weights stay in VMEM) ------
    for d in range(DEPTH):
        t = _layernorm(tokens, ln1_g_ref[d], ln1_b_ref[d])
        qkv = _linear(t, qkv_w_ref[d], qkv_b_ref[d])                 # [SEQ, 3*HIDDEN]
        qkv16 = qkv.astype(jnp.bfloat16)

        heads = []
        for h in range(HEADS):                                       # static head loop
            lo = h * HEAD_DIM
            q_h = qkv16[:, lo:lo + HEAD_DIM]
            k_h = qkv16[:, HIDDEN + lo:HIDDEN + lo + HEAD_DIM]
            v_h = qkv16[:, 2 * HIDDEN + lo:2 * HIDDEN + lo + HEAD_DIM]
            s = jax.lax.dot_general(
                q_h, k_h, (((1,), (1,)), ((), ())),                  # q @ k^T
                preferred_element_type=jnp.float32) * ATTN_SCALE     # [SEQ, SEQ]
            s = s - jnp.max(s, axis=-1, keepdims=True)
            e = jnp.exp(s)
            p = e * pl.reciprocal(jnp.sum(e, axis=-1, keepdims=True), approx=True)
            heads.append(jnp.dot(p.astype(jnp.bfloat16), v_h,
                                 preferred_element_type=jnp.float32))  # [SEQ, HEAD_DIM]
        attn = jnp.concatenate(heads, axis=-1)                       # [SEQ, HIDDEN]
        tokens = tokens + _linear(attn, proj_w_ref[d], proj_b_ref[d])

        t = _layernorm(tokens, ln2_g_ref[d], ln2_b_ref[d])
        hmid = _gelu(_linear(t, fc1_w_ref[d], fc1_b_ref[d]))         # [SEQ, MLP]
        tokens = tokens + _linear(hmid, fc2_w_ref[d], fc2_b_ref[d])

    # ---- final LN + backbone head on the CLS row only -------------------------
    cls_tok = _layernorm(tokens[0:1, :], ln_f_g_ref[...], ln_f_b_ref[...])  # [1, 32]
    emb = _linear(cls_tok, head_w_ref[...], head_b_ref[...])         # [1, 1024]
    emb_ref[0] = emb

    # ---- class head (padded 1024 x 128; pad rows/cols are zero) ---------------
    logits = _linear(emb, cls_head_w_ref[...], cls_head_b_ref[...])  # [1, 128]
    cls_out_ref[0] = logits


_WEIGHT_ORDER = (
    "patch_w", "patch_b", "cls_pos",
    "ln1_g", "ln1_b", "qkv_w", "qkv_b", "proj_w", "proj_b",
    "ln2_g", "ln2_b", "fc1_w", "fc1_b", "fc2_w", "fc2_b",
    "ln_f_g", "ln_f_b", "head_w", "head_b",
    "cls_head_w", "cls_head_b",
)


def _replicated_spec(arr):
    zeros = (0,) * arr.ndim
    return pl.BlockSpec(arr.shape, lambda b: zeros)


def _fused_forward_call(prepped, patches):
    """Single pallas_call running the entire ViT + class head. Returns (emb, logits)."""
    B = patches.shape[0]
    weights = [prepped[k] for k in _WEIGHT_ORDER]

    in_specs = [pl.BlockSpec((1, N_PATCH, PATCH_DIM), lambda b: (b, 0, 0))]
    in_specs += [_replicated_spec(w) for w in weights]

    out_shape = (
        jax.ShapeDtypeStruct((B, 1, BACKBONE_PAD), jnp.float32),
        jax.ShapeDtypeStruct((B, 1, CLASS_PAD), jnp.float32),
    )
    out_specs = (
        pl.BlockSpec((1, 1, BACKBONE_PAD), lambda b: (b, 0, 0)),
        pl.BlockSpec((1, 1, CLASS_PAD), lambda b: (b, 0, 0)),
    )
    emb, logits = pl.pallas_call(
        _fused_vit_kernel,
        grid=(B,),
        out_shape=out_shape,
        in_specs=in_specs,
        out_specs=out_specs,
        compiler_params=pltpu.CompilerParams(
            dimension_semantics=("parallel",)),   # v7x: batch split across TensorCores
    )(patches, *weights)
    return emb, logits


# ----------------------------------------------------------------------------
# Parameters (synthetic) and host-side weight preparation
# ----------------------------------------------------------------------------
def init_params(key):
    """Deterministic synthetic weights in natural (PyTorch-like) shapes."""
    ks = iter(jax.random.split(key, 64))

    def w(shape, scale=0.02):
        return (scale * jax.random.normal(next(ks), shape)).astype(jnp.float32)

    def z(shape):
        return jnp.zeros(shape, jnp.float32)

    params = {
        "patch_w": w((PATCH_DIM, HIDDEN)),
        "patch_b": z((HIDDEN,)),
        "cls": w((1, 1, HIDDEN)),
        "pos": w((1, SEQ, HIDDEN)),
        "ln_f_g": jnp.ones((HIDDEN,), jnp.float32),
        "ln_f_b": z((HIDDEN,)),
        "head_w": w((HIDDEN, BACKBONE_OUT)),
        "head_b": z((BACKBONE_OUT,)),
        "cls_head_w": w((BACKBONE_OUT, NUM_CLASS)),
        "cls_head_b": z((NUM_CLASS,)),
        "blocks": [],
    }
    for _ in range(DEPTH):
        params["blocks"].append({
            "ln1_g": jnp.ones((HIDDEN,), jnp.float32), "ln1_b": z((HIDDEN,)),
            "qkv_w": w((HIDDEN, 3 * HIDDEN)), "qkv_b": z((3 * HIDDEN,)),
            "proj_w": w((HIDDEN, HIDDEN)), "proj_b": z((HIDDEN,)),
            "ln2_g": jnp.ones((HIDDEN,), jnp.float32), "ln2_b": z((HIDDEN,)),
            "fc1_w": w((HIDDEN, MLP)), "fc1_b": z((MLP,)),
            "fc2_w": w((MLP, HIDDEN)), "fc2_b": z((HIDDEN,)),
        })
    return params


def prepare_params(params):
    """Stack per-block weights along depth, cast matmul weights to bf16, and pad
    head / class-head to lane-dense shapes. Done once, outside the hot path."""
    def stack(key):
        return jnp.stack([blk[key] for blk in params["blocks"]], axis=0)

    def bf(a):
        return a.astype(jnp.bfloat16)

    cls_pos = params["pos"][0]                                  # [SEQ, HIDDEN]
    cls_pos = cls_pos.at[0].add(params["cls"][0, 0])            # fold CLS token into pos row 0

    head_w = jnp.pad(params["head_w"], ((0, 0), (0, BACKBONE_PAD - BACKBONE_OUT)))
    head_b = jnp.pad(params["head_b"], (0, BACKBONE_PAD - BACKBONE_OUT))
    ch_w = jnp.pad(params["cls_head_w"],
                   ((0, BACKBONE_PAD - BACKBONE_OUT), (0, CLASS_PAD - NUM_CLASS)))
    ch_b = jnp.pad(params["cls_head_b"], (0, CLASS_PAD - NUM_CLASS))

    return {
        "patch_w": bf(params["patch_w"]),
        "patch_b": params["patch_b"].reshape(1, HIDDEN),
        "cls_pos": cls_pos,
        "ln1_g": stack("ln1_g").reshape(DEPTH, 1, HIDDEN),
        "ln1_b": stack("ln1_b").reshape(DEPTH, 1, HIDDEN),
        "qkv_w": bf(stack("qkv_w")),
        "qkv_b": stack("qkv_b").reshape(DEPTH, 1, 3 * HIDDEN),
        "proj_w": bf(stack("proj_w")),
        "proj_b": stack("proj_b").reshape(DEPTH, 1, HIDDEN),
        "ln2_g": stack("ln2_g").reshape(DEPTH, 1, HIDDEN),
        "ln2_b": stack("ln2_b").reshape(DEPTH, 1, HIDDEN),
        "fc1_w": bf(stack("fc1_w")),
        "fc1_b": stack("fc1_b").reshape(DEPTH, 1, MLP),
        "fc2_w": bf(stack("fc2_w")),
        "fc2_b": stack("fc2_b").reshape(DEPTH, 1, HIDDEN),
        "ln_f_g": params["ln_f_g"].reshape(1, HIDDEN),
        "ln_f_b": params["ln_f_b"].reshape(1, HIDDEN),
        "head_w": bf(head_w),
        "head_b": head_b.reshape(1, BACKBONE_PAD),
        "cls_head_w": bf(ch_w),
        "cls_head_b": ch_b.reshape(1, CLASS_PAD),
    }


# ----------------------------------------------------------------------------
# Forward pass (only layout glue outside the kernel)
# ----------------------------------------------------------------------------
def _extract_patches(x):
    # NCHW -> [B, N_PATCH, C*P*P] with (c, ph, pw) flatten order (Conv2d-as-patch-embed).
    B = x.shape[0]
    p = x.reshape(B, IN_CH, GRID, PATCH, GRID, PATCH)
    p = p.transpose(0, 2, 4, 1, 3, 5)
    return p.reshape(B, N_PATCH, PATCH_DIM)


@jax.jit
def streetviewnet_forward(prepped, x):
    patches = _extract_patches(x)
    _, logits = _fused_forward_call(prepped, patches)
    return logits[:, 0, :NUM_CLASS]                     # [B, NUM_CLASS]


@jax.jit
def get_embedding(prepped, x):
    patches = _extract_patches(x)
    emb, _ = _fused_forward_call(prepped, patches)
    return emb[:, 0, :BACKBONE_OUT]                     # [B, 1000]


# ----------------------------------------------------------------------------

if __name__ == "__main__":
    key = jax.random.PRNGKey(0)
    k_param, k_x = jax.random.split(key)

    params = init_params(k_param)
    prepped = prepare_params(params)
    x = jax.random.normal(k_x, (2, IN_CH, IMG, IMG), dtype=jnp.float32)  # NCHW

    out = jax.block_until_ready(streetviewnet_forward(prepped, x))
    emb = jax.block_until_ready(get_embedding(prepped, x))

    assert out.shape == (2, NUM_CLASS), out.shape
    assert out.dtype == jnp.float32
    assert emb.shape == (2, BACKBONE_OUT), emb.shape
    assert bool(jnp.all(jnp.isfinite(out)))
    assert bool(jnp.all(jnp.isfinite(emb)))
    print("KERNEL_OK")
</pallas_src>

<mosaic_0001>
module attributes {stable_mosaic.version = 11 : i64} {
  func.func @_fused_vit_kernel(%arg0: i32, %arg1: memref<1x4x192xf32, #tpu.memory_space<vmem>>, %arg2: memref<192x32xbf16, #tpu.memory_space<vmem>>, %arg3: memref<1x32xf32, #tpu.memory_space<vmem>>, %arg4: memref<5x32xf32, #tpu.memory_space<vmem>>, %arg5: memref<2x1x32xf32, #tpu.memory_space<vmem>>, %arg6: memref<2x1x32xf32, #tpu.memory_space<vmem>>, %arg7: memref<2x32x96xbf16, #tpu.memory_space<vmem>>, %arg8: memref<2x1x96xf32, #tpu.memory_space<vmem>>, %arg9: memref<2x32x32xbf16, #tpu.memory_space<vmem>>, %arg10: memref<2x1x32xf32, #tpu.memory_space<vmem>>, %arg11: memref<2x1x32xf32, #tpu.memory_space<vmem>>, %arg12: memref<2x1x32xf32, #tpu.memory_space<vmem>>, %arg13: memref<2x32x64xbf16, #tpu.memory_space<vmem>>, %arg14: memref<2x1x64xf32, #tpu.memory_space<vmem>>, %arg15: memref<2x64x32xbf16, #tpu.memory_space<vmem>>, %arg16: memref<2x1x32xf32, #tpu.memory_space<vmem>>, %arg17: memref<1x32xf32, #tpu.memory_space<vmem>>, %arg18: memref<1x32xf32, #tpu.memory_space<vmem>>, %arg19: memref<32x1024xbf16, #tpu.memory_space<vmem>>, %arg20: memref<1x1024xf32, #tpu.memory_space<vmem>>, %arg21: memref<1024x128xbf16, #tpu.memory_space<vmem>>, %arg22: memref<1x128xf32, #tpu.memory_space<vmem>>, %arg23: memref<1x1x1024xf32, #tpu.memory_space<vmem>>, %arg24: memref<1x1x128xf32, #tpu.memory_space<vmem>>) attributes {dimension_semantics = [#tpu.dimension_semantics<parallel>], iteration_bounds = array<i64: 2>, scalar_prefetch = 0 : i64, scratch_operands = 0 : i64, tpu.core_type = #tpu.core_type<tc>, window_params = [{transform_indices = @transform_0, window_bounds = array<i64: 1, 4, 192>}, {pipeline_mode = #tpu.pipeline_mode<synchronous>, transform_indices = @transform_1, window_bounds = array<i64: 192, 32>}, {pipeline_mode = #tpu.pipeline_mode<synchronous>, transform_indices = @transform_2, window_bounds = array<i64: 1, 32>}, {pipeline_mode = #tpu.pipeline_mode<synchronous>, transform_indices = @transform_3, window_bounds = array<i64: 5, 32>}, {pipeline_mode = #tpu.pipeline_mode<synchronous>, transform_indices = @transform_4, window_bounds = array<i64: 2, 1, 32>}, {pipeline_mode = #tpu.pipeline_mode<synchronous>, transform_indices = @transform_5, window_bounds = array<i64: 2, 1, 32>}, {pipeline_mode = #tpu.pipeline_mode<synchronous>, transform_indices = @transform_6, window_bounds = array<i64: 2, 32, 96>}, {pipeline_mode = #tpu.pipeline_mode<synchronous>, transform_indices = @transform_7, window_bounds = array<i64: 2, 1, 96>}, {pipeline_mode = #tpu.pipeline_mode<synchronous>, transform_indices = @transform_8, window_bounds = array<i64: 2, 32, 32>}, {pipeline_mode = #tpu.pipeline_mode<synchronous>, transform_indices = @transform_9, window_bounds = array<i64: 2, 1, 32>}, {pipeline_mode = #tpu.pipeline_mode<synchronous>, transform_indices = @transform_10, window_bounds = array<i64: 2, 1, 32>}, {pipeline_mode = #tpu.pipeline_mode<synchronous>, transform_indices = @transform_11, window_bounds = array<i64: 2, 1, 32>}, {pipeline_mode = #tpu.pipeline_mode<synchronous>, transform_indices = @transform_12, window_bounds = array<i64: 2, 32, 64>}, {pipeline_mode = #tpu.pipeline_mode<synchronous>, transform_indices = @transform_13, window_bounds = array<i64: 2, 1, 64>}, {pipeline_mode = #tpu.pipeline_mode<synchronous>, transform_indices = @transform_14, window_bounds = array<i64: 2, 64, 32>}, {pipeline_mode = #tpu.pipeline_mode<synchronous>, transform_indices = @transform_15, window_bounds = array<i64: 2, 1, 32>}, {pipeline_mode = #tpu.pipeline_mode<synchronous>, transform_indices = @transform_16, window_bounds = array<i64: 1, 32>}, {pipeline_mode = #tpu.pipeline_mode<synchronous>, transform_indices = @transform_17, window_bounds = array<i64: 1, 32>}, {pipeline_mode = #tpu.pipeline_mode<synchronous>, transform_indices = @transform_18, window_bounds = array<i64: 32, 1024>}, {pipeline_mode = #tpu.pipeline_mode<synchronous>, transform_indices = @transform_19, window_bounds = array<i64: 1, 1024>}, {pipeline_mode = #tpu.pipeline_mode<synchronous>, transform_indices = @transform_20, window_bounds = array<i64: 1024, 128>}, {pipeline_mode = #tpu.pipeline_mode<synchronous>, transform_indices = @transform_21, window_bounds = array<i64: 1, 128>}, {transform_indices = @transform_22, window_bounds = array<i64: 1, 1, 1024>}, {transform_indices = @transform_23, window_bounds = array<i64: 1, 1, 128>}]} {
    %c0 = arith.constant 0 : index
    %c0_0 = arith.constant 0 : index
    %c0_1 = arith.constant 0 : index
    %0 = vector.load %arg1[%c0, %c0_0, %c0_1] : memref<1x4x192xf32, #tpu.memory_space<vmem>>, vector<1x4x192xf32>
    %1 = vector.shape_cast %0 : vector<1x4x192xf32> to vector<4x192xf32>
    %c0_2 = arith.constant 0 : index
    %c0_3 = arith.constant 0 : index
    %2 = vector.load %arg2[%c0_2, %c0_3] : memref<192x32xbf16, #tpu.memory_space<vmem>>, vector<192x32xbf16>
    %c0_4 = arith.constant 0 : index
    %c0_5 = arith.constant 0 : index
    %3 = vector.load %arg3[%c0_4, %c0_5] : memref<1x32xf32, #tpu.memory_space<vmem>>, vector<1x32xf32>
    %4 = arith.truncf %1 : vector<4x192xf32> to vector<4x192xbf16>
    %cst = arith.constant dense<0.000000e+00> : vector<4x32xf32>
    %5 = tpu.matmul %4, %2, %cst {dimension_numbers = #tpu.dot_dimension_numbers<[1], [0], [0], [1], [0, 0, 1, 1], [], []>} : vector<4x192xbf16>, vector<192x32xbf16>, vector<4x32xf32> -> vector<4x32xf32>
    %6 = vector.broadcast %3 : vector<1x32xf32> to vector<4x32xf32>
    %7 = arith.addf %5, %6 : vector<4x32xf32>
    %cst_6 = arith.constant 0.000000e+00 : f32
    %8 = vector.broadcast %cst_6 : f32 to vector<1x32xf32>
    %9 = tpu.concatenate %8, %7 in 0 : vector<1x32xf32>, vector<4x32xf32> -> vector<5x32xf32>
    %c0_7 = arith.constant 0 : index
    %c0_8 = arith.constant 0 : index
    %10 = vector.load %arg4[%c0_7, %c0_8] : memref<5x32xf32, #tpu.memory_space<vmem>>, vector<5x32xf32>
    %11 = arith.addf %9, %10 : vector<5x32xf32>
    %c0_9 = arith.constant 0 : index
    %c0_10 = arith.constant 0 : index
    %c0_11 = arith.constant 0 : index
    %12 = vector.load %arg5[%c0_9, %c0_10, %c0_11] : memref<2x1x32xf32, #tpu.memory_space<vmem>>, vector<1x1x32xf32>
    %13 = vector.shape_cast %12 : vector<1x1x32xf32> to vector<1x32xf32>
    %c0_12 = arith.constant 0 : index
    %c0_13 = arith.constant 0 : index
    %c0_14 = arith.constant 0 : index
    %14 = vector.load %arg6[%c0_12, %c0_13, %c0_14] : memref<2x1x32xf32, #tpu.memory_space<vmem>>, vector<1x1x32xf32>
    %15 = vector.shape_cast %14 : vector<1x1x32xf32> to vector<1x32xf32>
    %cst_15 = arith.constant dense<0.000000e+00> : vector<5xf32>
    %16 = vector.multi_reduction <add>, %11, %cst_15 [1] : vector<5x32xf32> to vector<5xf32>
    %17 = vector.shape_cast %16 : vector<5xf32> to vector<5x1xf32>
    %cst_16 = arith.constant 3.200000e+01 : f32
    %18 = vector.broadcast %cst_16 : f32 to vector<5x1xf32>
    %19 = arith.divf %17, %18 : vector<5x1xf32>
    %20 = vector.broadcast %19 : vector<5x1xf32> to vector<5x32xf32>
    %21 = arith.subf %11, %20 : vector<5x32xf32>
    %22 = arith.mulf %21, %21 : vector<5x32xf32>
    %cst_17 = arith.constant dense<0.000000e+00> : vector<5xf32>
    %23 = vector.multi_reduction <add>, %22, %cst_17 [1] : vector<5x32xf32> to vector<5xf32>
    %24 = vector.shape_cast %23 : vector<5xf32> to vector<5x1xf32>
    %cst_18 = arith.constant 3.200000e+01 : f32
    %25 = vector.broadcast %cst_18 : f32 to vector<5x1xf32>
    %26 = arith.divf %24, %25 : vector<5x1xf32>
    %cst_19 = arith.constant 9.99999997E-7 : f32
    %27 = vector.broadcast %cst_19 : f32 to vector<5x1xf32>
    %28 = arith.addf %26, %27 : vector<5x1xf32>
    %29 = math.rsqrt %28 : vector<5x1xf32>
    %30 = vector.broadcast %29 : vector<5x1xf32> to vector<5x32xf32>
    %31 = arith.mulf %21, %30 : vector<5x32xf32>
    %32 = vector.broadcast %13 : vector<1x32xf32> to vector<5x32xf32>
    %33 = arith.mulf %31, %32 : vector<5x32xf32>
    %34 = vector.broadcast %15 : vector<1x32xf32> to vector<5x32xf32>
    %35 = arith.addf %33, %34 : vector<5x32xf32>
    %c0_20 = arith.constant 0 : index
    %c0_21 = arith.constant 0 : index
    %c0_22 = arith.constant 0 : index
    %36 = vector.load %arg7[%c0_20, %c0_21, %c0_22] : memref<2x32x96xbf16, #tpu.memory_space<vmem>>, vector<1x32x96xbf16>
    %37 = vector.shape_cast %36 : vector<1x32x96xbf16> to vector<32x96xbf16>
    %c0_23 = arith.constant 0 : index
    %c0_24 = arith.constant 0 : index
    %c0_25 = arith.constant 0 : index
    %38 = vector.load %arg8[%c0_23, %c0_24, %c0_25] : memref<2x1x96xf32, #tpu.memory_space<vmem>>, vector<1x1x96xf32>
    %39 = vector.shape_cast %38 : vector<1x1x96xf32> to vector<1x96xf32>
    %40 = arith.truncf %35 : vector<5x32xf32> to vector<5x32xbf16>
    %cst_26 = arith.constant dense<0.000000e+00> : vector<5x96xf32>
    %41 = tpu.matmul %40, %37, %cst_26 {dimension_numbers = #tpu.dot_dimension_numbers<[1], [0], [0], [1], [0, 0, 1, 1], [], []>} : vector<5x32xbf16>, vector<32x96xbf16>, vector<5x96xf32> -> vector<5x96xf32>
    %42 = vector.broadcast %39 : vector<1x96xf32> to vector<5x96xf32>
    %43 = arith.addf %41, %42 : vector<5x96xf32>
    %44 = arith.truncf %43 : vector<5x96xf32> to vector<5x96xbf16>
    %45 = vector.extract_strided_slice %44 {offsets = [0, 0], sizes = [5, 8], strides = [1, 1]} : vector<5x96xbf16> to vector<5x8xbf16>
    %46 = vector.extract_strided_slice %44 {offsets = [0, 32], sizes = [5, 8], strides = [1, 1]} : vector<5x96xbf16> to vector<5x8xbf16>
    %47 = vector.extract_strided_slice %44 {offsets = [0, 64], sizes = [5, 8], strides = [1, 1]} : vector<5x96xbf16> to vector<5x8xbf16>
    %cst_27 = arith.constant dense<0.000000e+00> : vector<5x5xf32>
    %48 = tpu.matmul %45, %46, %cst_27 {dimension_numbers = #tpu.dot_dimension_numbers<[1], [1], [0], [0], [0, 0, 1, 0], [], []>} : vector<5x8xbf16>, vector<5x8xbf16>, vector<5x5xf32> -> vector<5x5xf32>
    %cst_28 = arith.constant 0.353553385 : f32
    %49 = vector.broadcast %cst_28 : f32 to vector<5x5xf32>
    %50 = arith.mulf %48, %49 : vector<5x5xf32>
    %cst_29 = arith.constant dense<0xFF800000> : vector<5xf32>
    %51 = vector.multi_reduction <maximumf>, %50, %cst_29 [1] : vector<5x5xf32> to vector<5xf32>
    %52 = vector.shape_cast %51 : vector<5xf32> to vector<5x1xf32>
    %53 = vector.broadcast %52 : vector<5x1xf32> to vector<5x5xf32>
    %54 = arith.subf %50, %53 : vector<5x5xf32>
    %55 = math.exp %54 : vector<5x5xf32>
    %cst_30 = arith.constant dense<0.000000e+00> : vector<5xf32>
    %56 = vector.multi_reduction <add>, %55, %cst_30 [1] : vector<5x5xf32> to vector<5xf32>
    %57 = vector.shape_cast %56 : vector<5xf32> to vector<5x1xf32>
    %58 = tpu.reciprocal %57 {approx = true} : vector<5x1xf32> -> vector<5x1xf32>
    %59 = vector.broadcast %58 : vector<5x1xf32> to vector<5x5xf32>
    %60 = arith.mulf %55, %59 : vector<5x5xf32>
    %61 = arith.truncf %60 : vector<5x5xf32> to vector<5x5xbf16>
    %cst_31 = arith.constant dense<0.000000e+00> : vector<5x8xf32>
    %62 = tpu.matmul %61, %47, %cst_31 {dimension_numbers = #tpu.dot_dimension_numbers<[1], [0], [0], [1], [0, 0, 1, 1], [], []>} : vector<5x5xbf16>, vector<5x8xbf16>, vector<5x8xf32> -> vector<5x8xf32>
    %63 = vector.extract_strided_slice %44 {offsets = [0, 8], sizes = [5, 8], strides = [1, 1]} : vector<5x96xbf16> to vector<5x8xbf16>
    %64 = vector.extract_strided_slice %44 {offsets = [0, 40], sizes = [5, 8], strides = [1, 1]} : vector<5x96xbf16> to vector<5x8xbf16>
    %65 = vector.extract_strided_slice %44 {offsets = [0, 72], sizes = [5, 8], strides = [1, 1]} : vector<5x96xbf16> to vector<5x8xbf16>
    %cst_32 = arith.constant dense<0.000000e+00> : vector<5x5xf32>
    %66 = tpu.matmul %63, %64, %cst_32 {dimension_numbers = #tpu.dot_dimension_numbers<[1], [1], [0], [0], [0, 0, 1, 0], [], []>} : vector<5x8xbf16>, vector<5x8xbf16>, vector<5x5xf32> -> vector<5x5xf32>
    %cst_33 = arith.constant 0.353553385 : f32
    %67 = vector.broadcast %cst_33 : f32 to vector<5x5xf32>
    %68 = arith.mulf %66, %67 : vector<5x5xf32>
    %cst_34 = arith.constant dense<0xFF800000> : vector<5xf32>
    %69 = vector.multi_reduction <maximumf>, %68, %cst_34 [1] : vector<5x5xf32> to vector<5xf32>
    %70 = vector.shape_cast %69 : vector<5xf32> to vector<5x1xf32>
    %71 = vector.broadcast %70 : vector<5x1xf32> to vector<5x5xf32>
    %72 = arith.subf %68, %71 : vector<5x5xf32>
    %73 = math.exp %72 : vector<5x5xf32>
    %cst_35 = arith.constant dense<0.000000e+00> : vector<5xf32>
    %74 = vector.multi_reduction <add>, %73, %cst_35 [1] : vector<5x5xf32> to vector<5xf32>
    %75 = vector.shape_cast %74 : vector<5xf32> to vector<5x1xf32>
    %76 = tpu.reciprocal %75 {approx = true} : vector<5x1xf32> -> vector<5x1xf32>
    %77 = vector.broadcast %76 : vector<5x1xf32> to vector<5x5xf32>
    %78 = arith.mulf %73, %77 : vector<5x5xf32>
    %79 = arith.truncf %78 : vector<5x5xf32> to vector<5x5xbf16>
    %cst_36 = arith.constant dense<0.000000e+00> : vector<5x8xf32>
    %80 = tpu.matmul %79, %65, %cst_36 {dimension_numbers = #tpu.dot_dimension_numbers<[1], [0], [0], [1], [0, 0, 1, 1], [], []>} : vector<5x5xbf16>, vector<5x8xbf16>, vector<5x8xf32> -> vector<5x8xf32>
    %81 = vector.extract_strided_slice %44 {offsets = [0, 16], sizes = [5, 8], strides = [1, 1]} : vector<5x96xbf16> to vector<5x8xbf16>
    %82 = vector.extract_strided_slice %44 {offsets = [0, 48], sizes = [5, 8], strides = [1, 1]} : vector<5x96xbf16> to vector<5x8xbf16>
    %83 = vector.extract_strided_slice %44 {offsets = [0, 80], sizes = [5, 8], strides = [1, 1]} : vector<5x96xbf16> to vector<5x8xbf16>
    %cst_37 = arith.constant dense<0.000000e+00> : vector<5x5xf32>
    %84 = tpu.matmul %81, %82, %cst_37 {dimension_numbers = #tpu.dot_dimension_numbers<[1], [1], [0], [0], [0, 0, 1, 0], [], []>} : vector<5x8xbf16>, vector<5x8xbf16>, vector<5x5xf32> -> vector<5x5xf32>
    %cst_38 = arith.constant 0.353553385 : f32
    %85 = vector.broadcast %cst_38 : f32 to vector<5x5xf32>
    %86 = arith.mulf %84, %85 : vector<5x5xf32>
    %cst_39 = arith.constant dense<0xFF800000> : vector<5xf32>
    %87 = vector.multi_reduction <maximumf>, %86, %cst_39 [1] : vector<5x5xf32> to vector<5xf32>
    %88 = vector.shape_cast %87 : vector<5xf32> to vector<5x1xf32>
    %89 = vector.broadcast %88 : vector<5x1xf32> to vector<5x5xf32>
    %90 = arith.subf %86, %89 : vector<5x5xf32>
    %91 = math.exp %90 : vector<5x5xf32>
    %cst_40 = arith.constant dense<0.000000e+00> : vector<5xf32>
    %92 = vector.multi_reduction <add>, %91, %cst_40 [1] : vector<5x5xf32> to vector<5xf32>
    %93 = vector.shape_cast %92 : vector<5xf32> to vector<5x1xf32>
    %94 = tpu.reciprocal %93 {approx = true} : vector<5x1xf32> -> vector<5x1xf32>
    %95 = vector.broadcast %94 : vector<5x1xf32> to vector<5x5xf32>
    %96 = arith.mulf %91, %95 : vector<5x5xf32>
    %97 = arith.truncf %96 : vector<5x5xf32> to vector<5x5xbf16>
    %cst_41 = arith.constant dense<0.000000e+00> : vector<5x8xf32>
    %98 = tpu.matmul %97, %83, %cst_41 {dimension_numbers = #tpu.dot_dimension_numbers<[1], [0], [0], [1], [0, 0, 1, 1], [], []>} : vector<5x5xbf16>, vector<5x8xbf16>, vector<5x8xf32> -> vector<5x8xf32>
    %99 = vector.extract_strided_slice %44 {offsets = [0, 24], sizes = [5, 8], strides = [1, 1]} : vector<5x96xbf16> to vector<5x8xbf16>
    %100 = vector.extract_strided_slice %44 {offsets = [0, 56], sizes = [5, 8], strides = [1, 1]} : vector<5x96xbf16> to vector<5x8xbf16>
    %101 = vector.extract_strided_slice %44 {offsets = [0, 88], sizes = [5, 8], strides = [1, 1]} : vector<5x96xbf16> to vector<5x8xbf16>
    %cst_42 = arith.constant dense<0.000000e+00> : vector<5x5xf32>
    %102 = tpu.matmul %99, %100, %cst_42 {dimension_numbers = #tpu.dot_dimension_numbers<[1], [1], [0], [0], [0, 0, 1, 0], [], []>} : vector<5x8xbf16>, vector<5x8xbf16>, vector<5x5xf32> -> vector<5x5xf32>
    %cst_43 = arith.constant 0.353553385 : f32
    %103 = vector.broadcast %cst_43 : f32 to vector<5x5xf32>
    %104 = arith.mulf %102, %103 : vector<5x5xf32>
    %cst_44 = arith.constant dense<0xFF800000> : vector<5xf32>
    %105 = vector.multi_reduction <maximumf>, %104, %cst_44 [1] : vector<5x5xf32> to vector<5xf32>
    %106 = vector.shape_cast %105 : vector<5xf32> to vector<5x1xf32>
    %107 = vector.broadcast %106 : vector<5x1xf32> to vector<5x5xf32>
    %108 = arith.subf %104, %107 : vector<5x5xf32>
    %109 = math.exp %108 : vector<5x5xf32>
    %cst_45 = arith.constant dense<0.000000e+00> : vector<5xf32>
    %110 = vector.multi_reduction <add>, %109, %cst_45 [1] : vector<5x5xf32> to vector<5xf32>
    %111 = vector.shape_cast %110 : vector<5xf32> to vector<5x1xf32>
    %112 = tpu.reciprocal %111 {approx = true} : vector<5x1xf32> -> vector<5x1xf32>
    %113 = vector.broadcast %112 : vector<5x1xf32> to vector<5x5xf32>
    %114 = arith.mulf %109, %113 : vector<5x5xf32>
    %115 = arith.truncf %114 : vector<5x5xf32> to vector<5x5xbf16>
    %cst_46 = arith.constant dense<0.000000e+00> : vector<5x8xf32>
    %116 = tpu.matmul %115, %101, %cst_46 {dimension_numbers = #tpu.dot_dimension_numbers<[1], [0], [0], [1], [0, 0, 1, 1], [], []>} : vector<5x5xbf16>, vector<5x8xbf16>, vector<5x8xf32> -> vector<5x8xf32>
    %117 = tpu.concatenate %62, %80, %98, %116 in 1 : vector<5x8xf32>, vector<5x8xf32>, vector<5x8xf32>, vector<5x8xf32> -> vector<5x32xf32>
    %c0_47 = arith.constant 0 : index
    %c0_48 = arith.constant 0 : index
    %c0_49 = arith.constant 0 : index
    %118 = vector.load %arg9[%c0_47, %c0_48, %c0_49] : memref<2x32x32xbf16, #tpu.memory_space<vmem>>, vector<1x32x32xbf16>
    %119 = vector.shape_cast %118 : vector<1x32x32xbf16> to vector<32x32xbf16>
    %c0_50 = arith.constant 0 : index
    %c0_51 = arith.constant 0 : index
    %c0_52 = arith.constant 0 : index
    %120 = vector.load %arg10[%c0_50, %c0_51, %c0_52] : memref<2x1x32xf32, #tpu.memory_space<vmem>>, vector<1x1x32xf32>
    %121 = vector.shape_cast %120 : vector<1x1x32xf32> to vector<1x32xf32>
    %122 = arith.truncf %117 : vector<5x32xf32> to vector<5x32xbf16>
    %cst_53 = arith.constant dense<0.000000e+00> : vector<5x32xf32>
    %123 = tpu.matmul %122, %119, %cst_53 {dimension_numbers = #tpu.dot_dimension_numbers<[1], [0], [0], [1], [0, 0, 1, 1], [], []>} : vector<5x32xbf16>, vector<32x32xbf16>, vector<5x32xf32> -> vector<5x32xf32>
    %124 = vector.broadcast %121 : vector<1x32xf32> to vector<5x32xf32>
    %125 = arith.addf %123, %124 : vector<5x32xf32>
    %126 = arith.addf %11, %125 : vector<5x32xf32>
    %c0_54 = arith.constant 0 : index
    %c0_55 = arith.constant 0 : index
    %c0_56 = arith.constant 0 : index
    %127 = vector.load %arg11[%c0_54, %c0_55, %c0_56] : memref<2x1x32xf32, #tpu.memory_space<vmem>>, vector<1x1x32xf32>
    %128 = vector.shape_cast %127 : vector<1x1x32xf32> to vector<1x32xf32>
    %c0_57 = arith.constant 0 : index
    %c0_58 = arith.constant 0 : index
    %c0_59 = arith.constant 0 : index
    %129 = vector.load %arg12[%c0_57, %c0_58, %c0_59] : memref<2x1x32xf32, #tpu.memory_space<vmem>>, vector<1x1x32xf32>
    %130 = vector.shape_cast %129 : vector<1x1x32xf32> to vector<1x32xf32>
    %cst_60 = arith.constant dense<0.000000e+00> : vector<5xf32>
    %131 = vector.multi_reduction <add>, %126, %cst_60 [1] : vector<5x32xf32> to vector<5xf32>
    %132 = vector.shape_cast %131 : vector<5xf32> to vector<5x1xf32>
    %cst_61 = arith.constant 3.200000e+01 : f32
    %133 = vector.broadcast %cst_61 : f32 to vector<5x1xf32>
    %134 = arith.divf %132, %133 : vector<5x1xf32>
    %135 = vector.broadcast %134 : vector<5x1xf32> to vector<5x32xf32>
    %136 = arith.subf %126, %135 : vector<5x32xf32>
    %137 = arith.mulf %136, %136 : vector<5x32xf32>
    %cst_62 = arith.constant dense<0.000000e+00> : vector<5xf32>
    %138 = vector.multi_reduction <add>, %137, %cst_62 [1] : vector<5x32xf32> to vector<5xf32>
    %139 = vector.shape_cast %138 : vector<5xf32> to vector<5x1xf32>
    %cst_63 = arith.constant 3.200000e+01 : f32
    %140 = vector.broadcast %cst_63 : f32 to vector<5x1xf32>
    %141 = arith.divf %139, %140 : vector<5x1xf32>
    %cst_64 = arith.constant 9.99999997E-7 : f32
    %142 = vector.broadcast %cst_64 : f32 to vector<5x1xf32>
    %143 = arith.addf %141, %142 : vector<5x1xf32>
    %144 = math.rsqrt %143 : vector<5x1xf32>
    %145 = vector.broadcast %144 : vector<5x1xf32> to vector<5x32xf32>
    %146 = arith.mulf %136, %145 : vector<5x32xf32>
    %147 = vector.broadcast %128 : vector<1x32xf32> to vector<5x32xf32>
    %148 = arith.mulf %146, %147 : vector<5x32xf32>
    %149 = vector.broadcast %130 : vector<1x32xf32> to vector<5x32xf32>
    %150 = arith.addf %148, %149 : vector<5x32xf32>
    %c0_65 = arith.constant 0 : index
    %c0_66 = arith.constant 0 : index
    %c0_67 = arith.constant 0 : index
    %151 = vector.load %arg13[%c0_65, %c0_66, %c0_67] : memref<2x32x64xbf16, #tpu.memory_space<vmem>>, vector<1x32x64xbf16>
    %152 = vector.shape_cast %151 : vector<1x32x64xbf16> to vector<32x64xbf16>
    %c0_68 = arith.constant 0 : index
    %c0_69 = arith.constant 0 : index
    %c0_70 = arith.constant 0 : index
    %153 = vector.load %arg14[%c0_68, %c0_69, %c0_70] : memref<2x1x64xf32, #tpu.memory_space<vmem>>, vector<1x1x64xf32>
    %154 = vector.shape_cast %153 : vector<1x1x64xf32> to vector<1x64xf32>
    %155 = arith.truncf %150 : vector<5x32xf32> to vector<5x32xbf16>
    %cst_71 = arith.constant dense<0.000000e+00> : vector<5x64xf32>
    %156 = tpu.matmul %155, %152, %cst_71 {dimension_numbers = #tpu.dot_dimension_numbers<[1], [0], [0], [1], [0, 0, 1, 1], [], []>} : vector<5x32xbf16>, vector<32x64xbf16>, vector<5x64xf32> -> vector<5x64xf32>
    %157 = vector.broadcast %154 : vector<1x64xf32> to vector<5x64xf32>
    %158 = arith.addf %156, %157 : vector<5x64xf32>
    %cst_72 = arith.constant 5.000000e-01 : f32
    %159 = vector.broadcast %cst_72 : f32 to vector<5x64xf32>
    %160 = arith.mulf %159, %158 : vector<5x64xf32>
    %cst_73 = arith.constant 0.707106769 : f32
    %161 = vector.broadcast %cst_73 : f32 to vector<5x64xf32>
    %162 = arith.mulf %158, %161 : vector<5x64xf32>
    %cst_74 = arith.constant 0.000000e+00 : f32
    %163 = vector.broadcast %cst_74 : f32 to vector<5x64xf32>
    %164 = arith.cmpf oge, %162, %163 : vector<5x64xf32>
    %cst_75 = arith.constant 1.000000e+00 : f32
    %cst_76 = arith.constant -1.000000e+00 : f32
    %165 = vector.broadcast %cst_75 : f32 to vector<5x64xf32>
    %166 = vector.broadcast %cst_76 : f32 to vector<5x64xf32>
    %167 = arith.select %164, %165, %166 : vector<5x64xi1>, vector<5x64xf32>
    %168 = math.absf %162 : vector<5x64xf32>
    %cst_77 = arith.constant 0.327591091 : f32
    %169 = vector.broadcast %cst_77 : f32 to vector<5x64xf32>
    %170 = arith.mulf %169, %168 : vector<5x64xf32>
    %cst_78 = arith.constant 1.000000e+00 : f32
    %171 = vector.broadcast %cst_78 : f32 to vector<5x64xf32>
    %172 = arith.addf %171, %170 : vector<5x64xf32>
    %cst_79 = arith.constant 1.000000e+00 : f32
    %173 = vector.broadcast %cst_79 : f32 to vector<5x64xf32>
    %174 = arith.divf %173, %172 : vector<5x64xf32>
    %cst_80 = arith.constant 1.06140542 : f32
    %175 = vector.broadcast %cst_80 : f32 to vector<5x64xf32>
    %176 = arith.mulf %174, %175 : vector<5x64xf32>
    %cst_81 = arith.constant -1.45315206 : f32
    %177 = vector.broadcast %cst_81 : f32 to vector<5x64xf32>
    %178 = arith.addf %177, %176 : vector<5x64xf32>
    %179 = arith.mulf %174, %178 : vector<5x64xf32>
    %cst_82 = arith.constant 1.42141378 : f32
    %180 = vector.broadcast %cst_82 : f32 to vector<5x64xf32>
    %181 = arith.addf %180, %179 : vector<5x64xf32>
    %182 = arith.mulf %174, %181 : vector<5x64xf32>
    %cst_83 = arith.constant -0.284496725 : f32
    %183 = vector.broadcast %cst_83 : f32 to vector<5x64xf32>
    %184 = arith.addf %183, %182 : vector<5x64xf32>
    %185 = arith.mulf %174, %184 : vector<5x64xf32>
    %cst_84 = arith.constant 0.254829586 : f32
    %186 = vector.broadcast %cst_84 : f32 to vector<5x64xf32>
    %187 = arith.addf %186, %185 : vector<5x64xf32>
    %188 = arith.mulf %174, %187 : vector<5x64xf32>
    %cst_85 = arith.constant 0.000000e+00 : f32
    %189 = vector.broadcast %cst_85 : f32 to vector<5x64xf32>
    %190 = arith.subf %189, %168 : vector<5x64xf32>
    %191 = arith.mulf %190, %168 : vector<5x64xf32>
    %192 = math.exp %191 : vector<5x64xf32>
    %193 = arith.mulf %188, %192 : vector<5x64xf32>
    %cst_86 = arith.constant 1.000000e+00 : f32
    %194 = vector.broadcast %cst_86 : f32 to vector<5x64xf32>
    %195 = arith.subf %194, %193 : vector<5x64xf32>
    %196 = arith.mulf %167, %195 : vector<5x64xf32>
    %cst_87 = arith.constant 1.000000e+00 : f32
    %197 = vector.broadcast %cst_87 : f32 to vector<5x64xf32>
    %198 = arith.addf %197, %196 : vector<5x64xf32>
    %199 = arith.mulf %160, %198 : vector<5x64xf32>
    %c0_88 = arith.constant 0 : index
    %c0_89 = arith.constant 0 : index
    %c0_90 = arith.constant 0 : index
    %200 = vector.load %arg15[%c0_88, %c0_89, %c0_90] : memref<2x64x32xbf16, #tpu.memory_space<vmem>>, vector<1x64x32xbf16>
    %201 = vector.shape_cast %200 : vector<1x64x32xbf16> to vector<64x32xbf16>
    %c0_91 = arith.constant 0 : index
    %c0_92 = arith.constant 0 : index
    %c0_93 = arith.constant 0 : index
    %202 = vector.load %arg16[%c0_91, %c0_92, %c0_93] : memref<2x1x32xf32, #tpu.memory_space<vmem>>, vector<1x1x32xf32>
    %203 = vector.shape_cast %202 : vector<1x1x32xf32> to vector<1x32xf32>
    %204 = arith.truncf %199 : vector<5x64xf32> to vector<5x64xbf16>
    %cst_94 = arith.constant dense<0.000000e+00> : vector<5x32xf32>
    %205 = tpu.matmul %204, %201, %cst_94 {dimension_numbers = #tpu.dot_dimension_numbers<[1], [0], [0], [1], [0, 0, 1, 1], [], []>} : vector<5x64xbf16>, vector<64x32xbf16>, vector<5x32xf32> -> vector<5x32xf32>
    %206 = vector.broadcast %203 : vector<1x32xf32> to vector<5x32xf32>
    %207 = arith.addf %205, %206 : vector<5x32xf32>
    %208 = arith.addf %126, %207 : vector<5x32xf32>
    %c1 = arith.constant 1 : index
    %c0_95 = arith.constant 0 : index
    %c0_96 = arith.constant 0 : index
    %209 = vector.load %arg5[%c1, %c0_95, %c0_96] : memref<2x1x32xf32, #tpu.memory_space<vmem>>, vector<1x1x32xf32>
    %210 = vector.shape_cast %209 : vector<1x1x32xf32> to vector<1x32xf32>
    %c1_97 = arith.constant 1 : index
    %c0_98 = arith.constant 0 : index
    %c0_99 = arith.constant 0 : index
    %211 = vector.load %arg6[%c1_97, %c0_98, %c0_99] : memref<2x1x32xf32, #tpu.memory_space<vmem>>, vector<1x1x32xf32>
    %212 = vector.shape_cast %211 : vector<1x1x32xf32> to vector<1x32xf32>
    %cst_100 = arith.constant dense<0.000000e+00> : vector<5xf32>
    %213 = vector.multi_reduction <add>, %208, %cst_100 [1] : vector<5x32xf32> to vector<5xf32>
    %214 = vector.shape_cast %213 : vector<5xf32> to vector<5x1xf32>
    %cst_101 = arith.constant 3.200000e+01 : f32
    %215 = vector.broadcast %cst_101 : f32 to vector<5x1xf32>
    %216 = arith.divf %214, %215 : vector<5x1xf32>
    %217 = vector.broadcast %216 : vector<5x1xf32> to vector<5x32xf32>
    %218 = arith.subf %208, %217 : vector<5x32xf32>
    %219 = arith.mulf %218, %218 : vector<5x32xf32>
    %cst_102 = arith.constant dense<0.000000e+00> : vector<5xf32>
    %220 = vector.multi_reduction <add>, %219, %cst_102 [1] : vector<5x32xf32> to vector<5xf32>
    %221 = vector.shape_cast %220 : vector<5xf32> to vector<5x1xf32>
    %cst_103 = arith.constant 3.200000e+01 : f32
    %222 = vector.broadcast %cst_103 : f32 to vector<5x1xf32>
    %223 = arith.divf %221, %222 : vector<5x1xf32>
    %cst_104 = arith.constant 9.99999997E-7 : f32
    %224 = vector.broadcast %cst_104 : f32 to vector<5x1xf32>
    %225 = arith.addf %223, %224 : vector<5x1xf32>
    %226 = math.rsqrt %225 : vector<5x1xf32>
    %227 = vector.broadcast %226 : vector<5x1xf32> to vector<5x32xf32>
    %228 = arith.mulf %218, %227 : vector<5x32xf32>
    %229 = vector.broadcast %210 : vector<1x32xf32> to vector<5x32xf32>
    %230 = arith.mulf %228, %229 : vector<5x32xf32>
    %231 = vector.broadcast %212 : vector<1x32xf32> to vector<5x32xf32>
    %232 = arith.addf %230, %231 : vector<5x32xf32>
    %c1_105 = arith.constant 1 : index
    %c0_106 = arith.constant 0 : index
    %c0_107 = arith.constant 0 : index
    %233 = vector.load %arg7[%c1_105, %c0_106, %c0_107] : memref<2x32x96xbf16, #tpu.memory_space<vmem>>, vector<1x32x96xbf16>
    %234 = vector.shape_cast %233 : vector<1x32x96xbf16> to vector<32x96xbf16>
    %c1_108 = arith.constant 1 : index
    %c0_109 = arith.constant 0 : index
    %c0_110 = arith.constant 0 : index
    %235 = vector.load %arg8[%c1_108, %c0_109, %c0_110] : memref<2x1x96xf32, #tpu.memory_space<vmem>>, vector<1x1x96xf32>
    %236 = vector.shape_cast %235 : vector<1x1x96xf32> to vector<1x96xf32>
    %237 = arith.truncf %232 : vector<5x32xf32> to vector<5x32xbf16>
    %cst_111 = arith.constant dense<0.000000e+00> : vector<5x96xf32>
    %238 = tpu.matmul %237, %234, %cst_111 {dimension_numbers = #tpu.dot_dimension_numbers<[1], [0], [0], [1], [0, 0, 1, 1], [], []>} : vector<5x32xbf16>, vector<32x96xbf16>, vector<5x96xf32> -> vector<5x96xf32>
    %239 = vector.broadcast %236 : vector<1x96xf32> to vector<5x96xf32>
    %240 = arith.addf %238, %239 : vector<5x96xf32>
    %241 = arith.truncf %240 : vector<5x96xf32> to vector<5x96xbf16>
    %242 = vector.extract_strided_slice %241 {offsets = [0, 0], sizes = [5, 8], strides = [1, 1]} : vector<5x96xbf16> to vector<5x8xbf16>
    %243 = vector.extract_strided_slice %241 {offsets = [0, 32], sizes = [5, 8], strides = [1, 1]} : vector<5x96xbf16> to vector<5x8xbf16>
    %244 = vector.extract_strided_slice %241 {offsets = [0, 64], sizes = [5, 8], strides = [1, 1]} : vector<5x96xbf16> to vector<5x8xbf16>
    %cst_112 = arith.constant dense<0.000000e+00> : vector<5x5xf32>
    %245 = tpu.matmul %242, %243, %cst_112 {dimension_numbers = #tpu.dot_dimension_numbers<[1], [1], [0], [0], [0, 0, 1, 0], [], []>} : vector<5x8xbf16>, vector<5x8xbf16>, vector<5x5xf32> -> vector<5x5xf32>
    %cst_113 = arith.constant 0.353553385 : f32
    %246 = vector.broadcast %cst_113 : f32 to vector<5x5xf32>
    %247 = arith.mulf %245, %246 : vector<5x5xf32>
    %cst_114 = arith.constant dense<0xFF800000> : vector<5xf32>
    %248 = vector.multi_reduction <maximumf>, %247, %cst_114 [1] : vector<5x5xf32> to vector<5xf32>
    %249 = vector.shape_cast %248 : vector<5xf32> to vector<5x1xf32>
    %250 = vector.broadcast %249 : vector<5x1xf32> to vector<5x5xf32>
    %251 = arith.subf %247, %250 : vector<5x5xf32>
    %252 = math.exp %251 : vector<5x5xf32>
    %cst_115 = arith.constant dense<0.000000e+00> : vector<5xf32>
    %253 = vector.multi_reduction <add>, %252, %cst_115 [1] : vector<5x5xf32> to vector<5xf32>
    %254 = vector.shape_cast %253 : vector<5xf32> to vector<5x1xf32>
    %255 = tpu.reciprocal %254 {approx = true} : vector<5x1xf32> -> vector<5x1xf32>
    %256 = vector.broadcast %255 : vector<5x1xf32> to vector<5x5xf32>
    %257 = arith.mulf %252, %256 : vector<5x5xf32>
    %258 = arith.truncf %257 : vector<5x5xf32> to vector<5x5xbf16>
    %cst_116 = arith.constant dense<0.000000e+00> : vector<5x8xf32>
    %259 = tpu.matmul %258, %244, %cst_116 {dimension_numbers = #tpu.dot_dimension_numbers<[1], [0], [0], [1], [0, 0, 1, 1], [], []>} : vector<5x5xbf16>, vector<5x8xbf16>, vector<5x8xf32> -> vector<5x8xf32>
    %260 = vector.extract_strided_slice %241 {offsets = [0, 8], sizes = [5, 8], strides = [1, 1]} : vector<5x96xbf16> to vector<5x8xbf16>
    %261 = vector.extract_strided_slice %241 {offsets = [0, 40], sizes = [5, 8], strides = [1, 1]} : vector<5x96xbf16> to vector<5x8xbf16>
    %262 = vector.extract_strided_slice %241 {offsets = [0, 72], sizes = [5, 8], strides = [1, 1]} : vector<5x96xbf16> to vector<5x8xbf16>
    %cst_117 = arith.constant dense<0.000000e+00> : vector<5x5xf32>
    %263 = tpu.matmul %260, %261, %cst_117 {dimension_numbers = #tpu.dot_dimension_numbers<[1], [1], [0], [0], [0, 0, 1, 0], [], []>} : vector<5x8xbf16>, vector<5x8xbf16>, vector<5x5xf32> -> vector<5x5xf32>
    %cst_118 = arith.constant 0.353553385 : f32
    %264 = vector.broadcast %cst_118 : f32 to vector<5x5xf32>
    %265 = arith.mulf %263, %264 : vector<5x5xf32>
    %cst_119 = arith.constant dense<0xFF800000> : vector<5xf32>
    %266 = vector.multi_reduction <maximumf>, %265, %cst_119 [1] : vector<5x5xf32> to vector<5xf32>
    %267 = vector.shape_cast %266 : vector<5xf32> to vector<5x1xf32>
    %268 = vector.broadcast %267 : vector<5x1xf32> to vector<5x5xf32>
    %269 = arith.subf %265, %268 : vector<5x5xf32>
    %270 = math.exp %269 : vector<5x5xf32>
    %cst_120 = arith.constant dense<0.000000e+00> : vector<5xf32>
    %271 = vector.multi_reduction <add>, %270, %cst_120 [1] : vector<5x5xf32> to vector<5xf32>
    %272 = vector.shape_cast %271 : vector<5xf32> to vector<5x1xf32>
    %273 = tpu.reciprocal %272 {approx = true} : vector<5x1xf32> -> vector<5x1xf32>
    %274 = vector.broadcast %273 : vector<5x1xf32> to vector<5x5xf32>
    %275 = arith.mulf %270, %274 : vector<5x5xf32>
    %276 = arith.truncf %275 : vector<5x5xf32> to vector<5x5xbf16>
    %cst_121 = arith.constant dense<0.000000e+00> : vector<5x8xf32>
    %277 = tpu.matmul %276, %262, %cst_121 {dimension_numbers = #tpu.dot_dimension_numbers<[1], [0], [0], [1], [0, 0, 1, 1], [], []>} : vector<5x5xbf16>, vector<5x8xbf16>, vector<5x8xf32> -> vector<5x8xf32>
    %278 = vector.extract_strided_slice %241 {offsets = [0, 16], sizes = [5, 8], strides = [1, 1]} : vector<5x96xbf16> to vector<5x8xbf16>
    %279 = vector.extract_strided_slice %241 {offsets = [0, 48], sizes = [5, 8], strides = [1, 1]} : vector<5x96xbf16> to vector<5x8xbf16>
    %280 = vector.extract_strided_slice %241 {offsets = [0, 80], sizes = [5, 8], strides = [1, 1]} : vector<5x96xbf16> to vector<5x8xbf16>
    %cst_122 = arith.constant dense<0.000000e+00> : vector<5x5xf32>
    %281 = tpu.matmul %278, %279, %cst_122 {dimension_numbers = #tpu.dot_dimension_numbers<[1], [1], [0], [0], [0, 0, 1, 0], [], []>} : vector<5x8xbf16>, vector<5x8xbf16>, vector<5x5xf32> -> vector<5x5xf32>
    %cst_123 = arith.constant 0.353553385 : f32
    %282 = vector.broadcast %cst_123 : f32 to vector<5x5xf32>
    %283 = arith.mulf %281, %282 : vector<5x5xf32>
    %cst_124 = arith.constant dense<0xFF800000> : vector<5xf32>
    %284 = vector.multi_reduction <maximumf>, %283, %cst_124 [1] : vector<5x5xf32> to vector<5xf32>
    %285 = vector.shape_cast %284 : vector<5xf32> to vector<5x1xf32>
    %286 = vector.broadcast %285 : vector<5x1xf32> to vector<5x5xf32>
    %287 = arith.subf %283, %286 : vector<5x5xf32>
    %288 = math.exp %287 : vector<5x5xf32>
    %cst_125 = arith.constant dense<0.000000e+00> : vector<5xf32>
    %289 = vector.multi_reduction <add>, %288, %cst_125 [1] : vector<5x5xf32> to vector<5xf32>
    %290 = vector.shape_cast %289 : vector<5xf32> to vector<5x1xf32>
    %291 = tpu.reciprocal %290 {approx = true} : vector<5x1xf32> -> vector<5x1xf32>
    %292 = vector.broadcast %291 : vector<5x1xf32> to vector<5x5xf32>
    %293 = arith.mulf %288, %292 : vector<5x5xf32>
    %294 = arith.truncf %293 : vector<5x5xf32> to vector<5x5xbf16>
    %cst_126 = arith.constant dense<0.000000e+00> : vector<5x8xf32>
    %295 = tpu.matmul %294, %280, %cst_126 {dimension_numbers = #tpu.dot_dimension_numbers<[1], [0], [0], [1], [0, 0, 1, 1], [], []>} : vector<5x5xbf16>, vector<5x8xbf16>, vector<5x8xf32> -> vector<5x8xf32>
    %296 = vector.extract_strided_slice %241 {offsets = [0, 24], sizes = [5, 8], strides = [1, 1]} : vector<5x96xbf16> to vector<5x8xbf16>
    %297 = vector.extract_strided_slice %241 {offsets = [0, 56], sizes = [5, 8], strides = [1, 1]} : vector<5x96xbf16> to vector<5x8xbf16>
    %298 = vector.extract_strided_slice %241 {offsets = [0, 88], sizes = [5, 8], strides = [1, 1]} : vector<5x96xbf16> to vector<5x8xbf16>
    %cst_127 = arith.constant dense<0.000000e+00> : vector<5x5xf32>
    %299 = tpu.matmul %296, %297, %cst_127 {dimension_numbers = #tpu.dot_dimension_numbers<[1], [1], [0], [0], [0, 0, 1, 0], [], []>} : vector<5x8xbf16>, vector<5x8xbf16>, vector<5x5xf32> -> vector<5x5xf32>
    %cst_128 = arith.constant 0.353553385 : f32
    %300 = vector.broadcast %cst_128 : f32 to vector<5x5xf32>
    %301 = arith.mulf %299, %300 : vector<5x5xf32>
    %cst_129 = arith.constant dense<0xFF800000> : vector<5xf32>
    %302 = vector.multi_reduction <maximumf>, %301, %cst_129 [1] : vector<5x5xf32> to vector<5xf32>
    %303 = vector.shape_cast %302 : vector<5xf32> to vector<5x1xf32>
    %304 = vector.broadcast %303 : vector<5x1xf32> to vector<5x5xf32>
    %305 = arith.subf %301, %304 : vector<5x5xf32>
    %306 = math.exp %305 : vector<5x5xf32>
    %cst_130 = arith.constant dense<0.000000e+00> : vector<5xf32>
    %307 = vector.multi_reduction <add>, %306, %cst_130 [1] : vector<5x5xf32> to vector<5xf32>
    %308 = vector.shape_cast %307 : vector<5xf32> to vector<5x1xf32>
    %309 = tpu.reciprocal %308 {approx = true} : vector<5x1xf32> -> vector<5x1xf32>
    %310 = vector.broadcast %309 : vector<5x1xf32> to vector<5x5xf32>
    %311 = arith.mulf %306, %310 : vector<5x5xf32>
    %312 = arith.truncf %311 : vector<5x5xf32> to vector<5x5xbf16>
    %cst_131 = arith.constant dense<0.000000e+00> : vector<5x8xf32>
    %313 = tpu.matmul %312, %298, %cst_131 {dimension_numbers = #tpu.dot_dimension_numbers<[1], [0], [0], [1], [0, 0, 1, 1], [], []>} : vector<5x5xbf16>, vector<5x8xbf16>, vector<5x8xf32> -> vector<5x8xf32>
    %314 = tpu.concatenate %259, %277, %295, %313 in 1 : vector<5x8xf32>, vector<5x8xf32>, vector<5x8xf32>, vector<5x8xf32> -> vector<5x32xf32>
    %c1_132 = arith.constant 1 : index
    %c0_133 = arith.constant 0 : index
    %c0_134 = arith.constant 0 : index
    %315 = vector.load %arg9[%c1_132, %c0_133, %c0_134] : memref<2x32x32xbf16, #tpu.memory_space<vmem>>, vector<1x32x32xbf16>
    %316 = vector.shape_cast %315 : vector<1x32x32xbf16> to vector<32x32xbf16>
    %c1_135 = arith.constant 1 : index
    %c0_136 = arith.constant 0 : index
    %c0_137 = arith.constant 0 : index
    %317 = vector.load %arg10[%c1_135, %c0_136, %c0_137] : memref<2x1x32xf32, #tpu.memory_space<vmem>>, vector<1x1x32xf32>
    %318 = vector.shape_cast %317 : vector<1x1x32xf32> to vector<1x32xf32>
    %319 = arith.truncf %314 : vector<5x32xf32> to vector<5x32xbf16>
    %cst_138 = arith.constant dense<0.000000e+00> : vector<5x32xf32>
    %320 = tpu.matmul %319, %316, %cst_138 {dimension_numbers = #tpu.dot_dimension_numbers<[1], [0], [0], [1], [0, 0, 1, 1], [], []>} : vector<5x32xbf16>, vector<32x32xbf16>, vector<5x32xf32> -> vector<5x32xf32>
    %321 = vector.broadcast %318 : vector<1x32xf32> to vector<5x32xf32>
    %322 = arith.addf %320, %321 : vector<5x32xf32>
    %323 = arith.addf %208, %322 : vector<5x32xf32>
    %c1_139 = arith.constant 1 : index
    %c0_140 = arith.constant 0 : index
    %c0_141 = arith.constant 0 : index
    %324 = vector.load %arg11[%c1_139, %c0_140, %c0_141] : memref<2x1x32xf32, #tpu.memory_space<vmem>>, vector<1x1x32xf32>
    %325 = vector.shape_cast %324 : vector<1x1x32xf32> to vector<1x32xf32>
    %c1_142 = arith.constant 1 : index
    %c0_143 = arith.constant 0 : index
    %c0_144 = arith.constant 0 : index
    %326 = vector.load %arg12[%c1_142, %c0_143, %c0_144] : memref<2x1x32xf32, #tpu.memory_space<vmem>>, vector<1x1x32xf32>
    %327 = vector.shape_cast %326 : vector<1x1x32xf32> to vector<1x32xf32>
    %cst_145 = arith.constant dense<0.000000e+00> : vector<5xf32>
    %328 = vector.multi_reduction <add>, %323, %cst_145 [1] : vector<5x32xf32> to vector<5xf32>
    %329 = vector.shape_cast %328 : vector<5xf32> to vector<5x1xf32>
    %cst_146 = arith.constant 3.200000e+01 : f32
    %330 = vector.broadcast %cst_146 : f32 to vector<5x1xf32>
    %331 = arith.divf %329, %330 : vector<5x1xf32>
    %332 = vector.broadcast %331 : vector<5x1xf32> to vector<5x32xf32>
    %333 = arith.subf %323, %332 : vector<5x32xf32>
    %334 = arith.mulf %333, %333 : vector<5x32xf32>
    %cst_147 = arith.constant dense<0.000000e+00> : vector<5xf32>
    %335 = vector.multi_reduction <add>, %334, %cst_147 [1] : vector<5x32xf32> to vector<5xf32>
    %336 = vector.shape_cast %335 : vector<5xf32> to vector<5x1xf32>
    %cst_148 = arith.constant 3.200000e+01 : f32
    %337 = vector.broadcast %cst_148 : f32 to vector<5x1xf32>
    %338 = arith.divf %336, %337 : vector<5x1xf32>
    %cst_149 = arith.constant 9.99999997E-7 : f32
    %339 = vector.broadcast %cst_149 : f32 to vector<5x1xf32>
    %340 = arith.addf %338, %339 : vector<5x1xf32>
    %341 = math.rsqrt %340 : vector<5x1xf32>
    %342 = vector.broadcast %341 : vector<5x1xf32> to vector<5x32xf32>
    %343 = arith.mulf %333, %342 : vector<5x32xf32>
    %344 = vector.broadcast %325 : vector<1x32xf32> to vector<5x32xf32>
    %345 = arith.mulf %343, %344 : vector<5x32xf32>
    %346 = vector.broadcast %327 : vector<1x32xf32> to vector<5x32xf32>
    %347 = arith.addf %345, %346 : vector<5x32xf32>
    %c1_150 = arith.constant 1 : index
    %c0_151 = arith.constant 0 : index
    %c0_152 = arith.constant 0 : index
    %348 = vector.load %arg13[%c1_150, %c0_151, %c0_152] : memref<2x32x64xbf16, #tpu.memory_space<vmem>>, vector<1x32x64xbf16>
    %349 = vector.shape_cast %348 : vector<1x32x64xbf16> to vector<32x64xbf16>
    %c1_153 = arith.constant 1 : index
    %c0_154 = arith.constant 0 : index
    %c0_155 = arith.constant 0 : index
    %350 = vector.load %arg14[%c1_153, %c0_154, %c0_155] : memref<2x1x64xf32, #tpu.memory_space<vmem>>, vector<1x1x64xf32>
    %351 = vector.shape_cast %350 : vector<1x1x64xf32> to vector<1x64xf32>
    %352 = arith.truncf %347 : vector<5x32xf32> to vector<5x32xbf16>
    %cst_156 = arith.constant dense<0.000000e+00> : vector<5x64xf32>
    %353 = tpu.matmul %352, %349, %cst_156 {dimension_numbers = #tpu.dot_dimension_numbers<[1], [0], [0], [1], [0, 0, 1, 1], [], []>} : vector<5x32xbf16>, vector<32x64xbf16>, vector<5x64xf32> -> vector<5x64xf32>
    %354 = vector.broadcast %351 : vector<1x64xf32> to vector<5x64xf32>
    %355 = arith.addf %353, %354 : vector<5x64xf32>
    %cst_157 = arith.constant 5.000000e-01 : f32
    %356 = vector.broadcast %cst_157 : f32 to vector<5x64xf32>
    %357 = arith.mulf %356, %355 : vector<5x64xf32>
    %cst_158 = arith.constant 0.707106769 : f32
    %358 = vector.broadcast %cst_158 : f32 to vector<5x64xf32>
    %359 = arith.mulf %355, %358 : vector<5x64xf32>
    %cst_159 = arith.constant 0.000000e+00 : f32
    %360 = vector.broadcast %cst_159 : f32 to vector<5x64xf32>
    %361 = arith.cmpf oge, %359, %360 : vector<5x64xf32>
    %cst_160 = arith.constant 1.000000e+00 : f32
    %cst_161 = arith.constant -1.000000e+00 : f32
    %362 = vector.broadcast %cst_160 : f32 to vector<5x64xf32>
    %363 = vector.broadcast %cst_161 : f32 to vector<5x64xf32>
    %364 = arith.select %361, %362, %363 : vector<5x64xi1>, vector<5x64xf32>
    %365 = math.absf %359 : vector<5x64xf32>
    %cst_162 = arith.constant 0.327591091 : f32
    %366 = vector.broadcast %cst_162 : f32 to vector<5x64xf32>
    %367 = arith.mulf %366, %365 : vector<5x64xf32>
    %cst_163 = arith.constant 1.000000e+00 : f32
    %368 = vector.broadcast %cst_163 : f32 to vector<5x64xf32>
    %369 = arith.addf %368, %367 : vector<5x64xf32>
    %cst_164 = arith.constant 1.000000e+00 : f32
    %370 = vector.broadcast %cst_164 : f32 to vector<5x64xf32>
    %371 = arith.divf %370, %369 : vector<5x64xf32>
    %cst_165 = arith.constant 1.06140542 : f32
    %372 = vector.broadcast %cst_165 : f32 to vector<5x64xf32>
    %373 = arith.mulf %371, %372 : vector<5x64xf32>
    %cst_166 = arith.constant -1.45315206 : f32
    %374 = vector.broadcast %cst_166 : f32 to vector<5x64xf32>
    %375 = arith.addf %374, %373 : vector<5x64xf32>
    %376 = arith.mulf %371, %375 : vector<5x64xf32>
    %cst_167 = arith.constant 1.42141378 : f32
    %377 = vector.broadcast %cst_167 : f32 to vector<5x64xf32>
    %378 = arith.addf %377, %376 : vector<5x64xf32>
    %379 = arith.mulf %371, %378 : vector<5x64xf32>
    %cst_168 = arith.constant -0.284496725 : f32
    %380 = vector.broadcast %cst_168 : f32 to vector<5x64xf32>
    %381 = arith.addf %380, %379 : vector<5x64xf32>
    %382 = arith.mulf %371, %381 : vector<5x64xf32>
    %cst_169 = arith.constant 0.254829586 : f32
    %383 = vector.broadcast %cst_169 : f32 to vector<5x64xf32>
    %384 = arith.addf %383, %382 : vector<5x64xf32>
    %385 = arith.mulf %371, %384 : vector<5x64xf32>
    %cst_170 = arith.constant 0.000000e+00 : f32
    %386 = vector.broadcast %cst_170 : f32 to vector<5x64xf32>
    %387 = arith.subf %386, %365 : vector<5x64xf32>
    %388 = arith.mulf %387, %365 : vector<5x64xf32>
    %389 = math.exp %388 : vector<5x64xf32>
    %390 = arith.mulf %385, %389 : vector<5x64xf32>
    %cst_171 = arith.constant 1.000000e+00 : f32
    %391 = vector.broadcast %cst_171 : f32 to vector<5x64xf32>
    %392 = arith.subf %391, %390 : vector<5x64xf32>
    %393 = arith.mulf %364, %392 : vector<5x64xf32>
    %cst_172 = arith.constant 1.000000e+00 : f32
    %394 = vector.broadcast %cst_172 : f32 to vector<5x64xf32>
    %395 = arith.addf %394, %393 : vector<5x64xf32>
    %396 = arith.mulf %357, %395 : vector<5x64xf32>
    %c1_173 = arith.constant 1 : index
    %c0_174 = arith.constant 0 : index
    %c0_175 = arith.constant 0 : index
    %397 = vector.load %arg15[%c1_173, %c0_174, %c0_175] : memref<2x64x32xbf16, #tpu.memory_space<vmem>>, vector<1x64x32xbf16>
    %398 = vector.shape_cast %397 : vector<1x64x32xbf16> to vector<64x32xbf16>
    %c1_176 = arith.constant 1 : index
    %c0_177 = arith.constant 0 : index
    %c0_178 = arith.constant 0 : index
    %399 = vector.load %arg16[%c1_176, %c0_177, %c0_178] : memref<2x1x32xf32, #tpu.memory_space<vmem>>, vector<1x1x32xf32>
    %400 = vector.shape_cast %399 : vector<1x1x32xf32> to vector<1x32xf32>
    %401 = arith.truncf %396 : vector<5x64xf32> to vector<5x64xbf16>
    %cst_179 = arith.constant dense<0.000000e+00> : vector<5x32xf32>
    %402 = tpu.matmul %401, %398, %cst_179 {dimension_numbers = #tpu.dot_dimension_numbers<[1], [0], [0], [1], [0, 0, 1, 1], [], []>} : vector<5x64xbf16>, vector<64x32xbf16>, vector<5x32xf32> -> vector<5x32xf32>
    %403 = vector.broadcast %400 : vector<1x32xf32> to vector<5x32xf32>
    %404 = arith.addf %402, %403 : vector<5x32xf32>
    %405 = arith.addf %323, %404 : vector<5x32xf32>
    %406 = vector.extract_strided_slice %405 {offsets = [0, 0], sizes = [1, 32], strides = [1, 1]} : vector<5x32xf32> to vector<1x32xf32>
    %c0_180 = arith.constant 0 : index
    %c0_181 = arith.constant 0 : index
    %407 = vector.load %arg17[%c0_180, %c0_181] : memref<1x32xf32, #tpu.memory_space<vmem>>, vector<1x32xf32>
    %c0_182 = arith.constant 0 : index
    %c0_183 = arith.constant 0 : index
    %408 = vector.load %arg18[%c0_182, %c0_183] : memref<1x32xf32, #tpu.memory_space<vmem>>, vector<1x32xf32>
    %cst_184 = arith.constant dense<0.000000e+00> : vector<1xf32>
    %409 = vector.multi_reduction <add>, %406, %cst_184 [1] : vector<1x32xf32> to vector<1xf32>
    %410 = vector.shape_cast %409 : vector<1xf32> to vector<1x1xf32>
    %cst_185 = arith.constant 3.200000e+01 : f32
    %411 = vector.broadcast %cst_185 : f32 to vector<1x1xf32>
    %412 = arith.divf %410, %411 : vector<1x1xf32>
    %413 = vector.broadcast %412 : vector<1x1xf32> to vector<1x32xf32>
    %414 = arith.subf %406, %413 : vector<1x32xf32>
    %415 = arith.mulf %414, %414 : vector<1x32xf32>
    %cst_186 = arith.constant dense<0.000000e+00> : vector<1xf32>
    %416 = vector.multi_reduction <add>, %415, %cst_186 [1] : vector<1x32xf32> to vector<1xf32>
    %417 = vector.shape_cast %416 : vector<1xf32> to vector<1x1xf32>
    %cst_187 = arith.constant 3.200000e+01 : f32
    %418 = vector.broadcast %cst_187 : f32 to vector<1x1xf32>
    %419 = arith.divf %417, %418 : vector<1x1xf32>
    %cst_188 = arith.constant 9.99999997E-7 : f32
    %420 = vector.broadcast %cst_188 : f32 to vector<1x1xf32>
    %421 = arith.addf %419, %420 : vector<1x1xf32>
    %422 = math.rsqrt %421 : vector<1x1xf32>
    %423 = vector.broadcast %422 : vector<1x1xf32> to vector<1x32xf32>
    %424 = arith.mulf %414, %423 : vector<1x32xf32>
    %425 = arith.mulf %424, %407 : vector<1x32xf32>
    %426 = arith.addf %425, %408 : vector<1x32xf32>
    %c0_189 = arith.constant 0 : index
    %c0_190 = arith.constant 0 : index
    %427 = vector.load %arg19[%c0_189, %c0_190] : memref<32x1024xbf16, #tpu.memory_space<vmem>>, vector<32x1024xbf16>
    %c0_191 = arith.constant 0 : index
    %c0_192 = arith.constant 0 : index
    %428 = vector.load %arg20[%c0_191, %c0_192] : memref<1x1024xf32, #tpu.memory_space<vmem>>, vector<1x1024xf32>
    %429 = arith.truncf %426 : vector<1x32xf32> to vector<1x32xbf16>
    %cst_193 = arith.constant dense<0.000000e+00> : vector<1x1024xf32>
    %430 = tpu.matmul %429, %427, %cst_193 {dimension_numbers = #tpu.dot_dimension_numbers<[1], [0], [0], [1], [0, 0, 1, 1], [], []>} : vector<1x32xbf16>, vector<32x1024xbf16>, vector<1x1024xf32> -> vector<1x1024xf32>
    %431 = arith.addf %430, %428 : vector<1x1024xf32>
    %c0_194 = arith.constant 0 : index
    %c0_195 = arith.constant 0 : index
    %c0_196 = arith.constant 0 : index
    %432 = vector.load %arg23[%c0_194, %c0_195, %c0_196] : memref<1x1x1024xf32, #tpu.memory_space<vmem>>, vector<1x1x1024xf32>
    %433 = vector.shape_cast %432 : vector<1x1x1024xf32> to vector<1x1024xf32>
    %434 = vector.shape_cast %431 : vector<1x1024xf32> to vector<1x1x1024xf32>
    tpu.vector_store %arg23[%c0_194, %c0_195, %c0_196], %434 {strides = array<i32>} : memref<1x1x1024xf32, #tpu.memory_space<vmem>>, vector<1x1x1024xf32>,
    %c0_197 = arith.constant 0 : index
    %c0_198 = arith.constant 0 : index
    %435 = vector.load %arg21[%c0_197, %c0_198] : memref<1024x128xbf16, #tpu.memory_space<vmem>>, vector<1024x128xbf16>
    %c0_199 = arith.constant 0 : index
    %c0_200 = arith.constant 0 : index
    %436 = vector.load %arg22[%c0_199, %c0_200] : memref<1x128xf32, #tpu.memory_space<vmem>>, vector<1x128xf32>
    %437 = arith.truncf %431 : vector<1x1024xf32> to vector<1x1024xbf16>
    %cst_201 = arith.constant dense<0.000000e+00> : vector<1x128xf32>
    %438 = tpu.matmul %437, %435, %cst_201 {dimension_numbers = #tpu.dot_dimension_numbers<[1], [0], [0], [1], [0, 0, 1, 1], [], []>} : vector<1x1024xbf16>, vector<1024x128xbf16>, vector<1x128xf32> -> vector<1x128xf32>
    %439 = arith.addf %438, %436 : vector<1x128xf32>
    %c0_202 = arith.constant 0 : index
    %c0_203 = arith.constant 0 : index
    %c0_204 = arith.constant 0 : index
    %440 = vector.load %arg24[%c0_202, %c0_203, %c0_204] : memref<1x1x128xf32, #tpu.memory_space<vmem>>, vector<1x1x128xf32>
    %441 = vector.shape_cast %440 : vector<1x1x128xf32> to vector<1x128xf32>
    %442 = vector.shape_cast %439 : vector<1x128xf32> to vector<1x1x128xf32>
    tpu.vector_store %arg24[%c0_202, %c0_203, %c0_204], %442 {strides = array<i32>} : memref<1x1x128xf32, #tpu.memory_space<vmem>>, vector<1x1x128xf32>,
    return
  }
  func.func @transform_0(%arg0: i32) -> (i32, i32, i32) {
    %c0_i32 = arith.constant 0 : i32
    %c0_i32_0 = arith.constant 0 : i32
    %c0_i32_1 = arith.constant 0 : i32
    return %arg0, %c0_i32, %c0_i32_0 : i32, i32, i32
  }
  func.func @transform_1(%arg0: i32) -> (i32, i32) {
    %c0_i32 = arith.constant 0 : i32
    %c0_i32_0 = arith.constant 0 : i32
    %c0_i32_1 = arith.constant 0 : i32
    return %c0_i32, %c0_i32_0 : i32, i32
  }
  func.func @transform_2(%arg0: i32) -> (i32, i32) {
    %c0_i32 = arith.constant 0 : i32
    %c0_i32_0 = arith.constant 0 : i32
    %c0_i32_1 = arith.constant 0 : i32
    return %c0_i32, %c0_i32_0 : i32, i32
  }
  func.func @transform_3(%arg0: i32) -> (i32, i32) {
    %c0_i32 = arith.constant 0 : i32
    %c0_i32_0 = arith.constant 0 : i32
    %c0_i32_1 = arith.constant 0 : i32
    return %c0_i32, %c0_i32_0 : i32, i32
  }
  func.func @transform_4(%arg0: i32) -> (i32, i32, i32) {
    %c0_i32 = arith.constant 0 : i32
    %c0_i32_0 = arith.constant 0 : i32
    %c0_i32_1 = arith.constant 0 : i32
    %c0_i32_2 = arith.constant 0 : i32
    return %c0_i32, %c0_i32_0, %c0_i32_1 : i32, i32, i32
  }
  func.func @transform_5(%arg0: i32) -> (i32, i32, i32) {
    %c0_i32 = arith.constant 0 : i32
    %c0_i32_0 = arith.constant 0 : i32
    %c0_i32_1 = arith.constant 0 : i32
    %c0_i32_2 = arith.constant 0 : i32
    return %c0_i32, %c0_i32_0, %c0_i32_1 : i32, i32, i32
  }
  func.func @transform_6(%arg0: i32) -> (i32, i32, i32) {
    %c0_i32 = arith.constant 0 : i32
    %c0_i32_0 = arith.constant 0 : i32
    %c0_i32_1 = arith.constant 0 : i32
    %c0_i32_2 = arith.constant 0 : i32
    return %c0_i32, %c0_i32_0, %c0_i32_1 : i32, i32, i32
  }
  func.func @transform_7(%arg0: i32) -> (i32, i32, i32) {
    %c0_i32 = arith.constant 0 : i32
    %c0_i32_0 = arith.constant 0 : i32
    %c0_i32_1 = arith.constant 0 : i32
    %c0_i32_2 = arith.constant 0 : i32
    return %c0_i32, %c0_i32_0, %c0_i32_1 : i32, i32, i32
  }
  func.func @transform_8(%arg0: i32) -> (i32, i32, i32) {
    %c0_i32 = arith.constant 0 : i32
    %c0_i32_0 = arith.constant 0 : i32
    %c0_i32_1 = arith.constant 0 : i32
    %c0_i32_2 = arith.constant 0 : i32
    return %c0_i32, %c0_i32_0, %c0_i32_1 : i32, i32, i32
  }
  func.func @transform_9(%arg0: i32) -> (i32, i32, i32) {
    %c0_i32 = arith.constant 0 : i32
    %c0_i32_0 = arith.constant 0 : i32
    %c0_i32_1 = arith.constant 0 : i32
    %c0_i32_2 = arith.constant 0 : i32
    return %c0_i32, %c0_i32_0, %c0_i32_1 : i32, i32, i32
  }
  func.func @transform_10(%arg0: i32) -> (i32, i32, i32) {
    %c0_i32 = arith.constant 0 : i32
    %c0_i32_0 = arith.constant 0 : i32
    %c0_i32_1 = arith.constant 0 : i32
    %c0_i32_2 = arith.constant 0 : i32
    return %c0_i32, %c0_i32_0, %c0_i32_1 : i32, i32, i32
  }
  func.func @transform_11(%arg0: i32) -> (i32, i32, i32) {
    %c0_i32 = arith.constant 0 : i32
    %c0_i32_0 = arith.constant 0 : i32
    %c0_i32_1 = arith.constant 0 : i32
    %c0_i32_2 = arith.constant 0 : i32
    return %c0_i32, %c0_i32_0, %c0_i32_1 : i32, i32, i32
  }
  func.func @transform_12(%arg0: i32) -> (i32, i32, i32) {
    %c0_i32 = arith.constant 0 : i32
    %c0_i32_0 = arith.constant 0 : i32
    %c0_i32_1 = arith.constant 0 : i32
    %c0_i32_2 = arith.constant 0 : i32
    return %c0_i32, %c0_i32_0, %c0_i32_1 : i32, i32, i32
  }
  func.func @transform_13(%arg0: i32) -> (i32, i32, i32) {
    %c0_i32 = arith.constant 0 : i32
    %c0_i32_0 = arith.constant 0 : i32
    %c0_i32_1 = arith.constant 0 : i32
    %c0_i32_2 = arith.constant 0 : i32
    return %c0_i32, %c0_i32_0, %c0_i32_1 : i32, i32, i32
  }
  func.func @transform_14(%arg0: i32) -> (i32, i32, i32) {
    %c0_i32 = arith.constant 0 : i32
    %c0_i32_0 = arith.constant 0 : i32
    %c0_i32_1 = arith.constant 0 : i32
    %c0_i32_2 = arith.constant 0 : i32
    return %c0_i32, %c0_i32_0, %c0_i32_1 : i32, i32, i32
  }
  func.func @transform_15(%arg0: i32) -> (i32, i32, i32) {
    %c0_i32 = arith.constant 0 : i32
    %c0_i32_0 = arith.constant 0 : i32
    %c0_i32_1 = arith.constant 0 : i32
    %c0_i32_2 = arith.constant 0 : i32
    return %c0_i32, %c0_i32_0, %c0_i32_1 : i32, i32, i32
  }
  func.func @transform_16(%arg0: i32) -> (i32, i32) {
    %c0_i32 = arith.constant 0 : i32
    %c0_i32_0 = arith.constant 0 : i32
    %c0_i32_1 = arith.constant 0 : i32
    return %c0_i32, %c0_i32_0 : i32, i32
  }
  func.func @transform_17(%arg0: i32) -> (i32, i32) {
    %c0_i32 = arith.constant 0 : i32
    %c0_i32_0 = arith.constant 0 : i32
    %c0_i32_1 = arith.constant 0 : i32
    return %c0_i32, %c0_i32_0 : i32, i32
  }
  func.func @transform_18(%arg0: i32) -> (i32, i32) {
    %c0_i32 = arith.constant 0 : i32
    %c0_i32_0 = arith.constant 0 : i32
    %c0_i32_1 = arith.constant 0 : i32
    return %c0_i32, %c0_i32_0 : i32, i32
  }
  func.func @transform_19(%arg0: i32) -> (i32, i32) {
    %c0_i32 = arith.constant 0 : i32
    %c0_i32_0 = arith.constant 0 : i32
    %c0_i32_1 = arith.constant 0 : i32
    return %c0_i32, %c0_i32_0 : i32, i32
  }
  func.func @transform_20(%arg0: i32) -> (i32, i32) {
    %c0_i32 = arith.constant 0 : i32
    %c0_i32_0 = arith.constant 0 : i32
    %c0_i32_1 = arith.constant 0 : i32
    return %c0_i32, %c0_i32_0 : i32, i32
  }
  func.func @transform_21(%arg0: i32) -> (i32, i32) {
    %c0_i32 = arith.constant 0 : i32
    %c0_i32_0 = arith.constant 0 : i32
    %c0_i32_1 = arith.constant 0 : i32
    return %c0_i32, %c0_i32_0 : i32, i32
  }
  func.func @transform_22(%arg0: i32) -> (i32, i32, i32) {
    %c0_i32 = arith.constant 0 : i32
    %c0_i32_0 = arith.constant 0 : i32
    %c0_i32_1 = arith.constant 0 : i32
    return %arg0, %c0_i32, %c0_i32_0 : i32, i32, i32
  }
  func.func @transform_23(%arg0: i32) -> (i32, i32, i32) {
    %c0_i32 = arith.constant 0 : i32
    %c0_i32_0 = arith.constant 0 : i32
    %c0_i32_1 = arith.constant 0 : i32
    return %arg0, %c0_i32, %c0_i32_0 : i32, i32, i32
  }
}

</mosaic_0001>

<llo_original>
// kernel: streetviewnet_forward.1
$region0: #{streetviewnet_forward.1}
  #allocation0 [shape = 'u32[]', space=smem, size = 0x4, offset = 0x4, fixed_abs, tag = 'smem constant byte address 0x4 - core index']
  #allocation1 [shape = 'u32[144,128]{1,0:T(1,128)}', space=vmem, size = 0x12000, scoped, tag = 'internal scratch']
  %s0 = inlined_call_operand.vmem [shape: f32[2,4,192], index: 0, kind: input, shape index: {}]
  %s1 = inlined_call_operand.vmem [shape: bf16[192,32], index: 1, kind: input, shape index: {}]
  %s2 = inlined_call_operand.vmem [shape: f32[1,32], index: 2, kind: input, shape index: {}]
  %s3 = inlined_call_operand.vmem [shape: f32[5,32], index: 3, kind: input, shape index: {}]
  %s4 = inlined_call_operand.vmem [shape: f32[2,1,32], index: 4, kind: input, shape index: {}]
  %s5 = inlined_call_operand.vmem [shape: f32[2,1,32], index: 5, kind: input, shape index: {}]
  %s6 = inlined_call_operand.vmem [shape: bf16[2,32,96], index: 6, kind: input, shape index: {}]
  %s7 = inlined_call_operand.vmem [shape: f32[2,1,96], index: 7, kind: input, shape index: {}]
  %s8 = inlined_call_operand.vmem [shape: bf16[2,32,32], index: 8, kind: input, shape index: {}]
  %s9 = inlined_call_operand.vmem [shape: f32[2,1,32], index: 9, kind: input, shape index: {}]
  %s10 = inlined_call_operand.vmem [shape: f32[2,1,32], index: 10, kind: input, shape index: {}]
  %s11 = inlined_call_operand.vmem [shape: f32[2,1,32], index: 11, kind: input, shape index: {}]
  %s12 = inlined_call_operand.vmem [shape: bf16[2,32,64], index: 12, kind: input, shape index: {}]
  %s13 = inlined_call_operand.vmem [shape: f32[2,1,64], index: 13, kind: input, shape index: {}]
  %s14 = inlined_call_operand.vmem [shape: bf16[2,64,32], index: 14, kind: input, shape index: {}]
  %s15 = inlined_call_operand.vmem [shape: f32[2,1,32], index: 15, kind: input, shape index: {}]
  %s16 = inlined_call_operand.vmem [shape: f32[1,32], index: 16, kind: input, shape index: {}]
  %s17 = inlined_call_operand.vmem [shape: f32[1,32], index: 17, kind: input, shape index: {}]
  %s18 = inlined_call_operand.vmem [shape: bf16[32,1024], index: 18, kind: input, shape index: {}]
  %s19 = inlined_call_operand.vmem [shape: f32[1,1024], index: 19, kind: input, shape index: {}]
  %s20 = inlined_call_operand.vmem [shape: bf16[1024,128], index: 20, kind: input, shape index: {}]
  %s21 = inlined_call_operand.vmem [shape: f32[1,128], index: 21, kind: input, shape index: {}]
  %s22 = inlined_call_operand.hbm [shape: f32[2,1,1024], index: 22, kind: output, shape index: {0}]
  %s23 = inlined_call_operand.hbm [shape: f32[2,1,128], index: 23, kind: output, shape index: {1}]
  %24 = xla_tuple %s22, %s23
  %s25 = sld [smem:[#allocation0]]
  $region129: #{streetviewnet_forward.1} parent=0
    _
  %s27 = ssub.s32 1, %s25
  %s28 = scalar_select 0, %s27, %s25
  $region1: #{streetviewnet_forward.1} parent=0
    #allocation2 [shape = 'u8[8192]{0}', space=vmem, size = 0x2000, scoped, tag = 'output window, operand 0']
    #allocation3 [shape = 's32[2]{0}', space=sflag, size = 0x8, scoped, tag = 'scoped memory for streetviewnet_forward.1']
    #allocation4 [shape = 'u8[1024]{0}', space=vmem, size = 0x400, scoped, tag = 'output window, operand 1']
    #allocation5 [shape = 's32[2]{0}', space=sflag, size = 0x8, scoped, tag = 'scoped memory for streetviewnet_forward.1']
    %29 = vsyncpa [#allocation3], 0
    %s30 = scalar_lea.sflag [#allocation3], 1
    %31 = vsyncpa %s30, 0
    %32 = vsyncpa [#allocation5], 0
    %s33 = scalar_lea.sflag [#allocation5], 1
    %34 = vsyncpa %s33, 0
    loop: start=0, step=1, limit=4
    $region2: #{streetviewnet_forward.1} parent=1 // loop_pre_header
      _
    $region3: #{streetviewnet_forward.1} parent=1 // loop_header
      %s36 = sphi 0, %s40
      %p37 = scmp.ge.s32.totalorder %s36, 4
      %s46 = sphi 0, %s48
      %s49 = sphi 0, %s46
      %s50 = sphi 0, %s49
      %s66 = sphi 0, %s50
      %s70 = sphi 0, %s70
      %s72 = sphi 0, %s70
      %s73 = sphi 0, %s72
      %s87 = sphi 0, %s73
      %s91 = sphi 0, %s91
      %s93 = sphi 0, %s91
      %s94 = sphi 0, %s93
      %s108 = sphi 0, %s94
      %s112 = sphi 0, %s112
      %s114 = sphi 0, %s112
      %s115 = sphi 0, %s114
      %s129 = sphi 0, %s115
      %s133 = sphi 0, %s133
      %s135 = sphi 0, %s133
      %s136 = sphi 0, %s135
      %s150 = sphi 0, %s136
      %s154 = sphi 0, %s154
      %s156 = sphi 0, %s154
      %s157 = sphi 0, %s156
      %s171 = sphi 0, %s157
      %s175 = sphi 0, %s175
      %s177 = sphi 0, %s175
      %s178 = sphi 0, %s177
      %s192 = sphi 0, %s178
      %s196 = sphi 0, %s196
      %s198 = sphi 0, %s196
      %s199 = sphi 0, %s198
      %s213 = sphi 0, %s199
      %s217 = sphi 0, %s217
      %s219 = sphi 0, %s217
      %s220 = sphi 0, %s219
      %s234 = sphi 0, %s220
      %s238 = sphi 0, %s238
      %s240 = sphi 0, %s238
      %s241 = sphi 0, %s240
      %s255 = sphi 0, %s241
      %s259 = sphi 0, %s259
      %s261 = sphi 0, %s259
      %s262 = sphi 0, %s261
      %s276 = sphi 0, %s262
      %s280 = sphi 0, %s280
      %s282 = sphi 0, %s280
      %s283 = sphi 0, %s282
      %s297 = sphi 0, %s283
      %s301 = sphi 0, %s301
      %s303 = sphi 0, %s301
      %s304 = sphi 0, %s303
      %s318 = sphi 0, %s304
      %s322 = sphi 0, %s322
      %s324 = sphi 0, %s322
      %s325 = sphi 0, %s324
      %s339 = sphi 0, %s325
      %s343 = sphi 0, %s343
      %s345 = sphi 0, %s343
      %s346 = sphi 0, %s345
      %s360 = sphi 0, %s346
      %s364 = sphi 0, %s364
      %s366 = sphi 0, %s364
      %s367 = sphi 0, %s366
      %s381 = sphi 0, %s367
      %s385 = sphi 0, %s385
      %s387 = sphi 0, %s385
      %s388 = sphi 0, %s387
      %s402 = sphi 0, %s388
      %s406 = sphi 0, %s406
      %s408 = sphi 0, %s406
      %s409 = sphi 0, %s408
      %s423 = sphi 0, %s409
      %s427 = sphi 0, %s427
      %s429 = sphi 0, %s427
      %s430 = sphi 0, %s429
      %s444 = sphi 0, %s430
      %s448 = sphi 0, %s448
      %s450 = sphi 0, %s448
      %s451 = sphi 0, %s450
      %s465 = sphi 0, %s451
      %s469 = sphi 0, %s469
      %s471 = sphi 0, %s469
      %s472 = sphi 0, %s471
      %s486 = sphi 0, %s472
      %s490 = sphi 0, %s490
      %s492 = sphi 0, %s490
      %s493 = sphi 0, %s492
      %s507 = sphi 0, %s493
      %s513 = sphi 0, %s515
      %s516 = sphi 0, %s513
      %s517 = sphi 0, %s516
      %s533 = sphi 0, %s517
      %s539 = sphi 0, %s541
      %s542 = sphi 0, %s539
      %s543 = sphi 0, %s542
      %s559 = sphi 0, %s543
    $region4: #{streetviewnet_forward.1} parent=1 // loop_header_branch
      %39 = sbr.rel (%p37) target = $region8
    $region5: #{streetviewnet_forward.1} parent=1 // loop_body
      %s41 = ssub.s32 %s36, 1
      %s42 = ssub.s32 %s36, 2
      %s43 = sadd.s32 %s36, 1
      %s44 = ssub.s32 %s36, %s43
      %p45 = scmp.eq.s32.totalorder %s44, 0
      %s47 = sadd.s32 %s46, 1
      %s48 = scalar_select %p45, %s46, %s47
      %p51 = pneg %p45
      %p52 = scmp.eq.s32.totalorder %s36, 1
      %p53 = por %p51, %p52
      %p54 = scmp.ne.s32.totalorder %s46, %s49
      %p55 = scmp.eq.s32.totalorder %s36, 0
      %p56 = por %p54, %p55
      %p57 = scmp.ne.s32.totalorder %s46, %s49
      %p58 = scmp.eq.s32.totalorder %s41, 1
      %p59 = por %p57, %p58
      %p60 = scmp.ne.s32.totalorder %s49, %s50
      %p61 = scmp.eq.s32.totalorder %s41, 0
      %p62 = por %p60, %p61
      %p63 = scmp.ne.s32.totalorder %s49, %s50
      %p64 = scmp.eq.s32.totalorder %s42, 1
      %p65 = por %p63, %p64
      %p67 = scmp.ne.s32.totalorder %s50, %s66
      %p68 = scmp.eq.s32.totalorder %s42, 0
      %p69 = por %p67, %p68
      %s71 = sadd.s32 %s70, 1
      %p74 = scmp.eq.s32.totalorder %s36, 1
      %p75 = scmp.ne.s32.totalorder %s70, %s72
      %p76 = scmp.eq.s32.totalorder %s36, 0
      %p77 = por %p75, %p76
      %p78 = scmp.ne.s32.totalorder %s70, %s72
      %p79 = scmp.eq.s32.totalorder %s41, 1
      %p80 = por %p78, %p79
      %p81 = scmp.ne.s32.totalorder %s72, %s73
      %p82 = scmp.eq.s32.totalorder %s41, 0
      %p83 = por %p81, %p82
      %p84 = scmp.ne.s32.totalorder %s72, %s73
      %p85 = scmp.eq.s32.totalorder %s42, 1
      %p86 = por %p84, %p85
      %p88 = scmp.ne.s32.totalorder %s73, %s87
      %p89 = scmp.eq.s32.totalorder %s42, 0
      %p90 = por %p88, %p89
      %s92 = sadd.s32 %s91, 1
      %p95 = scmp.eq.s32.totalorder %s36, 1
      %p96 = scmp.ne.s32.totalorder %s91, %s93
      %p97 = scmp.eq.s32.totalorder %s36, 0
      %p98 = por %p96, %p97
      %p99 = scmp.ne.s32.totalorder %s91, %s93
      %p100 = scmp.eq.s32.totalorder %s41, 1
      %p101 = por %p99, %p100
      %p102 = scmp.ne.s32.totalorder %s93, %s94
      %p103 = scmp.eq.s32.totalorder %s41, 0
      %p104 = por %p102, %p103
      %p105 = scmp.ne.s32.totalorder %s93, %s94
      %p106 = scmp.eq.s32.totalorder %s42, 1
      %p107 = por %p105, %p106
      %p109 = scmp.ne.s32.totalorder %s94, %s108
      %p110 = scmp.eq.s32.totalorder %s42, 0
      %p111 = por %p109, %p110
      %s113 = sadd.s32 %s112, 1
      %p116 = scmp.eq.s32.totalorder %s36, 1
      %p117 = scmp.ne.s32.totalorder %s112, %s114
      %p118 = scmp.eq.s32.totalorder %s36, 0
      %p119 = por %p117, %p118
      %p120 = scmp.ne.s32.totalorder %s112, %s114
      %p121 = scmp.eq.s32.totalorder %s41, 1
      %p122 = por %p120, %p121
      %p123 = scmp.ne.s32.totalorder %s114, %s115
      %p124 = scmp.eq.s32.totalorder %s41, 0
      %p125 = por %p123, %p124
      %p126 = scmp.ne.s32.totalorder %s114, %s115
      %p127 = scmp.eq.s32.totalorder %s42, 1
      %p128 = por %p126, %p127
      %p130 = scmp.ne.s32.totalorder %s115, %s129
      %p131 = scmp.eq.s32.totalorder %s42, 0
      %p132 = por %p130, %p131
      %s134 = sadd.s32 %s133, 1
      %p137 = scmp.eq.s32.totalorder %s36, 1
      %p138 = scmp.ne.s32.totalorder %s133, %s135
      %p139 = scmp.eq.s32.totalorder %s36, 0
      %p140 = por %p138, %p139
      %p141 = scmp.ne.s32.totalorder %s133, %s135
      %p142 = scmp.eq.s32.totalorder %s41, 1
      %p143 = por %p141, %p142
      %p144 = scmp.ne.s32.totalorder %s135, %s136
      %p145 = scmp.eq.s32.totalorder %s41, 0
      %p146 = por %p144, %p145
      %p147 = scmp.ne.s32.totalorder %s135, %s136
      %p148 = scmp.eq.s32.totalorder %s42, 1
      %p149 = por %p147, %p148
      %p151 = scmp.ne.s32.totalorder %s136, %s150
      %p152 = scmp.eq.s32.totalorder %s42, 0
      %p153 = por %p151, %p152
      %s155 = sadd.s32 %s154, 1
      %p158 = scmp.eq.s32.totalorder %s36, 1
      %p159 = scmp.ne.s32.totalorder %s154, %s156
      %p160 = scmp.eq.s32.totalorder %s36, 0
      %p161 = por %p159, %p160
      %p162 = scmp.ne.s32.totalorder %s154, %s156
      %p163 = scmp.eq.s32.totalorder %s41, 1
      %p164 = por %p162, %p163
      %p165 = scmp.ne.s32.totalorder %s156, %s157
      %p166 = scmp.eq.s32.totalorder %s41, 0
      %p167 = por %p165, %p166
      %p168 = scmp.ne.s32.totalorder %s156, %s157
      %p169 = scmp.eq.s32.totalorder %s42, 1
      %p170 = por %p168, %p169
      %p172 = scmp.ne.s32.totalorder %s157, %s171
      %p173 = scmp.eq.s32.totalorder %s42, 0
      %p174 = por %p172, %p173
      %s176 = sadd.s32 %s175, 1
      %p179 = scmp.eq.s32.totalorder %s36, 1
      %p180 = scmp.ne.s32.totalorder %s175, %s177
      %p181 = scmp.eq.s32.totalorder %s36, 0
      %p182 = por %p180, %p181
      %p183 = scmp.ne.s32.totalorder %s175, %s177
      %p184 = scmp.eq.s32.totalorder %s41, 1
      %p185 = por %p183, %p184
      %p186 = scmp.ne.s32.totalorder %s177, %s178
      %p187 = scmp.eq.s32.totalorder %s41, 0
      %p188 = por %p186, %p187
      %p189 = scmp.ne.s32.totalorder %s177, %s178
      %p190 = scmp.eq.s32.totalorder %s42, 1
      %p191 = por %p189, %p190
      %p193 = scmp.ne.s32.totalorder %s178, %s192
      %p194 = scmp.eq.s32.totalorder %s42, 0
      %p195 = por %p193, %p194
      %s197 = sadd.s32 %s196, 1
      %p200 = scmp.eq.s32.totalorder %s36, 1
      %p201 = scmp.ne.s32.totalorder %s196, %s198
      %p202 = scmp.eq.s32.totalorder %s36, 0
      %p203 = por %p201, %p202
      %p204 = scmp.ne.s32.totalorder %s196, %s198
      %p205 = scmp.eq.s32.totalorder %s41, 1
      %p206 = por %p204, %p205
      %p207 = scmp.ne.s32.totalorder %s198, %s199
      %p208 = scmp.eq.s32.totalorder %s41, 0
      %p209 = por %p207, %p208
      %p210 = scmp.ne.s32.totalorder %s198, %s199
      %p211 = scmp.eq.s32.totalorder %s42, 1
      %p212 = por %p210, %p211
      %p214 = scmp.ne.s32.totalorder %s199, %s213
      %p215 = scmp.eq.s32.totalorder %s42, 0
      %p216 = por %p214, %p215
      %s218 = sadd.s32 %s217, 1
      %p221 = scmp.eq.s32.totalorder %s36, 1
      %p222 = scmp.ne.s32.totalorder %s217, %s219
      %p223 = scmp.eq.s32.totalorder %s36, 0
      %p224 = por %p222, %p223
      %p225 = scmp.ne.s32.totalorder %s217, %s219
      %p226 = scmp.eq.s32.totalorder %s41, 1
      %p227 = por %p225, %p226
      %p228 = scmp.ne.s32.totalorder %s219, %s220
      %p229 = scmp.eq.s32.totalorder %s41, 0
      %p230 = por %p228, %p229
      %p231 = scmp.ne.s32.totalorder %s219, %s220
      %p232 = scmp.eq.s32.totalorder %s42, 1
      %p233 = por %p231, %p232
      %p235 = scmp.ne.s32.totalorder %s220, %s234
      %p236 = scmp.eq.s32.totalorder %s42, 0
      %p237 = por %p235, %p236
      %s239 = sadd.s32 %s238, 1
      %p242 = scmp.eq.s32.totalorder %s36, 1
      %p243 = scmp.ne.s32.totalorder %s238, %s240
      %p244 = scmp.eq.s32.totalorder %s36, 0
      %p245 = por %p243, %p244
      %p246 = scmp.ne.s32.totalorder %s238, %s240
      %p247 = scmp.eq.s32.totalorder %s41, 1
      %p248 = por %p246, %p247
      %p249 = scmp.ne.s32.totalorder %s240, %s241
      %p250 = scmp.eq.s32.totalorder %s41, 0
      %p251 = por %p249, %p250
      %p252 = scmp.ne.s32.totalorder %s240, %s241
      %p253 = scmp.eq.s32.totalorder %s42, 1
      %p254 = por %p252, %p253
      %p256 = scmp.ne.s32.totalorder %s241, %s255
      %p257 = scmp.eq.s32.totalorder %s42, 0
      %p258 = por %p256, %p257
      %s260 = sadd.s32 %s259, 1
      %p263 = scmp.eq.s32.totalorder %s36, 1
      %p264 = scmp.ne.s32.totalorder %s259, %s261
      %p265 = scmp.eq.s32.totalorder %s36, 0
      %p266 = por %p264, %p265
      %p267 = scmp.ne.s32.totalorder %s259, %s261
      %p268 = scmp.eq.s32.totalorder %s41, 1
      %p269 = por %p267, %p268
      %p270 = scmp.ne.s32.totalorder %s261, %s262
      %p271 = scmp.eq.s32.totalorder %s41, 0
      %p272 = por %p270, %p271
      %p273 = scmp.ne.s32.totalorder %s261, %s262
      %p274 = scmp.eq.s32.totalorder %s42, 1
      %p275 = por %p273, %p274
      %p277 = scmp.ne.s32.totalorder %s262, %s276
      %p278 = scmp.eq.s32.totalorder %s42, 0
      %p279 = por %p277, %p278
      %s281 = sadd.s32 %s280, 1
      %p284 = scmp.eq.s32.totalorder %s36, 1
      %p285 = scmp.ne.s32.totalorder %s280, %s282
      %p286 = scmp.eq.s32.totalorder %s36, 0
      %p287 = por %p285, %p286
      %p288 = scmp.ne.s32.totalorder %s280, %s282
      %p289 = scmp.eq.s32.totalorder %s41, 1
      %p290 = por %p288, %p289
      %p291 = scmp.ne.s32.totalorder %s282, %s283
      %p292 = scmp.eq.s32.totalorder %s41, 0
      %p293 = por %p291, %p292
      %p294 = scmp.ne.s32.totalorder %s282, %s283
      %p295 = scmp.eq.s32.totalorder %s42, 1
      %p296 = por %p294, %p295
      %p298 = scmp.ne.s32.totalorder %s283, %s297
      %p299 = scmp.eq.s32.totalorder %s42, 0
      %p300 = por %p298, %p299
      %s302 = sadd.s32 %s301, 1
      %p305 = scmp.eq.s32.totalorder %s36, 1
      %p306 = scmp.ne.s32.totalorder %s301, %s303
      %p307 = scmp.eq.s32.totalorder %s36, 0
      %p308 = por %p306, %p307
      %p309 = scmp.ne.s32.totalorder %s301, %s303
      %p310 = scmp.eq.s32.totalorder %s41, 1
      %p311 = por %p309, %p310
      %p312 = scmp.ne.s32.totalorder %s303, %s304
      %p313 = scmp.eq.s32.totalorder %s41, 0
      %p314 = por %p312, %p313
      %p315 = scmp.ne.s32.totalorder %s303, %s304
      %p316 = scmp.eq.s32.totalorder %s42, 1
      %p317 = por %p315, %p316
      %p319 = scmp.ne.s32.totalorder %s304, %s318
      %p320 = scmp.eq.s32.totalorder %s42, 0
      %p321 = por %p319, %p320
      %s323 = sadd.s32 %s322, 1
      %p326 = scmp.eq.s32.totalorder %s36, 1
      %p327 = scmp.ne.s32.totalorder %s322, %s324
      %p328 = scmp.eq.s32.totalorder %s36, 0
      %p329 = por %p327, %p328
      %p330 = scmp.ne.s32.totalorder %s322, %s324
      %p331 = scmp.eq.s32.totalorder %s41, 1
      %p332 = por %p330, %p331
      %p333 = scmp.ne.s32.totalorder %s324, %s325
      %p334 = scmp.eq.s32.totalorder %s41, 0
      %p335 = por %p333, %p334
      %p336 = scmp.ne.s32.totalorder %s324, %s325
      %p337 = scmp.eq.s32.totalorder %s42, 1
      %p338 = por %p336, %p337
      %p340 = scmp.ne.s32.totalorder %s325, %s339
      %p341 = scmp.eq.s32.totalorder %s42, 0
      %p342 = por %p340, %p341
      %s344 = sadd.s32 %s343, 1
      %p347 = scmp.eq.s32.totalorder %s36, 1
      %p348 = scmp.ne.s32.totalorder %s343, %s345
      %p349 = scmp.eq.s32.totalorder %s36, 0
      %p350 = por %p348, %p349
      %p351 = scmp.ne.s32.totalorder %s343, %s345
      %p352 = scmp.eq.s32.totalorder %s41, 1
      %p353 = por %p351, %p352
      %p354 = scmp.ne.s32.totalorder %s345, %s346
      %p355 = scmp.eq.s32.totalorder %s41, 0
      %p356 = por %p354, %p355
      %p357 = scmp.ne.s32.totalorder %s345, %s346
      %p358 = scmp.eq.s32.totalorder %s42, 1
      %p359 = por %p357, %p358
      %p361 = scmp.ne.s32.totalorder %s346, %s360
      %p362 = scmp.eq.s32.totalorder %s42, 0
      %p363 = por %p361, %p362
      %s365 = sadd.s32 %s364, 1
      %p368 = scmp.eq.s32.totalorder %s36, 1
      %p369 = scmp.ne.s32.totalorder %s364, %s366
      %p370 = scmp.eq.s32.totalorder %s36, 0
      %p371 = por %p369, %p370
      %p372 = scmp.ne.s32.totalorder %s364, %s366
      %p373 = scmp.eq.s32.totalorder %s41, 1
      %p374 = por %p372, %p373
      %p375 = scmp.ne.s32.totalorder %s366, %s367
      %p376 = scmp.eq.s32.totalorder %s41, 0
      %p377 = por %p375, %p376
      %p378 = scmp.ne.s32.totalorder %s366, %s367
      %p379 = scmp.eq.s32.totalorder %s42, 1
      %p380 = por %p378, %p379
      %p382 = scmp.ne.s32.totalorder %s367, %s381
      %p383 = scmp.eq.s32.totalorder %s42, 0
      %p384 = por %p382, %p383
      %s386 = sadd.s32 %s385, 1
      %p389 = scmp.eq.s32.totalorder %s36, 1
      %p390 = scmp.ne.s32.totalorder %s385, %s387
      %p391 = scmp.eq.s32.totalorder %s36, 0
      %p392 = por %p390, %p391
      %p393 = scmp.ne.s32.totalorder %s385, %s387
      %p394 = scmp.eq.s32.totalorder %s41, 1
      %p395 = por %p393, %p394
      %p396 = scmp.ne.s32.totalorder %s387, %s388
      %p397 = scmp.eq.s32.totalorder %s41, 0
      %p398 = por %p396, %p397
      %p399 = scmp.ne.s32.totalorder %s387, %s388
      %p400 = scmp.eq.s32.totalorder %s42, 1
      %p401 = por %p399, %p400
      %p403 = scmp.ne.s32.totalorder %s388, %s402
      %p404 = scmp.eq.s32.totalorder %s42, 0
      %p405 = por %p403, %p404
      %s407 = sadd.s32 %s406, 1
      %p410 = scmp.eq.s32.totalorder %s36, 1
      %p411 = scmp.ne.s32.totalorder %s406, %s408
      %p412 = scmp.eq.s32.totalorder %s36, 0
      %p413 = por %p411, %p412
      %p414 = scmp.ne.s32.totalorder %s406, %s408
      %p415 = scmp.eq.s32.totalorder %s41, 1
      %p416 = por %p414, %p415
      %p417 = scmp.ne.s32.totalorder %s408, %s409
      %p418 = scmp.eq.s32.totalorder %s41, 0
      %p419 = por %p417, %p418
      %p420 = scmp.ne.s32.totalorder %s408, %s409
      %p421 = scmp.eq.s32.totalorder %s42, 1
      %p422 = por %p420, %p421
      %p424 = scmp.ne.s32.totalorder %s409, %s423
      %p425 = scmp.eq.s32.totalorder %s42, 0
      %p426 = por %p424, %p425
      %s428 = sadd.s32 %s427, 1
      %p431 = scmp.eq.s32.totalorder %s36, 1
      %p432 = scmp.ne.s32.totalorder %s427, %s429
      %p433 = scmp.eq.s32.totalorder %s36, 0
      %p434 = por %p432, %p433
      %p435 = scmp.ne.s32.totalorder %s427, %s429
      %p436 = scmp.eq.s32.totalorder %s41, 1
      %p437 = por %p435, %p436
      %p438 = scmp.ne.s32.totalorder %s429, %s430
      %p439 = scmp.eq.s32.totalorder %s41, 0
      %p440 = por %p438, %p439
      %p441 = scmp.ne.s32.totalorder %s429, %s430
      %p442 = scmp.eq.s32.totalorder %s42, 1
      %p443 = por %p441, %p442
      %p445 = scmp.ne.s32.totalorder %s430, %s444
      %p446 = scmp.eq.s32.totalorder %s42, 0
      %p447 = por %p445, %p446
      %s449 = sadd.s32 %s448, 1
      %p452 = scmp.eq.s32.totalorder %s36, 1
      %p453 = scmp.ne.s32.totalorder %s448, %s450
      %p454 = scmp.eq.s32.totalorder %s36, 0
      %p455 = por %p453, %p454
      %p456 = scmp.ne.s32.totalorder %s448, %s450
      %p457 = scmp.eq.s32.totalorder %s41, 1
      %p458 = por %p456, %p457
      %p459 = scmp.ne.s32.totalorder %s450, %s451
      %p460 = scmp.eq.s32.totalorder %s41, 0
      %p461 = por %p459, %p460
      %p462 = scmp.ne.s32.totalorder %s450, %s451
      %p463 = scmp.eq.s32.totalorder %s42, 1
      %p464 = por %p462, %p463
      %p466 = scmp.ne.s32.totalorder %s451, %s465
      %p467 = scmp.eq.s32.totalorder %s42, 0
      %p468 = por %p466, %p467
      %s470 = sadd.s32 %s469, 1
      %p473 = scmp.eq.s32.totalorder %s36, 1
      %p474 = scmp.ne.s32.totalorder %s469, %s471
      %p475 = scmp.eq.s32.totalorder %s36, 0
      %p476 = por %p474, %p475
      %p477 = scmp.ne.s32.totalorder %s469, %s471
      %p478 = scmp.eq.s32.totalorder %s41, 1
      %p479 = por %p477, %p478
      %p480 = scmp.ne.s32.totalorder %s471, %s472
      %p481 = scmp.eq.s32.totalorder %s41, 0
      %p482 = por %p480, %p481
      %p483 = scmp.ne.s32.totalorder %s471, %s472
      %p484 = scmp.eq.s32.totalorder %s42, 1
      %p485 = por %p483, %p484
      %p487 = scmp.ne.s32.totalorder %s472, %s486
      %p488 = scmp.eq.s32.totalorder %s42, 0
      %p489 = por %p487, %p488
      %s491 = sadd.s32 %s490, 1
      %p494 = scmp.eq.s32.totalorder %s36, 1
      %p495 = scmp.ne.s32.totalorder %s490, %s492
      %p496 = scmp.eq.s32.totalorder %s36, 0
      %p497 = por %p495, %p496
      %p498 = scmp.ne.s32.totalorder %s490, %s492
      %p499 = scmp.eq.s32.totalorder %s41, 1
      %p500 = por %p498, %p499
      %p501 = scmp.ne.s32.totalorder %s492, %s493
      %p502 = scmp.eq.s32.totalorder %s41, 0
      %p503 = por %p501, %p502
      %p504 = scmp.ne.s32.totalorder %s492, %s493
      %p505 = scmp.eq.s32.totalorder %s42, 1
      %p506 = por %p504, %p505
      %p508 = scmp.ne.s32.totalorder %s493, %s507
      %p509 = scmp.eq.s32.totalorder %s42, 0
      %p510 = por %p508, %p509
      %s511 = ssub.s32 %s36, %s43
      %p512 = scmp.eq.s32.totalorder %s511, 0
      %s514 = sadd.s32 %s513, 1
      %s515 = scalar_select %p512, %s513, %s514
      %p518 = pneg %p512
      %p519 = scmp.eq.s32.totalorder %s36, 1
      %p520 = por %p518, %p519
      %p521 = scmp.ne.s32.totalorder %s513, %s516
      %p522 = scmp.eq.s32.totalorder %s36, 0
      %p523 = por %p521, %p522
      %p524 = scmp.ne.s32.totalorder %s513, %s516
      %p525 = scmp.eq.s32.totalorder %s41, 1
      %p526 = por %p524, %p525
      %p527 = scmp.ne.s32.totalorder %s516, %s517
      %p528 = scmp.eq.s32.totalorder %s41, 0
      %p529 = por %p527, %p528
      %p530 = scmp.ne.s32.totalorder %s516, %s517
      %p531 = scmp.eq.s32.totalorder %s42, 1
      %p532 = por %p530, %p531
      %p534 = scmp.ne.s32.totalorder %s517, %s533
      %p535 = scmp.eq.s32.totalorder %s42, 0
      %p536 = por %p534, %p535
      %s537 = ssub.s32 %s36, %s43
      %p538 = scmp.eq.s32.totalorder %s537, 0
      %s540 = sadd.s32 %s539, 1
      %s541 = scalar_select %p538, %s539, %s540
      %p544 = pneg %p538
      %p545 = scmp.eq.s32.totalorder %s36, 1
      %p546 = por %p544, %p545
      %p547 = scmp.ne.s32.totalorder %s539, %s542
      %p548 = scmp.eq.s32.totalorder %s36, 0
      %p549 = por %p547, %p548
      %p550 = scmp.ne.s32.totalorder %s539, %s542
      %p551 = scmp.eq.s32.totalorder %s41, 1
      %p552 = por %p550, %p551
      %p553 = scmp.ne.s32.totalorder %s542, %s543
      %p554 = scmp.eq.s32.totalorder %s41, 0
      %p555 = por %p553, %p554
      %p556 = scmp.ne.s32.totalorder %s542, %s543
      %p557 = scmp.eq.s32.totalorder %s42, 1
      %p558 = por %p556, %p557
      %p560 = scmp.ne.s32.totalorder %s543, %s559
      %p561 = scmp.eq.s32.totalorder %s42, 0
      %p562 = por %p560, %p561
      %p563 = scmp.le.s32.totalorder 1, %s36
      %p564 = scmp.lt.s32.totalorder %s36, 3
      %p565 = pnand %p563, %p564
      %p566 = pneg %p565
      // Predicated region
      $region9: #{streetviewnet_forward.1} parent=5 // pred_check
        _
      $region10: #{streetviewnet_forward.1} parent=5 // pred_check_branch
        %568 = sbr.rel (%p565) target = $region12
      $region11: #{streetviewnet_forward.1} parent=5 // pred_region
        %s569 = ssub.s32 %s36, 1
        // Predicated region
        $region13: #{streetviewnet_forward.1} parent=11 // pred_check
          %p570 = pneg %p83
        $region14: #{streetviewnet_forward.1} parent=11 // pred_check_branch
          %572 = sbr.rel (%p570) target = $region16
        $region15: #{streetviewnet_forward.1} parent=11 // pred_region
          _
        $region16: #{streetviewnet_forward.1} parent=11 // pred_fallthru
          _
        // Predicated region
        $region17: #{streetviewnet_forward.1} parent=11 // pred_check
          %p573 = pneg %p104
        $region18: #{streetviewnet_forward.1} parent=11 // pred_check_branch
          %575 = sbr.rel (%p573) target = $region20
        $region19: #{streetviewnet_forward.1} parent=11 // pred_region
          _
        $region20: #{streetviewnet_forward.1} parent=11 // pred_fallthru
          _
        // Predicated region
        $region21: #{streetviewnet_forward.1} parent=11 // pred_check
          %p576 = pneg %p125
        $region22: #{streetviewnet_forward.1} parent=11 // pred_check_branch
          %578 = sbr.rel (%p576) target = $region24
        $region23: #{streetviewnet_forward.1} parent=11 // pred_region
          _
        $region24: #{streetviewnet_forward.1} parent=11 // pred_fallthru
          _
        // Predicated region
        $region25: #{streetviewnet_forward.1} parent=11 // pred_check
          %p579 = pneg %p146
        $region26: #{streetviewnet_forward.1} parent=11 // pred_check_branch
          %581 = sbr.rel (%p579) target = $region28
        $region27: #{streetviewnet_forward.1} parent=11 // pred_region
          _
        $region28: #{streetviewnet_forward.1} parent=11 // pred_fallthru
          _
        // Predicated region
        $region29: #{streetviewnet_forward.1} parent=11 // pred_check
          %p582 = pneg %p167
        $region30: #{streetviewnet_forward.1} parent=11 // pred_check_branch
          %584 = sbr.rel (%p582) target = $region32
        $region31: #{streetviewnet_forward.1} parent=11 // pred_region
          _
        $region32: #{streetviewnet_forward.1} parent=11 // pred_fallthru
          _
        // Predicated region
        $region33: #{streetviewnet_forward.1} parent=11 // pred_check
          %p585 = pneg %p188
        $region34: #{streetviewnet_forward.1} parent=11 // pred_check_branch
          %587 = sbr.rel (%p585) target = $region36
        $region35: #{streetviewnet_forward.1} parent=11 // pred_region
          _
        $region36: #{streetviewnet_forward.1} parent=11 // pred_fallthru
          _
        // Predicated region
        $region37: #{streetviewnet_forward.1} parent=11 // pred_check
          %p588 = pneg %p209
        $region38: #{streetviewnet_forward.1} parent=11 // pred_check_branch
          %590 = sbr.rel (%p588) target = $region40
        $region39: #{streetviewnet_forward.1} parent=11 // pred_region
          _
        $region40: #{streetviewnet_forward.1} parent=11 // pred_fallthru
          _
        // Predicated region
        $region41: #{streetviewnet_forward.1} parent=11 // pred_check
          %p591 = pneg %p230
        $region42: #{streetviewnet_forward.1} parent=11 // pred_check_branch
          %593 = sbr.rel (%p591) target = $region44
        $region43: #{streetviewnet_forward.1} parent=11 // pred_region
          _
        $region44: #{streetviewnet_forward.1} parent=11 // pred_fallthru
          _
        // Predicated region
        $region45: #{streetviewnet_forward.1} parent=11 // pred_check
          %p594 = pneg %p251
        $region46: #{streetviewnet_forward.1} parent=11 // pred_check_branch
          %596 = sbr.rel (%p594) target = $region48
        $region47: #{streetviewnet_forward.1} parent=11 // pred_region
          _
        $region48: #{streetviewnet_forward.1} parent=11 // pred_fallthru
          _
        // Predicated region
        $region49: #{streetviewnet_forward.1} parent=11 // pred_check
          %p597 = pneg %p272
        $region50: #{streetviewnet_forward.1} parent=11 // pred_check_branch
          %599 = sbr.rel (%p597) target = $region52
        $region51: #{streetviewnet_forward.1} parent=11 // pred_region
          _
        $region52: #{streetviewnet_forward.1} parent=11 // pred_fallthru
          _
        // Predicated region
        $region53: #{streetviewnet_forward.1} parent=11 // pred_check
          %p600 = pneg %p293
        $region54: #{streetviewnet_forward.1} parent=11 // pred_check_branch
          %602 = sbr.rel (%p600) target = $region56
        $region55: #{streetviewnet_forward.1} parent=11 // pred_region
          _
        $region56: #{streetviewnet_forward.1} parent=11 // pred_fallthru
          _
        // Predicated region
        $region57: #{streetviewnet_forward.1} parent=11 // pred_check
          %p603 = pneg %p314
        $region58: #{streetviewnet_forward.1} parent=11 // pred_check_branch
          %605 = sbr.rel (%p603) target = $region60
        $region59: #{streetviewnet_forward.1} parent=11 // pred_region
          _
        $region60: #{streetviewnet_forward.1} parent=11 // pred_fallthru
          _
        // Predicated region
        $region61: #{streetviewnet_forward.1} parent=11 // pred_check
          %p606 = pneg %p335
        $region62: #{streetviewnet_forward.1} parent=11 // pred_check_branch
          %608 = sbr.rel (%p606) target = $region64
        $region63: #{streetviewnet_forward.1} parent=11 // pred_region
          _
        $region64: #{streetviewnet_forward.1} parent=11 // pred_fallthru
          _
        // Predicated region
        $region65: #{streetviewnet_forward.1} parent=11 // pred_check
          %p609 = pneg %p356
        $region66: #{streetviewnet_forward.1} parent=11 // pred_check_branch
          %611 = sbr.rel (%p609) target = $region68
        $region67: #{streetviewnet_forward.1} parent=11 // pred_region
          _
        $region68: #{streetviewnet_forward.1} parent=11 // pred_fallthru
          _
        // Predicated region
        $region69: #{streetviewnet_forward.1} parent=11 // pred_check
          %p612 = pneg %p377
        $region70: #{streetviewnet_forward.1} parent=11 // pred_check_branch
          %614 = sbr.rel (%p612) target = $region72
        $region71: #{streetviewnet_forward.1} parent=11 // pred_region
          _
        $region72: #{streetviewnet_forward.1} parent=11 // pred_fallthru
          _
        // Predicated region
        $region73: #{streetviewnet_forward.1} parent=11 // pred_check
          %p615 = pneg %p398
        $region74: #{streetviewnet_forward.1} parent=11 // pred_check_branch
          %617 = sbr.rel (%p615) target = $region76
        $region75: #{streetviewnet_forward.1} parent=11 // pred_region
          _
        $region76: #{streetviewnet_forward.1} parent=11 // pred_fallthru
          _
        // Predicated region
        $region77: #{streetviewnet_forward.1} parent=11 // pred_check
          %p618 = pneg %p419
        $region78: #{streetviewnet_forward.1} parent=11 // pred_check_branch
          %620 = sbr.rel (%p618) target = $region80
        $region79: #{streetviewnet_forward.1} parent=11 // pred_region
          _
        $region80: #{streetviewnet_forward.1} parent=11 // pred_fallthru
          _
        // Predicated region
        $region81: #{streetviewnet_forward.1} parent=11 // pred_check
          %p621 = pneg %p440
        $region82: #{streetviewnet_forward.1} parent=11 // pred_check_branch
          %623 = sbr.rel (%p621) target = $region84
        $region83: #{streetviewnet_forward.1} parent=11 // pred_region
          _
        $region84: #{streetviewnet_forward.1} parent=11 // pred_fallthru
          _
        // Predicated region
        $region85: #{streetviewnet_forward.1} parent=11 // pred_check
          %p624 = pneg %p461
        $region86: #{streetviewnet_forward.1} parent=11 // pred_check_branch
          %626 = sbr.rel (%p624) target = $region88
        $region87: #{streetviewnet_forward.1} parent=11 // pred_region
          _
        $region88: #{streetviewnet_forward.1} parent=11 // pred_fallthru
          _
        // Predicated region
        $region89: #{streetviewnet_forward.1} parent=11 // pred_check
          %p627 = pneg %p482
        $region90: #{streetviewnet_forward.1} parent=11 // pred_check_branch
          %629 = sbr.rel (%p627) target = $region92
        $region91: #{streetviewnet_forward.1} parent=11 // pred_region
          _
        $region92: #{streetviewnet_forward.1} parent=11 // pred_fallthru
          _
        // Predicated region
        $region93: #{streetviewnet_forward.1} parent=11 // pred_check
          %p630 = pneg %p503
        $region94: #{streetviewnet_forward.1} parent=11 // pred_check_branch
          %632 = sbr.rel (%p630) target = $region96
        $region95: #{streetviewnet_forward.1} parent=11 // pred_region
          _
        $region96: #{streetviewnet_forward.1} parent=11 // pred_fallthru
          _
      $region12: #{streetviewnet_forward.1} parent=5 // pred_fallthru
        _
      %p633 = scmp.lt.s32.totalorder %s36, 2
      // Predicated region
      $region97: #{streetviewnet_forward.1} parent=5 // pred_check
        %p634 = pneg %p633
      $region98: #{streetviewnet_forward.1} parent=5 // pred_check_branch
        %636 = sbr.rel (%p634) target = $region100
      $region99: #{streetviewnet_forward.1} parent=5 // pred_region
        // Predicated region
        $region101: #{streetviewnet_forward.1} parent=99 // pred_check
          %p637 = pneg %p56
        $region102: #{streetviewnet_forward.1} parent=99 // pred_check_branch
          %639 = sbr.rel (%p637) target = $region104
        $region103: #{streetviewnet_forward.1} parent=99 // pred_region
          %p640 = scmp.lt.s32.totalorder %s36, 1
          %s641 = scalar_select %p640, %s36, 1
          %s642 = smul.addr %s641, 2
          %s643 = smul.addr %s642, 4
          %s644 = scalar_lea.vmem %s0, %s643
        $region104: #{streetviewnet_forward.1} parent=99 // pred_fallthru
          _
      $region100: #{streetviewnet_forward.1} parent=5 // pred_fallthru
        _
      %p645 = scmp.le.s32.totalorder 1, %s36
      %p646 = scmp.lt.s32.totalorder %s36, 3
      %p647 = pnand %p645, %p646
      %p648 = pneg %p647
      // Predicated region
      $region105: #{streetviewnet_forward.1} parent=5 // pred_check
        _
      $region106: #{streetviewnet_forward.1} parent=5 // pred_check_branch
        %650 = sbr.rel (%p647) target = $region108
      $region107: #{streetviewnet_forward.1} parent=5 // pred_region
        %s651 = ssub.s32 %s36, 1
        %p652 = scmp.lt.s32.totalorder %s41, 1
        %s653 = scalar_select %p652, %s41, 1
        %s654 = smul.addr %s653, 2
        %s655 = smul.addr %s654, 4
        %s656 = scalar_lea.vmem %s0, %s655
        %p657 = pneg %p62
        %p658 = pneg %p59
        %p659 = pneg %p83
        %p660 = pneg %p80
        %p661 = pneg %p104
        %p662 = pneg %p101
        %p663 = pneg %p125
        %p664 = pneg %p122
        %p665 = pneg %p146
        %p666 = pneg %p143
        %p667 = pneg %p167
        %p668 = pneg %p164
        %p669 = pneg %p188
        %p670 = pneg %p185
        %p671 = pneg %p209
        %p672 = pneg %p206
        %p673 = pneg %p230
        %p674 = pneg %p227
        %p675 = pneg %p251
        %p676 = pneg %p248
        %p677 = pneg %p272
        %p678 = pneg %p269
        %p679 = pneg %p293
        %p680 = pneg %p290
        %p681 = pneg %p314
        %p682 = pneg %p311
        %p683 = pneg %p335
        %p684 = pneg %p332
        %p685 = pneg %p356
        %p686 = pneg %p353
        %p687 = pneg %p377
        %p688 = pneg %p374
        %p689 = pneg %p398
        %p690 = pneg %p395
        %p691 = pneg %p419
        %p692 = pneg %p416
        %p693 = pneg %p440
        %p694 = pneg %p437
        %p695 = pneg %p461
        %p696 = pneg %p458
        %p697 = pneg %p482
        %p698 = pneg %p479
        %p699 = pneg %p503
        %p700 = pneg %p500
        %p701 = pneg %p529
        %p702 = pneg %p526
        %s703 = sand.u32 %s516, 1
        %s704 = scalar_lea.sflag [#allocation3], %s703
        %s705 = sand.u32 %s516, 1
        %s706 = smul.addr %s705, 8
        %s707 = scalar_lea.vmem [#allocation2], %s706
        %p708 = pneg %p555
        %p709 = pneg %p552
        %s710 = sand.u32 %s542, 1
        %s711 = scalar_lea.sflag [#allocation5], %s710
        %s712 = sand.u32 %s542, 1
        %s713 = scalar_lea.vmem [#allocation4], %s712
        %p714 = scmp.lt.s32.totalorder %s41, 1
        %s715 = scalar_select %p714, %s41, 1
        %s716 = smul.addr %s715, 2
        %s717 = smul.addr %s716, 4
        %s718 = scalar_lea.vmem %s0, %s717
        %v720 = vld [vmem:[%s718] sm:$0xff]
        %v721 = vld [vmem:[%s1] sm:$0xf]
        %v722 = vld [vmem:[%s1 + $0x4] sm:$0xf]
        %v723 = vld [vmem:[%s1 + $0x8] sm:$0xf]
        %v724 = vld [vmem:[%s1 + $0xc] sm:$0xf]
        %v725 = vld [vmem:[%s1 + $0x10] sm:$0xf]
        %v726 = vld [vmem:[%s1 + $0x14] sm:$0xf]
        %v727 = vld [vmem:[%s1 + $0x18] sm:$0xf]
        %v728 = vld [vmem:[%s1 + $0x1c] sm:$0xf]
        %v729 = vld [vmem:[%s1 + $0x20] sm:$0xf]
        %v730 = vld [vmem:[%s1 + $0x24] sm:$0xf]
        %v731 = vld [vmem:[%s1 + $0x28] sm:$0xf]
        %v732 = vld [vmem:[%s1 + $0x2c] sm:$0xf]
        %v733 = vld [vmem:[%s1 + $0x30] sm:$0xf]
        %v734 = vld [vmem:[%s1 + $0x34] sm:$0xf]
        %v735 = vld [vmem:[%s1 + $0x38] sm:$0xf]
        %v736 = vld [vmem:[%s1 + $0x3c] sm:$0xf]
        %v737 = vld [vmem:[%s1 + $0x40] sm:$0xf]
        %v738 = vld [vmem:[%s1 + $0x44] sm:$0xf]
        %v739 = vld [vmem:[%s1 + $0x48] sm:$0xf]
        %v740 = vld [vmem:[%s1 + $0x4c] sm:$0xf]
        %v741 = vld [vmem:[%s1 + $0x50] sm:$0xf]
        %v742 = vld [vmem:[%s1 + $0x54] sm:$0xf]
        %v743 = vld [vmem:[%s1 + $0x58] sm:$0xf]
        %v744 = vld [vmem:[%s1 + $0x5c] sm:$0xf]
        %v745 = vld [vmem:[%s2] sm:$0x1]
        %v747 = vcombine.high %v720, %v720
        %v749 = vpack.c.bf16 %v720, %v720
        %v750 = vpack.c.bf16 %v747, %v747
        %v752 = vlaneseq
        %v753 = vshrl.u32 %v752, 7
        %v754 = vsub.s32 0, %v753
        %v755 = vrot.slane %v745, %v754
        %v781 = vunpack.c.l.b16 %v721
        %v782 = vunpack.c.l.b16 %v722
        %v783 = vunpack.c.l.b16 %v723
        %v784 = vunpack.c.l.b16 %v724
        %v785 = vunpack.c.l.b16 %v725
        %v786 = vunpack.c.l.b16 %v726
        %v787 = vunpack.c.l.b16 %v727
        %v788 = vunpack.c.l.b16 %v728
        %v789 = vunpack.c.l.b16 %v729
        %v790 = vunpack.c.l.b16 %v730
        %v791 = vunpack.c.l.b16 %v731
        %v792 = vunpack.c.l.b16 %v732
        %v793 = vunpack.c.l.b16 %v733
        %v794 = vunpack.c.l.b16 %v734
        %v795 = vunpack.c.l.b16 %v735
        %v796 = vunpack.c.l.b16 %v736
        %v797 = vunpack.c.l.b16 %v737
        %v798 = vunpack.c.l.b16 %v738
        %v799 = vunpack.c.l.b16 %v739
        %v800 = vunpack.c.l.b16 %v740
        %v801 = vunpack.c.l.b16 %v741
        %v802 = vunpack.c.l.b16 %v742
        %v803 = vunpack.c.l.b16 %v743
        %v804 = vunpack.c.l.b16 %v744
        %v805 = vpack.c.b16 %v782, %v781
        %v806 = vpack.c.b16 %v784, %v783
        %v807 = vpack.c.b16 %v786, %v785
        %v808 = vpack.c.b16 %v788, %v787
        %v809 = vpack.c.b16 %v790, %v789
        %v810 = vpack.c.b16 %v792, %v791
        %v811 = vpack.c.b16 %v794, %v793
        %v812 = vpack.c.b16 %v796, %v795
        %v813 = vpack.c.b16 %v798, %v797
        %v814 = vpack.c.b16 %v800, %v799
        %v815 = vpack.c.b16 %v802, %v801
        %v816 = vpack.c.b16 %v804, %v803
        %vm829 = vcmask 523264
        %v831 = vsel %vm829, %v750, 0
        %833 = vmatprep.subr.bf16.mxu0 0
        %834 = vmatpush1.bf16.msra.mxu0 %v805
        %835 = vmatprep.subr.bf16.mxu0 0
        %836 = vmatpush1.bf16.msra.mxu0 %v806
        %837 = vmatprep.subr.bf16.mxu0 0
        %838 = vmatpush1.bf16.msra.mxu0 %v807
        %839 = vmatprep.subr.bf16.mxu0 0
        %840 = vmatpush1.bf16.msra.mxu0 %v808
        %841 = vmatprep.subr.bf16.mxu0 0
        %842 = vmatpush1.bf16.msra.mxu0 %v809
        %843 = vmatprep.subr.bf16.mxu0 0
        %844 = vmatpush1.bf16.msra.mxu0 %v810
        %845 = vmatprep.subr.bf16.mxu0 0
        %846 = vmatpush1.bf16.msra.mxu0 %v811
        %847 = vmatprep.subr.bf16.mxu0 0
        %848 = vmatpush1.bf16.msra.mxu0 %v812
        %849 = vmatprep.subr.bf16.mxu0 0
        %850 = vmatpush1.bf16.msra.mxu0 %v813
        %851 = vmatprep.subr.bf16.mxu0 0
        %852 = vmatpush1.bf16.msra.mxu0 %v814
        %853 = vmatprep.subr.bf16.mxu0 0
        %854 = vmatpush1.bf16.msra.mxu0 %v815
        %855 = vmatprep.subr.bf16.mxu0 0
        %856 = vmatpush1.bf16.msra.mxu0 %v816
        %857 = vmatprep.subr.bf16.mxu0 0
        %858 = vmatpush1.bf16.msra.mxu0 0
        %859 = vmatprep.subr.bf16.mxu0 0
        %860 = vmatpush1.bf16.msra.mxu0 0
        %861 = vmatprep.subr.bf16.mxu0 0
        %862 = vmatpush1.bf16.msra.mxu0 0
        %863 = vmatprep.subr.bf16.mxu0 0
        %864 = vmatpush1.bf16.msra.mxu0 0
        %865 = vmatprep.mubr.bf16.mxu0 %v831
        %866 = vmatmul.mubr.bf16.gmra.mrb[0].mxu0 %v749
        %v867 = vpop.f32.mrb[0].mxu0
        %v868 = vadd.f32 %v755, %v867
        %v869 = vpop.f32.mrb[0].mxu0
        %v870 = vpop.f32.mrb[0].mxu0
        %v871 = vpop.f32.mrb[0].mxu0
        %872 = vdwg.mxu0
        %v874 = vrot.slane %v868, 7
        %vm876 = vcmask 1040384
        %v877 = vsel %vm876, 0.0, %v874
        %v878 = vld [vmem:[%s3] sm:$0x1f]
        %v879 = vadd.f32 %v877, %v878
        %v880 = vld [vmem:[%s4] sm:$0x1]
        %v881 = vld [vmem:[%s5] sm:$0x1]
        %vm882 = vcmask 258048
        %v883 = vsel %vm882, %v879, 0.0
        %884 = vadd.xlane.f32.xlu0 %v883
        %v885 = vpop.xlane.xlu0 %884
        %v886 = vrcp.pop 32.0
        %v887 = vmul.f32 %v885, %v886
        %v888 = vsub.f32 %v879, %v887
        %v889 = vmul.f32 %v888, %v888
        %v890 = vsel %vm882, %v889, 0.0
        %891 = vadd.xlane.f32.xlu0 %v890
        %v892 = vpop.xlane.xlu0 %891
        %v893 = vmul.f32 %v892, %v886
        %v894 = vadd.f32 %v893, 1e-06
        %v895 = vrsqrt.pop %v894
        %v896 = vmul.f32 %v888, %v895
        %v898 = vlaneseq
        %v899 = vshrl.u32 %v898, 7
        %v900 = vsub.s32 0, %v899
        %v901 = vrot.slane %v880, %v900
        %v903 = vmul.f32 %v896, %v901
        %v905 = vlaneseq
        %v906 = vshrl.u32 %v905, 7
        %v907 = vsub.s32 0, %v906
        %v908 = vrot.slane %v881, %v907
        %v910 = vadd.f32 %v903, %v908
        %v911 = vld [vmem:[%s6] sm:$0xf]
        %v912 = vld [vmem:[%s6 + $0x4] sm:$0xf]
        %v913 = vld [vmem:[%s6 + $0x8] sm:$0xf]
        %v914 = vld [vmem:[%s6 + $0xc] sm:$0xf]
        %v915 = vld [vmem:[%s7] sm:$0x1]
        %v916 = vpack.c.bf16 %v910, %v910
        %v918 = vlaneseq
        %v919 = vshrl.u32 %v918, 7
        %v920 = vsub.s32 0, %v919
        %v921 = vrot.slane %v915, %v920
        %v927 = vunpack.c.l.b16 %v911
        %v928 = vunpack.c.l.b16 %v912
        %v929 = vunpack.c.l.b16 %v913
        %v930 = vunpack.c.l.b16 %v914
        %v931 = vpack.c.b16 %v928, %v927
        %v932 = vpack.c.b16 %v930, %v929
        %vm935 = vcmask 261120
        %v937 = vsel %vm935, %v916, 0
        %939 = vmatprep.subr.bf16.mxu0 0
        %940 = vmatpush1.bf16.msra.mxu0 %v931
        %941 = vmatprep.subr.bf16.mxu0 0
        %942 = vmatpush1.bf16.msra.mxu0 %v932
        %943 = vmatprep.subr.bf16.mxu0 0
        %944 = vmatpush1.bf16.msra.mxu0 0
        %945 = vmatprep.subr.bf16.mxu0 0
        %946 = vmatpush1.bf16.msra.mxu0 0
        %947 = vmatprep.subr.bf16.mxu0 0
        %948 = vmatpush1.bf16.msra.mxu0 0
        %949 = vmatprep.subr.bf16.mxu0 0
        %950 = vmatpush1.bf16.msra.mxu0 0
        %951 = vmatprep.subr.bf16.mxu0 0
        %952 = vmatpush1.bf16.msra.mxu0 0
        %953 = vmatprep.subr.bf16.mxu0 0
        %954 = vmatpush1.bf16.msra.mxu0 0
        %955 = vmatprep.subr.bf16.mxu0 0
        %956 = vmatpush1.bf16.msra.mxu0 0
        %957 = vmatprep.subr.bf16.mxu0 0
        %958 = vmatpush1.bf16.msra.mxu0 0
        %959 = vmatprep.subr.bf16.mxu0 0
        %960 = vmatpush1.bf16.msra.mxu0 0
        %961 = vmatprep.subr.bf16.mxu0 0
        %962 = vmatpush1.bf16.msra.mxu0 0
        %963 = vmatprep.subr.bf16.mxu0 0
        %964 = vmatpush1.bf16.msra.mxu0 0
        %965 = vmatprep.subr.bf16.mxu0 0
        %966 = vmatpush1.bf16.msra.mxu0 0
        %967 = vmatprep.subr.bf16.mxu0 0
        %968 = vmatpush1.bf16.msra.mxu0 0
        %969 = vmatprep.subr.bf16.mxu0 0
        %970 = vmatpush1.bf16.msra.mxu0 0
        %971 = vmatprep.mubr.bf16.mxu0 0
        %972 = vmatmul.mubr.bf16.gmra.mrb[0].mxu0 %v937
        %v973 = vpop.f32.mrb[0].mxu0
        %v974 = vadd.f32 %v921, %v973
        %v975 = vpop.f32.mrb[0].mxu0
        %v976 = vpop.f32.mrb[0].mxu0
        %v977 = vpop.f32.mrb[0].mxu0
        %978 = vdwg.mxu0
        %v979 = vpack.c.bf16 %v974, %v974
        %981 = vrot.lane.b32.xlu0 %v979, 96
        %v982 = vpop.permute.xlu0 %981
        %vm983 = vcmask 64512
        %v985 = vsel %vm983, %v979, 0
        %v988 = vsel %vm983, %v982, 0
        %990 = vmatprep.subr.bf16.mxu0 0
        %991 = vmatpush1.bf16.xpose.msra.mxu0 %v988
        %992 = vmatprep.subr.bf16.mxu0 0
        %993 = vmatpush1.bf16.xpose.msra.mxu0 0
        %994 = vmatprep.subr.bf16.mxu0 0
        %995 = vmatpush1.bf16.xpose.msra.mxu0 0
        %996 = vmatprep.subr.bf16.mxu0 0
        %997 = vmatpush1.bf16.xpose.msra.mxu0 0
        %998 = vmatprep.subr.bf16.mxu0 0
        %999 = vmatpush1.bf16.xpose.msra.mxu0 0
        %1000 = vmatprep.subr.bf16.mxu0 0
        %1001 = vmatpush1.bf16.xpose.msra.mxu0 0
        %1002 = vmatprep.subr.bf16.mxu0 0
        %1003 = vmatpush1.bf16.xpose.msra.mxu0 0
        %1004 = vmatprep.subr.bf16.mxu0 0
        %1005 = vmatpush1.bf16.xpose.msra.mxu0 0
        %1006 = vmatprep.subr.bf16.mxu0 0
        %1007 = vmatpush1.bf16.xpose.msra.mxu0 0
        %1008 = vmatprep.subr.bf16.mxu0 0
        %1009 = vmatpush1.bf16.xpose.msra.mxu0 0
        %1010 = vmatprep.subr.bf16.mxu0 0
        %1011 = vmatpush1.bf16.xpose.msra.mxu0 0
        %1012 = vmatprep.subr.bf16.mxu0 0
        %1013 = vmatpush1.bf16.xpose.msra.mxu0 0
        %1014 = vmatprep.subr.bf16.mxu0 0
        %1015 = vmatpush1.bf16.xpose.msra.mxu0 0
        %1016 = vmatprep.subr.bf16.mxu0 0
        %1017 = vmatpush1.bf16.xpose.msra.mxu0 0
        %1018 = vmatprep.subr.bf16.mxu0 0
        %1019 = vmatpush1.bf16.xpose.msra.mxu0 0
        %1020 = vmatprep.subr.bf16.mxu0 0
        %1021 = vmatpush1.bf16.xpose.msra.mxu0 0
        %1022 = vmatprep.mubr.bf16.mxu0 0
        %1023 = vmatmul.mubr.bf16.gmra.mrb[0].mxu0 %v985
        %v1024 = vpop.f32.mrb[0].mxu0
        %v1025 = vadd.f32 0.0, %v1024
        %v1026 = vpop.f32.mrb[0].mxu0
        %v1027 = vpop.f32.mrb[0].mxu0
        %v1028 = vpop.f32.mrb[0].mxu0
        %1029 = vdwg.mxu0
        %v1030 = vmul.f32 %v1025, 0.35355338
        %vm1031 = vcmask 36864
        %v1032 = vsel %vm1031, %v1030, -inf
        %1033 = vmax.xlane.f32.xlu0 %v1032
        %v1034 = vpop.xlane.xlu0 %1033
        %v1035 = vsub.f32 %v1030, %v1034
        %v1036 = vmul.f32 %v1035, 1.442695
        %v1037 = vpow.pop %v1036
        %v1038 = vsel %vm1031, %v1037, 0.0
        %1039 = vadd.xlane.f32.xlu0 %v1038
        %v1040 = vpop.xlane.xlu0 %1039
        %v1041 = vrcp.pop %v1040
        %v1042 = vmul.f32 %v1037, %v1041
        %v1043 = vpack.c.bf16 %v1042, %v1042
        %1044 = vrot.lane.b32.xlu0 %v979, 64
        %v1045 = vpop.permute.xlu0 %1044
        %vm1046 = vcmask 39936
        %v1048 = vsel %vm1046, %v1043, 0
        %vm1050 = vcmask 1041408
        %vm1051 = vcmask 1042432
        %v1052 = vsel %vm1050, 4294967295, 65535
        %v1053 = vsel %vm1051, %v1052, 0
        %v1055 = vand.u32 %v1045, %v1053
        %1057 = vmatprep.subr.bf16.mxu0 0
        %1058 = vmatpush1.bf16.msra.mxu0 %v1055
        %1059 = vmatprep.subr.bf16.mxu0 0
        %1060 = vmatpush1.bf16.msra.mxu0 0
        %1061 = vmatprep.subr.bf16.mxu0 0
        %1062 = vmatpush1.bf16.msra.mxu0 0
        %1063 = vmatprep.subr.bf16.mxu0 0
        %1064 = vmatpush1.bf16.msra.mxu0 0
        %1065 = vmatprep.subr.bf16.mxu0 0
        %1066 = vmatpush1.bf16.msra.mxu0 0
        %1067 = vmatprep.subr.bf16.mxu0 0
        %1068 = vmatpush1.bf16.msra.mxu0 0
        %1069 = vmatprep.subr.bf16.mxu0 0
        %1070 = vmatpush1.bf16.msra.mxu0 0
        %1071 = vmatprep.subr.bf16.mxu0 0
        %1072 = vmatpush1.bf16.msra.mxu0 0
        %1073 = vmatprep.subr.bf16.mxu0 0
        %1074 = vmatpush1.bf16.msra.mxu0 0
        %1075 = vmatprep.subr.bf16.mxu0 0
        %1076 = vmatpush1.bf16.msra.mxu0 0
        %1077 = vmatprep.subr.bf16.mxu0 0
        %1078 = vmatpush1.bf16.msra.mxu0 0
        %1079 = vmatprep.subr.bf16.mxu0 0
        %1080 = vmatpush1.bf16.msra.mxu0 0
        %1081 = vmatprep.subr.bf16.mxu0 0
        %1082 = vmatpush1.bf16.msra.mxu0 0
        %1083 = vmatprep.subr.bf16.mxu0 0
        %1084 = vmatpush1.bf16.msra.mxu0 0
        %1085 = vmatprep.subr.bf16.mxu0 0
        %1086 = vmatpush1.bf16.msra.mxu0 0
        %1087 = vmatprep.subr.bf16.mxu0 0
        %1088 = vmatpush1.bf16.msra.mxu0 0
        %1089 = vmatprep.mubr.bf16.mxu0 0
        %1090 = vmatmul.mubr.bf16.gmra.mrb[0].mxu0 %v1048
        %v1091 = vpop.f32.mrb[0].mxu0
        %v1092 = vadd.f32 0.0, %v1091
        %v1093 = vpop.f32.mrb[0].mxu0
        %v1094 = vpop.f32.mrb[0].mxu0
        %v1095 = vpop.f32.mrb[0].mxu0
        %1096 = vdwg.mxu0
        %1097 = vrot.lane.b32.xlu0 %v979, 120
        %v1098 = vpop.permute.xlu0 %1097
        %1099 = vrot.lane.b32.xlu0 %v979, 88
        %v1100 = vpop.permute.xlu0 %1099
        %v1102 = vsel %vm983, %v1098, 0
        %v1105 = vsel %vm983, %v1100, 0
        %1107 = vmatprep.subr.bf16.mxu0 0
        %1108 = vmatpush1.bf16.xpose.msra.mxu0 %v1105
        %1109 = vmatprep.subr.bf16.mxu0 0
        %1110 = vmatpush1.bf16.xpose.msra.mxu0 0
        %1111 = vmatprep.subr.bf16.mxu0 0
        %1112 = vmatpush1.bf16.xpose.msra.mxu0 0
        %1113 = vmatprep.subr.bf16.mxu0 0
        %1114 = vmatpush1.bf16.xpose.msra.mxu0 0
        %1115 = vmatprep.subr.bf16.mxu0 0
        %1116 = vmatpush1.bf16.xpose.msra.mxu0 0
        %1117 = vmatprep.subr.bf16.mxu0 0
        %1118 = vmatpush1.bf16.xpose.msra.mxu0 0
        %1119 = vmatprep.subr.bf16.mxu0 0
        %1120 = vmatpush1.bf16.xpose.msra.mxu0 0
        %1121 = vmatprep.subr.bf16.mxu0 0
        %1122 = vmatpush1.bf16.xpose.msra.mxu0 0
        %1123 = vmatprep.subr.bf16.mxu0 0
        %1124 = vmatpush1.bf16.xpose.msra.mxu0 0
        %1125 = vmatprep.subr.bf16.mxu0 0
        %1126 = vmatpush1.bf16.xpose.msra.mxu0 0
        %1127 = vmatprep.subr.bf16.mxu0 0
        %1128 = vmatpush1.bf16.xpose.msra.mxu0 0
        %1129 = vmatprep.subr.bf16.mxu0 0
        %1130 = vmatpush1.bf16.xpose.msra.mxu0 0
        %1131 = vmatprep.subr.bf16.mxu0 0
        %1132 = vmatpush1.bf16.xpose.msra.mxu0 0
        %1133 = vmatprep.subr.bf16.mxu0 0
        %1134 = vmatpush1.bf16.xpose.msra.mxu0 0
        %1135 = vmatprep.subr.bf16.mxu0 0
        %1136 = vmatpush1.bf16.xpose.msra.mxu0 0
        %1137 = vmatprep.subr.bf16.mxu0 0
        %1138 = vmatpush1.bf16.xpose.msra.mxu0 0
        %1139 = vmatprep.mubr.bf16.mxu0 0
        %1140 = vmatmul.mubr.bf16.gmra.mrb[0].mxu0 %v1102
        %v1141 = vpop.f32.mrb[0].mxu0
        %v1142 = vadd.f32 0.0, %v1141
        %v1143 = vpop.f32.mrb[0].mxu0
        %v1144 = vpop.f32.mrb[0].mxu0
        %v1145 = vpop.f32.mrb[0].mxu0
        %1146 = vdwg.mxu0
        %v1147 = vmul.f32 %v1142, 0.35355338
        %v1148 = vsel %vm1031, %v1147, -inf
        %1149 = vmax.xlane.f32.xlu0 %v1148
        %v1150 = vpop.xlane.xlu0 %1149
        %v1151 = vsub.f32 %v1147, %v1150
        %v1152 = vmul.f32 %v1151, 1.442695
        %v1153 = vpow.pop %v1152
        %v1154 = vsel %vm1031, %v1153, 0.0
        %1155 = vadd.xlane.f32.xlu0 %v1154
        %v1156 = vpop.xlane.xlu0 %1155
        %v1157 = vrcp.pop %v1156
        %v1158 = vmul.f32 %v1153, %v1157
        %v1159 = vpack.c.bf16 %v1158, %v1158
        %1160 = vrot.lane.b32.xlu0 %v979, 56
        %v1161 = vpop.permute.xlu0 %1160
        %v1163 = vsel %vm1046, %v1159, 0
        %v1166 = vand.u32 %v1161, %v1053
        %1168 = vmatprep.subr.bf16.mxu0 0
        %1169 = vmatpush1.bf16.msra.mxu0 %v1166
        %1170 = vmatprep.subr.bf16.mxu0 0
        %1171 = vmatpush1.bf16.msra.mxu0 0
        %1172 = vmatprep.subr.bf16.mxu0 0
        %1173 = vmatpush1.bf16.msra.mxu0 0
        %1174 = vmatprep.subr.bf16.mxu0 0
        %1175 = vmatpush1.bf16.msra.mxu0 0
        %1176 = vmatprep.subr.bf16.mxu0 0
        %1177 = vmatpush1.bf16.msra.mxu0 0
        %1178 = vmatprep.subr.bf16.mxu0 0
        %1179 = vmatpush1.bf16.msra.mxu0 0
        %1180 = vmatprep.subr.bf16.mxu0 0
        %1181 = vmatpush1.bf16.msra.mxu0 0
        %1182 = vmatprep.subr.bf16.mxu0 0
        %1183 = vmatpush1.bf16.msra.mxu0 0
        %1184 = vmatprep.subr.bf16.mxu0 0
        %1185 = vmatpush1.bf16.msra.mxu0 0
        %1186 = vmatprep.subr.bf16.mxu0 0
        %1187 = vmatpush1.bf16.msra.mxu0 0
        %1188 = vmatprep.subr.bf16.mxu0 0
        %1189 = vmatpush1.bf16.msra.mxu0 0
        %1190 = vmatprep.subr.bf16.mxu0 0
        %1191 = vmatpush1.bf16.msra.mxu0 0
        %1192 = vmatprep.subr.bf16.mxu0 0
        %1193 = vmatpush1.bf16.msra.mxu0 0
        %1194 = vmatprep.subr.bf16.mxu0 0
        %1195 = vmatpush1.bf16.msra.mxu0 0
        %1196 = vmatprep.subr.bf16.mxu0 0
        %1197 = vmatpush1.bf16.msra.mxu0 0
        %1198 = vmatprep.subr.bf16.mxu0 0
        %1199 = vmatpush1.bf16.msra.mxu0 0
        %1200 = vmatprep.mubr.bf16.mxu0 0
        %1201 = vmatmul.mubr.bf16.gmra.mrb[0].mxu0 %v1163
        %v1202 = vpop.f32.mrb[0].mxu0
        %v1203 = vadd.f32 0.0, %v1202
        %v1204 = vpop.f32.mrb[0].mxu0
        %v1205 = vpop.f32.mrb[0].mxu0
        %v1206 = vpop.f32.mrb[0].mxu0
        %1207 = vdwg.mxu0
        %1208 = vrot.lane.b32.xlu0 %v979, 112
        %v1209 = vpop.permute.xlu0 %1208
        %1210 = vrot.lane.b32.xlu0 %v979, 80
        %v1211 = vpop.permute.xlu0 %1210
        %v1213 = vsel %vm983, %v1209, 0
        %v1216 = vsel %vm983, %v1211, 0
        %1218 = vmatprep.subr.bf16.mxu0 0
        %1219 = vmatpush1.bf16.xpose.msra.mxu0 %v1216
        %1220 = vmatprep.subr.bf16.mxu0 0
        %1221 = vmatpush1.bf16.xpose.msra.mxu0 0
        %1222 = vmatprep.subr.bf16.mxu0 0
        %1223 = vmatpush1.bf16.xpose.msra.mxu0 0
        %1224 = vmatprep.subr.bf16.mxu0 0
        %1225 = vmatpush1.bf16.xpose.msra.mxu0 0
        %1226 = vmatprep.subr.bf16.mxu0 0
        %1227 = vmatpush1.bf16.xpose.msra.mxu0 0
        %1228 = vmatprep.subr.bf16.mxu0 0
        %1229 = vmatpush1.bf16.xpose.msra.mxu0 0
        %1230 = vmatprep.subr.bf16.mxu0 0
        %1231 = vmatpush1.bf16.xpose.msra.mxu0 0
        %1232 = vmatprep.subr.bf16.mxu0 0
        %1233 = vmatpush1.bf16.xpose.msra.mxu0 0
        %1234 = vmatprep.subr.bf16.mxu0 0
        %1235 = vmatpush1.bf16.xpose.msra.mxu0 0
        %1236 = vmatprep.subr.bf16.mxu0 0
        %1237 = vmatpush1.bf16.xpose.msra.mxu0 0
        %1238 = vmatprep.subr.bf16.mxu0 0
        %1239 = vmatpush1.bf16.xpose.msra.mxu0 0
        %1240 = vmatprep.subr.bf16.mxu0 0
        %1241 = vmatpush1.bf16.xpose.msra.mxu0 0
        %1242 = vmatprep.subr.bf16.mxu0 0
        %1243 = vmatpush1.bf16.xpose.msra.mxu0 0
        %1244 = vmatprep.subr.bf16.mxu0 0
        %1245 = vmatpush1.bf16.xpose.msra.mxu0 0
        %1246 = vmatprep.subr.bf16.mxu0 0
        %1247 = vmatpush1.bf16.xpose.msra.mxu0 0
        %1248 = vmatprep.subr.bf16.mxu0 0
        %1249 = vmatpush1.bf16.xpose.msra.mxu0 0
        %1250 = vmatprep.mubr.bf16.mxu0 0
        %1251 = vmatmul.mubr.bf16.gmra.mrb[0].mxu0 %v1213
        %v1252 = vpop.f32.mrb[0].mxu0
        %v1253 = vadd.f32 0.0, %v1252
        %v1254 = vpop.f32.mrb[0].mxu0
        %v1255 = vpop.f32.mrb[0].mxu0
        %v1256 = vpop.f32.mrb[0].mxu0
        %1257 = vdwg.mxu0
        %v1258 = vmul.f32 %v1253, 0.35355338
        %v1259 = vsel %vm1031, %v1258, -inf
        %1260 = vmax.xlane.f32.xlu0 %v1259
        %v1261 = vpop.xlane.xlu0 %1260
        %v1262 = vsub.f32 %v1258, %v1261
        %v1263 = vmul.f32 %v1262, 1.442695
        %v1264 = vpow.pop %v1263
        %v1265 = vsel %vm1031, %v1264, 0.0
        %1266 = vadd.xlane.f32.xlu0 %v1265
        %v1267 = vpop.xlane.xlu0 %1266
        %v1268 = vrcp.pop %v1267
        %v1269 = vmul.f32 %v1264, %v1268
        %v1270 = vpack.c.bf16 %v1269, %v1269
        %1271 = vrot.lane.b32.xlu0 %v979, 48
        %v1272 = vpop.permute.xlu0 %1271
        %v1274 = vsel %vm1046, %v1270, 0
        %v1277 = vand.u32 %v1272, %v1053
        %1279 = vmatprep.subr.bf16.mxu0 0
        %1280 = vmatpush1.bf16.msra.mxu0 %v1277
        %1281 = vmatprep.subr.bf16.mxu0 0
        %1282 = vmatpush1.bf16.msra.mxu0 0
        %1283 = vmatprep.subr.bf16.mxu0 0
        %1284 = vmatpush1.bf16.msra.mxu0 0
        %1285 = vmatprep.subr.bf16.mxu0 0
        %1286 = vmatpush1.bf16.msra.mxu0 0
        %1287 = vmatprep.subr.bf16.mxu0 0
        %1288 = vmatpush1.bf16.msra.mxu0 0
        %1289 = vmatprep.subr.bf16.mxu0 0
        %1290 = vmatpush1.bf16.msra.mxu0 0
        %1291 = vmatprep.subr.bf16.mxu0 0
        %1292 = vmatpush1.bf16.msra.mxu0 0
        %1293 = vmatprep.subr.bf16.mxu0 0
        %1294 = vmatpush1.bf16.msra.mxu0 0
        %1295 = vmatprep.subr.bf16.mxu0 0
        %1296 = vmatpush1.bf16.msra.mxu0 0
        %1297 = vmatprep.subr.bf16.mxu0 0
        %1298 = vmatpush1.bf16.msra.mxu0 0
        %1299 = vmatprep.subr.bf16.mxu0 0
        %1300 = vmatpush1.bf16.msra.mxu0 0
        %1301 = vmatprep.subr.bf16.mxu0 0
        %1302 = vmatpush1.bf16.msra.mxu0 0
        %1303 = vmatprep.subr.bf16.mxu0 0
        %1304 = vmatpush1.bf16.msra.mxu0 0
        %1305 = vmatprep.subr.bf16.mxu0 0
        %1306 = vmatpush1.bf16.msra.mxu0 0
        %1307 = vmatprep.subr.bf16.mxu0 0
        %1308 = vmatpush1.bf16.msra.mxu0 0
        %1309 = vmatprep.subr.bf16.mxu0 0
        %1310 = vmatpush1.bf16.msra.mxu0 0
        %1311 = vmatprep.mubr.bf16.mxu0 0
        %1312 = vmatmul.mubr.bf16.gmra.mrb[0].mxu0 %v1274
        %v1313 = vpop.f32.mrb[0].mxu0
        %v1314 = vadd.f32 0.0, %v1313
        %v1315 = vpop.f32.mrb[0].mxu0
        %v1316 = vpop.f32.mrb[0].mxu0
        %v1317 = vpop.f32.mrb[0].mxu0
        %1318 = vdwg.mxu0
        %1319 = vrot.lane.b32.xlu0 %v979, 104
        %v1320 = vpop.permute.xlu0 %1319
        %1321 = vrot.lane.b32.xlu0 %v979, 72
        %v1322 = vpop.permute.xlu0 %1321
        %v1324 = vsel %vm983, %v1320, 0
        %v1327 = vsel %vm983, %v1322, 0
        %1329 = vmatprep.subr.bf16.mxu0 0
        %1330 = vmatpush1.bf16.xpose.msra.mxu0 %v1327
        %1331 = vmatprep.subr.bf16.mxu0 0
        %1332 = vmatpush1.bf16.xpose.msra.mxu0 0
        %1333 = vmatprep.subr.bf16.mxu0 0
        %1334 = vmatpush1.bf16.xpose.msra.mxu0 0
        %1335 = vmatprep.subr.bf16.mxu0 0
        %1336 = vmatpush1.bf16.xpose.msra.mxu0 0
        %1337 = vmatprep.subr.bf16.mxu0 0
        %1338 = vmatpush1.bf16.xpose.msra.mxu0 0
        %1339 = vmatprep.subr.bf16.mxu0 0
        %1340 = vmatpush1.bf16.xpose.msra.mxu0 0
        %1341 = vmatprep.subr.bf16.mxu0 0
        %1342 = vmatpush1.bf16.xpose.msra.mxu0 0
        %1343 = vmatprep.subr.bf16.mxu0 0
        %1344 = vmatpush1.bf16.xpose.msra.mxu0 0
        %1345 = vmatprep.subr.bf16.mxu0 0
        %1346 = vmatpush1.bf16.xpose.msra.mxu0 0
        %1347 = vmatprep.subr.bf16.mxu0 0
        %1348 = vmatpush1.bf16.xpose.msra.mxu0 0
        %1349 = vmatprep.subr.bf16.mxu0 0
        %1350 = vmatpush1.bf16.xpose.msra.mxu0 0
        %1351 = vmatprep.subr.bf16.mxu0 0
        %1352 = vmatpush1.bf16.xpose.msra.mxu0 0
        %1353 = vmatprep.subr.bf16.mxu0 0
        %1354 = vmatpush1.bf16.xpose.msra.mxu0 0
        %1355 = vmatprep.subr.bf16.mxu0 0
        %1356 = vmatpush1.bf16.xpose.msra.mxu0 0
        %1357 = vmatprep.subr.bf16.mxu0 0
        %1358 = vmatpush1.bf16.xpose.msra.mxu0 0
        %1359 = vmatprep.subr.bf16.mxu0 0
        %1360 = vmatpush1.bf16.xpose.msra.mxu0 0
        %1361 = vmatprep.mubr.bf16.mxu0 0
        %1362 = vmatmul.mubr.bf16.gmra.mrb[0].mxu0 %v1324
        %v1363 = vpop.f32.mrb[0].mxu0
        %v1364 = vadd.f32 0.0, %v1363
        %v1365 = vpop.f32.mrb[0].mxu0
        %v1366 = vpop.f32.mrb[0].mxu0
        %v1367 = vpop.f32.mrb[0].mxu0
        %1368 = vdwg.mxu0
        %v1369 = vmul.f32 %v1364, 0.35355338
        %v1370 = vsel %vm1031, %v1369, -inf
        %1371 = vmax.xlane.f32.xlu0 %v1370
        %v1372 = vpop.xlane.xlu0 %1371
        %v1373 = vsub.f32 %v1369, %v1372
        %v1374 = vmul.f32 %v1373, 1.442695
        %v1375 = vpow.pop %v1374
        %v1376 = vsel %vm1031, %v1375, 0.0
        %1377 = vadd.xlane.f32.xlu0 %v1376
        %v1378 = vpop.xlane.xlu0 %1377
        %v1379 = vrcp.pop %v1378
        %v1380 = vmul.f32 %v1375, %v1379
        %v1381 = vpack.c.bf16 %v1380, %v1380
        %1382 = vrot.lane.b32.xlu0 %v979, 40
        %v1383 = vpop.permute.xlu0 %1382
        %v1385 = vsel %vm1046, %v1381, 0
        %v1388 = vand.u32 %v1383, %v1053
        %1390 = vmatprep.subr.bf16.mxu0 0
        %1391 = vmatpush1.bf16.msra.mxu0 %v1388
        %1392 = vmatprep.subr.bf16.mxu0 0
        %1393 = vmatpush1.bf16.msra.mxu0 0
        %1394 = vmatprep.subr.bf16.mxu0 0
        %1395 = vmatpush1.bf16.msra.mxu0 0
        %1396 = vmatprep.subr.bf16.mxu0 0
        %1397 = vmatpush1.bf16.msra.mxu0 0
        %1398 = vmatprep.subr.bf16.mxu0 0
        %1399 = vmatpush1.bf16.msra.mxu0 0
        %1400 = vmatprep.subr.bf16.mxu0 0
        %1401 = vmatpush1.bf16.msra.mxu0 0
        %1402 = vmatprep.subr.bf16.mxu0 0
        %1403 = vmatpush1.bf16.msra.mxu0 0
        %1404 = vmatprep.subr.bf16.mxu0 0
        %1405 = vmatpush1.bf16.msra.mxu0 0
        %1406 = vmatprep.subr.bf16.mxu0 0
        %1407 = vmatpush1.bf16.msra.mxu0 0
        %1408 = vmatprep.subr.bf16.mxu0 0
        %1409 = vmatpush1.bf16.msra.mxu0 0
        %1410 = vmatprep.subr.bf16.mxu0 0
        %1411 = vmatpush1.bf16.msra.mxu0 0
        %1412 = vmatprep.subr.bf16.mxu0 0
        %1413 = vmatpush1.bf16.msra.mxu0 0
        %1414 = vmatprep.subr.bf16.mxu0 0
        %1415 = vmatpush1.bf16.msra.mxu0 0
        %1416 = vmatprep.subr.bf16.mxu0 0
        %1417 = vmatpush1.bf16.msra.mxu0 0
        %1418 = vmatprep.subr.bf16.mxu0 0
        %1419 = vmatpush1.bf16.msra.mxu0 0
        %1420 = vmatprep.subr.bf16.mxu0 0
        %1421 = vmatpush1.bf16.msra.mxu0 0
        %1422 = vmatprep.mubr.bf16.mxu0 0
        %1423 = vmatmul.mubr.bf16.gmra.mrb[0].mxu0 %v1385
        %v1424 = vpop.f32.mrb[0].mxu0
        %v1425 = vadd.f32 0.0, %v1424
        %v1426 = vpop.f32.mrb[0].mxu0
        %v1427 = vpop.f32.mrb[0].mxu0
        %v1428 = vpop.f32.mrb[0].mxu0
        %1429 = vdwg.mxu0
        %1431 = vrot.lane.b32.xlu0 %v1203, 8
        %v1432 = vpop.permute.xlu0 %1431
        %1435 = vrot.lane.b32.xlu0 %v1314, 16
        %v1436 = vpop.permute.xlu0 %1435
        %1439 = vrot.lane.b32.xlu0 %v1425, 24
        %v1440 = vpop.permute.xlu0 %1439
        %v1442 = vsel %vm983, %v1092, %v1432
        %vm1443 = vcmask 130048
        %v1444 = vsel %vm1443, %v1442, %v1436
        %vm1445 = vcmask 195584
        %v1446 = vsel %vm1445, %v1444, %v1440
        %v1447 = vld [vmem:[%s8] sm:$0xf]
        %v1448 = vld [vmem:[%s8 + $0x4] sm:$0xf]
        %v1449 = vld [vmem:[%s8 + $0x8] sm:$0xf]
        %v1450 = vld [vmem:[%s8 + $0xc] sm:$0xf]
        %v1451 = vld [vmem:[%s9] sm:$0x1]
        %v1452 = vpack.c.bf16 %v1446, %v1446
        %v1454 = vlaneseq
        %v1455 = vshrl.u32 %v1454, 7
        %v1456 = vsub.s32 0, %v1455
        %v1457 = vrot.slane %v1451, %v1456
        %v1463 = vunpack.c.l.b16 %v1447
        %v1464 = vunpack.c.l.b16 %v1448
        %v1465 = vunpack.c.l.b16 %v1449
        %v1466 = vunpack.c.l.b16 %v1450
        %v1467 = vpack.c.b16 %v1464, %v1463
        %v1468 = vpack.c.b16 %v1466, %v1465
        %v1472 = vsel %vm935, %v1452, 0
        %1474 = vmatprep.subr.bf16.mxu0 0
        %1475 = vmatpush1.bf16.msra.mxu0 %v1467
        %1476 = vmatprep.subr.bf16.mxu0 0
        %1477 = vmatpush1.bf16.msra.mxu0 %v1468
        %1478 = vmatprep.subr.bf16.mxu0 0
        %1479 = vmatpush1.bf16.msra.mxu0 0
        %1480 = vmatprep.subr.bf16.mxu0 0
        %1481 = vmatpush1.bf16.msra.mxu0 0
        %1482 = vmatprep.subr.bf16.mxu0 0
        %1483 = vmatpush1.bf16.msra.mxu0 0
        %1484 = vmatprep.subr.bf16.mxu0 0
        %1485 = vmatpush1.bf16.msra.mxu0 0
        %1486 = vmatprep.subr.bf16.mxu0 0
        %1487 = vmatpush1.bf16.msra.mxu0 0
        %1488 = vmatprep.subr.bf16.mxu0 0
        %1489 = vmatpush1.bf16.msra.mxu0 0
        %1490 = vmatprep.subr.bf16.mxu0 0
        %1491 = vmatpush1.bf16.msra.mxu0 0
        %1492 = vmatprep.subr.bf16.mxu0 0
        %1493 = vmatpush1.bf16.msra.mxu0 0
        %1494 = vmatprep.subr.bf16.mxu0 0
        %1495 = vmatpush1.bf16.msra.mxu0 0
        %1496 = vmatprep.subr.bf16.mxu0 0
        %1497 = vmatpush1.bf16.msra.mxu0 0
        %1498 = vmatprep.subr.bf16.mxu0 0
        %1499 = vmatpush1.bf16.msra.mxu0 0
        %1500 = vmatprep.subr.bf16.mxu0 0
        %1501 = vmatpush1.bf16.msra.mxu0 0
        %1502 = vmatprep.subr.bf16.mxu0 0
        %1503 = vmatpush1.bf16.msra.mxu0 0
        %1504 = vmatprep.subr.bf16.mxu0 0
        %1505 = vmatpush1.bf16.msra.mxu0 0
        %1506 = vmatprep.mubr.bf16.mxu0 0
        %1507 = vmatmul.mubr.bf16.gmra.mrb[0].mxu0 %v1472
        %v1508 = vpop.f32.mrb[0].mxu0
        %v1509 = vadd.f32 %v1457, %v1508
        %v1510 = vpop.f32.mrb[0].mxu0
        %v1511 = vpop.f32.mrb[0].mxu0
        %v1512 = vpop.f32.mrb[0].mxu0
        %1513 = vdwg.mxu0
        %v1514 = vadd.f32 %v879, %v1509
        %v1515 = vld [vmem:[%s10] sm:$0x1]
        %v1516 = vld [vmem:[%s11] sm:$0x1]
        %v1517 = vsel %vm882, %v1514, 0.0
        %1518 = vadd.xlane.f32.xlu0 %v1517
        %v1519 = vpop.xlane.xlu0 %1518
        %v1520 = vmul.f32 %v1519, %v886
        %v1521 = vsub.f32 %v1514, %v1520
        %v1522 = vmul.f32 %v1521, %v1521
        %v1523 = vsel %vm882, %v1522, 0.0
        %1524 = vadd.xlane.f32.xlu0 %v1523
        %v1525 = vpop.xlane.xlu0 %1524
        %v1526 = vmul.f32 %v1525, %v886
        %v1527 = vadd.f32 %v1526, 1e-06
        %v1528 = vrsqrt.pop %v1527
        %v1529 = vmul.f32 %v1521, %v1528
        %v1531 = vlaneseq
        %v1532 = vshrl.u32 %v1531, 7
        %v1533 = vsub.s32 0, %v1532
        %v1534 = vrot.slane %v1515, %v1533
        %v1536 = vmul.f32 %v1529, %v1534
        %v1538 = vlaneseq
        %v1539 = vshrl.u32 %v1538, 7
        %v1540 = vsub.s32 0, %v1539
        %v1541 = vrot.slane %v1516, %v1540
        %v1543 = vadd.f32 %v1536, %v1541
        %v1544 = vld [vmem:[%s12] sm:$0xf]
        %v1545 = vld [vmem:[%s12 + $0x4] sm:$0xf]
        %v1546 = vld [vmem:[%s12 + $0x8] sm:$0xf]
        %v1547 = vld [vmem:[%s12 + $0xc] sm:$0xf]
        %v1548 = vld [vmem:[%s13] sm:$0x1]
        %v1549 = vpack.c.bf16 %v1543, %v1543
        %v1551 = vlaneseq
        %v1552 = vshrl.u32 %v1551, 7
        %v1553 = vsub.s32 0, %v1552
        %v1554 = vrot.slane %v1548, %v1553
        %v1560 = vunpack.c.l.b16 %v1544
        %v1561 = vunpack.c.l.b16 %v1545
        %v1562 = vunpack.c.l.b16 %v1546
        %v1563 = vunpack.c.l.b16 %v1547
        %v1564 = vpack.c.b16 %v1561, %v1560
        %v1565 = vpack.c.b16 %v1563, %v1562
        %v1569 = vsel %vm935, %v1549, 0
        %1571 = vmatprep.subr.bf16.mxu0 0
        %1572 = vmatpush1.bf16.msra.mxu0 %v1564
        %1573 = vmatprep.subr.bf16.mxu0 0
        %1574 = vmatpush1.bf16.msra.mxu0 %v1565
        %1575 = vmatprep.subr.bf16.mxu0 0
        %1576 = vmatpush1.bf16.msra.mxu0 0
        %1577 = vmatprep.subr.bf16.mxu0 0
        %1578 = vmatpush1.bf16.msra.mxu0 0
        %1579 = vmatprep.subr.bf16.mxu0 0
        %1580 = vmatpush1.bf16.msra.mxu0 0
        %1581 = vmatprep.subr.bf16.mxu0 0
        %1582 = vmatpush1.bf16.msra.mxu0 0
        %1583 = vmatprep.subr.bf16.mxu0 0
        %1584 = vmatpush1.bf16.msra.mxu0 0
        %1585 = vmatprep.subr.bf16.mxu0 0
        %1586 = vmatpush1.bf16.msra.mxu0 0
        %1587 = vmatprep.subr.bf16.mxu0 0
        %1588 = vmatpush1.bf16.msra.mxu0 0
        %1589 = vmatprep.subr.bf16.mxu0 0
        %1590 = vmatpush1.bf16.msra.mxu0 0
        %1591 = vmatprep.subr.bf16.mxu0 0
        %1592 = vmatpush1.bf16.msra.mxu0 0
        %1593 = vmatprep.subr.bf16.mxu0 0
        %1594 = vmatpush1.bf16.msra.mxu0 0
        %1595 = vmatprep.subr.bf16.mxu0 0
        %1596 = vmatpush1.bf16.msra.mxu0 0
        %1597 = vmatprep.subr.bf16.mxu0 0
        %1598 = vmatpush1.bf16.msra.mxu0 0
        %1599 = vmatprep.subr.bf16.mxu0 0
        %1600 = vmatpush1.bf16.msra.mxu0 0
        %1601 = vmatprep.subr.bf16.mxu0 0
        %1602 = vmatpush1.bf16.msra.mxu0 0
        %1603 = vmatprep.mubr.bf16.mxu0 0
        %1604 = vmatmul.mubr.bf16.gmra.mrb[0].mxu0 %v1569
        %v1605 = vpop.f32.mrb[0].mxu0
        %v1606 = vadd.f32 %v1554, %v1605
        %v1607 = vpop.f32.mrb[0].mxu0
        %v1608 = vpop.f32.mrb[0].mxu0
        %v1609 = vpop.f32.mrb[0].mxu0
        %1610 = vdwg.mxu0
        %v1611 = vmul.f32 %v1606, 0.5
        %v1612 = vmul.f32 %v1606, 0.70710677
        %vm1613 = vcmp.ge.f32.partialorder %v1612, 0.0
        %v1614 = vsel %vm1613, 1.0, -1.0
        %v1615 = vand.u32 2147483647, %v1612
        %v1616 = vmul.f32 %v1615, 0.3275911
        %v1617 = vadd.f32 %v1616, 1.0
        %v1618 = vrcp.pop %v1617
        %v1619 = vmul.f32 1.0, %v1618
        %v1620 = vmul.f32 %v1619, 1.0614054
        %v1621 = vadd.f32 %v1620, -1.4531521
        %v1622 = vmul.f32 %v1619, %v1621
        %v1623 = vadd.f32 %v1622, 1.4214138
        %v1624 = vmul.f32 %v1619, %v1623
        %v1625 = vadd.f32 %v1624, -0.28449672
        %v1626 = vmul.f32 %v1619, %v1625
        %v1627 = vadd.f32 %v1626, 0.2548296
        %v1628 = vmul.f32 %v1619, %v1627
        %v1629 = vsub.f32 0.0, %v1615
        %v1630 = vmul.f32 %v1629, %v1615
        %v1631 = vmul.f32 %v1630, 1.442695
        %v1632 = vpow.pop %v1631
        %v1633 = vmul.f32 %v1628, %v1632
        %v1634 = vsub.f32 1.0, %v1633
        %v1635 = vmul.f32 %v1614, %v1634
        %v1636 = vadd.f32 %v1635, 1.0
        %v1637 = vmul.f32 %v1611, %v1636
        %v1638 = vld [vmem:[%s14] sm:$0xf]
        %v1639 = vld [vmem:[%s14 + $0x4] sm:$0xf]
        %v1640 = vld [vmem:[%s14 + $0x8] sm:$0xf]
        %v1641 = vld [vmem:[%s14 + $0xc] sm:$0xf]
        %v1642 = vld [vmem:[%s14 + $0x10] sm:$0xf]
        %v1643 = vld [vmem:[%s14 + $0x14] sm:$0xf]
        %v1644 = vld [vmem:[%s14 + $0x18] sm:$0xf]
        %v1645 = vld [vmem:[%s14 + $0x1c] sm:$0xf]
        %v1646 = vld [vmem:[%s15] sm:$0x1]
        %v1647 = vpack.c.bf16 %v1637, %v1637
        %v1649 = vlaneseq
        %v1650 = vshrl.u32 %v1649, 7
        %v1651 = vsub.s32 0, %v1650
        %v1652 = vrot.slane %v1646, %v1651
        %v1662 = vunpack.c.l.b16 %v1638
        %v1663 = vunpack.c.l.b16 %v1639
        %v1664 = vunpack.c.l.b16 %v1640
        %v1665 = vunpack.c.l.b16 %v1641
        %v1666 = vunpack.c.l.b16 %v1642
        %v1667 = vunpack.c.l.b16 %v1643
        %v1668 = vunpack.c.l.b16 %v1644
        %v1669 = vunpack.c.l.b16 %v1645
        %v1670 = vpack.c.b16 %v1663, %v1662
        %v1671 = vpack.c.b16 %v1665, %v1664
        %v1672 = vpack.c.b16 %v1667, %v1666
        %v1673 = vpack.c.b16 %v1669, %v1668
        %v1679 = vsel %vm829, %v1647, 0
        %1681 = vmatprep.subr.bf16.mxu0 0
        %1682 = vmatpush1.bf16.msra.mxu0 %v1670
        %1683 = vmatprep.subr.bf16.mxu0 0
        %1684 = vmatpush1.bf16.msra.mxu0 %v1671
        %1685 = vmatprep.subr.bf16.mxu0 0
        %1686 = vmatpush1.bf16.msra.mxu0 %v1672
        %1687 = vmatprep.subr.bf16.mxu0 0
        %1688 = vmatpush1.bf16.msra.mxu0 %v1673
        %1689 = vmatprep.subr.bf16.mxu0 0
        %1690 = vmatpush1.bf16.msra.mxu0 0
        %1691 = vmatprep.subr.bf16.mxu0 0
        %1692 = vmatpush1.bf16.msra.mxu0 0
        %1693 = vmatprep.subr.bf16.mxu0 0
        %1694 = vmatpush1.bf16.msra.mxu0 0
        %1695 = vmatprep.subr.bf16.mxu0 0
        %1696 = vmatpush1.bf16.msra.mxu0 0
        %1697 = vmatprep.subr.bf16.mxu0 0
        %1698 = vmatpush1.bf16.msra.mxu0 0
        %1699 = vmatprep.subr.bf16.mxu0 0
        %1700 = vmatpush1.bf16.msra.mxu0 0
        %1701 = vmatprep.subr.bf16.mxu0 0
        %1702 = vmatpush1.bf16.msra.mxu0 0
        %1703 = vmatprep.subr.bf16.mxu0 0
        %1704 = vmatpush1.bf16.msra.mxu0 0
        %1705 = vmatprep.subr.bf16.mxu0 0
        %1706 = vmatpush1.bf16.msra.mxu0 0
        %1707 = vmatprep.subr.bf16.mxu0 0
        %1708 = vmatpush1.bf16.msra.mxu0 0
        %1709 = vmatprep.subr.bf16.mxu0 0
        %1710 = vmatpush1.bf16.msra.mxu0 0
        %1711 = vmatprep.subr.bf16.mxu0 0
        %1712 = vmatpush1.bf16.msra.mxu0 0
        %1713 = vmatprep.mubr.bf16.mxu0 0
        %1714 = vmatmul.mubr.bf16.gmra.mrb[0].mxu0 %v1679
        %v1715 = vpop.f32.mrb[0].mxu0
        %v1716 = vadd.f32 %v1652, %v1715
        %v1717 = vpop.f32.mrb[0].mxu0
        %v1718 = vpop.f32.mrb[0].mxu0
        %v1719 = vpop.f32.mrb[0].mxu0
        %1720 = vdwg.mxu0
        %v1721 = vadd.f32 %v1514, %v1716
        %s1722 = scalar_lea.vmem %s4, 1
        %v1723 = vld [vmem:[%s1722] sm:$0x1]
        %s1724 = scalar_lea.vmem %s5, 1
        %v1725 = vld [vmem:[%s1724] sm:$0x1]
        %v1726 = vsel %vm882, %v1721, 0.0
        %1727 = vadd.xlane.f32.xlu0 %v1726
        %v1728 = vpop.xlane.xlu0 %1727
        %v1729 = vmul.f32 %v1728, %v886
        %v1730 = vsub.f32 %v1721, %v1729
        %v1731 = vmul.f32 %v1730, %v1730
        %v1732 = vsel %vm882, %v1731, 0.0
        %1733 = vadd.xlane.f32.xlu0 %v1732
        %v1734 = vpop.xlane.xlu0 %1733
        %v1735 = vmul.f32 %v1734, %v886
        %v1736 = vadd.f32 %v1735, 1e-06
        %v1737 = vrsqrt.pop %v1736
        %v1738 = vmul.f32 %v1730, %v1737
        %v1740 = vlaneseq
        %v1741 = vshrl.u32 %v1740, 7
        %v1742 = vsub.s32 0, %v1741
        %v1743 = vrot.slane %v1723, %v1742
        %v1745 = vmul.f32 %v1738, %v1743
        %v1747 = vlaneseq
        %v1748 = vshrl.u32 %v1747, 7
        %v1749 = vsub.s32 0, %v1748
        %v1750 = vrot.slane %v1725, %v1749
        %v1752 = vadd.f32 %v1745, %v1750
        %s1753 = scalar_lea.vmem %s6, 16
        %v1754 = vld [vmem:[%s1753] sm:$0xf]
        %v1755 = vld [vmem:[%s1753 + $0x4] sm:$0xf]
        %v1756 = vld [vmem:[%s1753 + $0x8] sm:$0xf]
        %v1757 = vld [vmem:[%s1753 + $0xc] sm:$0xf]
        %s1758 = scalar_lea.vmem %s7, 1
        %v1759 = vld [vmem:[%s1758] sm:$0x1]
        %v1760 = vpack.c.bf16 %v1752, %v1752
        %v1762 = vlaneseq
        %v1763 = vshrl.u32 %v1762, 7
        %v1764 = vsub.s32 0, %v1763
        %v1765 = vrot.slane %v1759, %v1764
        %v1771 = vunpack.c.l.b16 %v1754
        %v1772 = vunpack.c.l.b16 %v1755
        %v1773 = vunpack.c.l.b16 %v1756
        %v1774 = vunpack.c.l.b16 %v1757
        %v1775 = vpack.c.b16 %v1772, %v1771
        %v1776 = vpack.c.b16 %v1774, %v1773
        %v1780 = vsel %vm935, %v1760, 0
        %1782 = vmatprep.subr.bf16.mxu0 0
        %1783 = vmatpush1.bf16.msra.mxu0 %v1775
        %1784 = vmatprep.subr.bf16.mxu0 0
        %1785 = vmatpush1.bf16.msra.mxu0 %v1776
        %1786 = vmatprep.subr.bf16.mxu0 0
        %1787 = vmatpush1.bf16.msra.mxu0 0
        %1788 = vmatprep.subr.bf16.mxu0 0
        %1789 = vmatpush1.bf16.msra.mxu0 0
        %1790 = vmatprep.subr.bf16.mxu0 0
        %1791 = vmatpush1.bf16.msra.mxu0 0
        %1792 = vmatprep.subr.bf16.mxu0 0
        %1793 = vmatpush1.bf16.msra.mxu0 0
        %1794 = vmatprep.subr.bf16.mxu0 0
        %1795 = vmatpush1.bf16.msra.mxu0 0
        %1796 = vmatprep.subr.bf16.mxu0 0
        %1797 = vmatpush1.bf16.msra.mxu0 0
        %1798 = vmatprep.subr.bf16.mxu0 0
        %1799 = vmatpush1.bf16.msra.mxu0 0
        %1800 = vmatprep.subr.bf16.mxu0 0
        %1801 = vmatpush1.bf16.msra.mxu0 0
        %1802 = vmatprep.subr.bf16.mxu0 0
        %1803 = vmatpush1.bf16.msra.mxu0 0
        %1804 = vmatprep.subr.bf16.mxu0 0
        %1805 = vmatpush1.bf16.msra.mxu0 0
        %1806 = vmatprep.subr.bf16.mxu0 0
        %1807 = vmatpush1.bf16.msra.mxu0 0
        %1808 = vmatprep.subr.bf16.mxu0 0
        %1809 = vmatpush1.bf16.msra.mxu0 0
        %1810 = vmatprep.subr.bf16.mxu0 0
        %1811 = vmatpush1.bf16.msra.mxu0 0
        %1812 = vmatprep.subr.bf16.mxu0 0
        %1813 = vmatpush1.bf16.msra.mxu0 0
        %1814 = vmatprep.mubr.bf16.mxu0 0
        %1815 = vmatmul.mubr.bf16.gmra.mrb[0].mxu0 %v1780
        %v1816 = vpop.f32.mrb[0].mxu0
        %v1817 = vadd.f32 %v1765, %v1816
        %v1818 = vpop.f32.mrb[0].mxu0
        %v1819 = vpop.f32.mrb[0].mxu0
        %v1820 = vpop.f32.mrb[0].mxu0
        %1821 = vdwg.mxu0
        %v1822 = vpack.c.bf16 %v1817, %v1817
        %1824 = vrot.lane.b32.xlu0 %v1822, 96
        %v1825 = vpop.permute.xlu0 %1824
        %v1827 = vsel %vm983, %v1822, 0
        %v1830 = vsel %vm983, %v1825, 0
        %1832 = vmatprep.subr.bf16.mxu0 0
        %1833 = vmatpush1.bf16.xpose.msra.mxu0 %v1830
        %1834 = vmatprep.subr.bf16.mxu0 0
        %1835 = vmatpush1.bf16.xpose.msra.mxu0 0
        %1836 = vmatprep.subr.bf16.mxu0 0
        %1837 = vmatpush1.bf16.xpose.msra.mxu0 0
        %1838 = vmatprep.subr.bf16.mxu0 0
        %1839 = vmatpush1.bf16.xpose.msra.mxu0 0
        %1840 = vmatprep.subr.bf16.mxu0 0
        %1841 = vmatpush1.bf16.xpose.msra.mxu0 0
        %1842 = vmatprep.subr.bf16.mxu0 0
        %1843 = vmatpush1.bf16.xpose.msra.mxu0 0
        %1844 = vmatprep.subr.bf16.mxu0 0
        %1845 = vmatpush1.bf16.xpose.msra.mxu0 0
        %1846 = vmatprep.subr.bf16.mxu0 0
        %1847 = vmatpush1.bf16.xpose.msra.mxu0 0
        %1848 = vmatprep.subr.bf16.mxu0 0
        %1849 = vmatpush1.bf16.xpose.msra.mxu0 0
        %1850 = vmatprep.subr.bf16.mxu0 0
        %1851 = vmatpush1.bf16.xpose.msra.mxu0 0
        %1852 = vmatprep.subr.bf16.mxu0 0
        %1853 = vmatpush1.bf16.xpose.msra.mxu0 0
        %1854 = vmatprep.subr.bf16.mxu0 0
        %1855 = vmatpush1.bf16.xpose.msra.mxu0 0
        %1856 = vmatprep.subr.bf16.mxu0 0
        %1857 = vmatpush1.bf16.xpose.msra.mxu0 0
        %1858 = vmatprep.subr.bf16.mxu0 0
        %1859 = vmatpush1.bf16.xpose.msra.mxu0 0
        %1860 = vmatprep.subr.bf16.mxu0 0
        %1861 = vmatpush1.bf16.xpose.msra.mxu0 0
        %1862 = vmatprep.subr.bf16.mxu0 0
        %1863 = vmatpush1.bf16.xpose.msra.mxu0 0
        %1864 = vmatprep.mubr.bf16.mxu0 0
        %1865 = vmatmul.mubr.bf16.gmra.mrb[0].mxu0 %v1827
        %v1866 = vpop.f32.mrb[0].mxu0
        %v1867 = vadd.f32 0.0, %v1866
        %v1868 = vpop.f32.mrb[0].mxu0
        %v1869 = vpop.f32.mrb[0].mxu0
        %v1870 = vpop.f32.mrb[0].mxu0
        %1871 = vdwg.mxu0
        %v1872 = vmul.f32 %v1867, 0.35355338
        %v1873 = vsel %vm1031, %v1872, -inf
        %1874 = vmax.xlane.f32.xlu0 %v1873
        %v1875 = vpop.xlane.xlu0 %1874
        %v1876 = vsub.f32 %v1872, %v1875
        %v1877 = vmul.f32 %v1876, 1.442695
        %v1878 = vpow.pop %v1877
        %v1879 = vsel %vm1031, %v1878, 0.0
        %1880 = vadd.xlane.f32.xlu0 %v1879
        %v1881 = vpop.xlane.xlu0 %1880
        %v1882 = vrcp.pop %v1881
        %v1883 = vmul.f32 %v1878, %v1882
        %v1884 = vpack.c.bf16 %v1883, %v1883
        %1885 = vrot.lane.b32.xlu0 %v1822, 64
        %v1886 = vpop.permute.xlu0 %1885
        %v1888 = vsel %vm1046, %v1884, 0
        %v1891 = vand.u32 %v1886, %v1053
        %1893 = vmatprep.subr.bf16.mxu0 0
        %1894 = vmatpush1.bf16.msra.mxu0 %v1891
        %1895 = vmatprep.subr.bf16.mxu0 0
        %1896 = vmatpush1.bf16.msra.mxu0 0
        %1897 = vmatprep.subr.bf16.mxu0 0
        %1898 = vmatpush1.bf16.msra.mxu0 0
        %1899 = vmatprep.subr.bf16.mxu0 0
        %1900 = vmatpush1.bf16.msra.mxu0 0
        %1901 = vmatprep.subr.bf16.mxu0 0
        %1902 = vmatpush1.bf16.msra.mxu0 0
        %1903 = vmatprep.subr.bf16.mxu0 0
        %1904 = vmatpush1.bf16.msra.mxu0 0
        %1905 = vmatprep.subr.bf16.mxu0 0
        %1906 = vmatpush1.bf16.msra.mxu0 0
        %1907 = vmatprep.subr.bf16.mxu0 0
        %1908 = vmatpush1.bf16.msra.mxu0 0
        %1909 = vmatprep.subr.bf16.mxu0 0
        %1910 = vmatpush1.bf16.msra.mxu0 0
        %1911 = vmatprep.subr.bf16.mxu0 0
        %1912 = vmatpush1.bf16.msra.mxu0 0
        %1913 = vmatprep.subr.bf16.mxu0 0
        %1914 = vmatpush1.bf16.msra.mxu0 0
        %1915 = vmatprep.subr.bf16.mxu0 0
        %1916 = vmatpush1.bf16.msra.mxu0 0
        %1917 = vmatprep.subr.bf16.mxu0 0
        %1918 = vmatpush1.bf16.msra.mxu0 0
        %1919 = vmatprep.subr.bf16.mxu0 0
        %1920 = vmatpush1.bf16.msra.mxu0 0
        %1921 = vmatprep.subr.bf16.mxu0 0
        %1922 = vmatpush1.bf16.msra.mxu0 0
        %1923 = vmatprep.subr.bf16.mxu0 0
        %1924 = vmatpush1.bf16.msra.mxu0 0
        %1925 = vmatprep.mubr.bf16.mxu0 0
        %1926 = vmatmul.mubr.bf16.gmra.mrb[0].mxu0 %v1888
        %v1927 = vpop.f32.mrb[0].mxu0
        %v1928 = vadd.f32 0.0, %v1927
        %v1929 = vpop.f32.mrb[0].mxu0
        %v1930 = vpop.f32.mrb[0].mxu0
        %v1931 = vpop.f32.mrb[0].mxu0
        %1932 = vdwg.mxu0
        %1933 = vrot.lane.b32.xlu0 %v1822, 120
        %v1934 = vpop.permute.xlu0 %1933
        %1935 = vrot.lane.b32.xlu0 %v1822, 88
        %v1936 = vpop.permute.xlu0 %1935
        %v1938 = vsel %vm983, %v1934, 0
        %v1941 = vsel %vm983, %v1936, 0
        %1943 = vmatprep.subr.bf16.mxu0 0
        %1944 = vmatpush1.bf16.xpose.msra.mxu0 %v1941
        %1945 = vmatprep.subr.bf16.mxu0 0
        %1946 = vmatpush1.bf16.xpose.msra.mxu0 0
        %1947 = vmatprep.subr.bf16.mxu0 0
        %1948 = vmatpush1.bf16.xpose.msra.mxu0 0
        %1949 = vmatprep.subr.bf16.mxu0 0
        %1950 = vmatpush1.bf16.xpose.msra.mxu0 0
        %1951 = vmatprep.subr.bf16.mxu0 0
        %1952 = vmatpush1.bf16.xpose.msra.mxu0 0
        %1953 = vmatprep.subr.bf16.mxu0 0
        %1954 = vmatpush1.bf16.xpose.msra.mxu0 0
        %1955 = vmatprep.subr.bf16.mxu0 0
        %1956 = vmatpush1.bf16.xpose.msra.mxu0 0
        %1957 = vmatprep.subr.bf16.mxu0 0
        %1958 = vmatpush1.bf16.xpose.msra.mxu0 0
        %1959 = vmatprep.subr.bf16.mxu0 0
        %1960 = vmatpush1.bf16.xpose.msra.mxu0 0
        %1961 = vmatprep.subr.bf16.mxu0 0
        %1962 = vmatpush1.bf16.xpose.msra.mxu0 0
        %1963 = vmatprep.subr.bf16.mxu0 0
        %1964 = vmatpush1.bf16.xpose.msra.mxu0 0
        %1965 = vmatprep.subr.bf16.mxu0 0
        %1966 = vmatpush1.bf16.xpose.msra.mxu0 0
        %1967 = vmatprep.subr.bf16.mxu0 0
        %1968 = vmatpush1.bf16.xpose.msra.mxu0 0
        %1969 = vmatprep.subr.bf16.mxu0 0
        %1970 = vmatpush1.bf16.xpose.msra.mxu0 0
        %1971 = vmatprep.subr.bf16.mxu0 0
        %1972 = vmatpush1.bf16.xpose.msra.mxu0 0
        %1973 = vmatprep.subr.bf16.mxu0 0
        %1974 = vmatpush1.bf16.xpose.msra.mxu0 0
        %1975 = vmatprep.mubr.bf16.mxu0 0
        %1976 = vmatmul.mubr.bf16.gmra.mrb[0].mxu0 %v1938
        %v1977 = vpop.f32.mrb[0].mxu0
        %v1978 = vadd.f32 0.0, %v1977
        %v1979 = vpop.f32.mrb[0].mxu0
        %v1980 = vpop.f32.mrb[0].mxu0
        %v1981 = vpop.f32.mrb[0].mxu0
        %1982 = vdwg.mxu0
        %v1983 = vmul.f32 %v1978, 0.35355338
        %v1984 = vsel %vm1031, %v1983, -inf
        %1985 = vmax.xlane.f32.xlu0 %v1984
        %v1986 = vpop.xlane.xlu0 %1985
        %v1987 = vsub.f32 %v1983, %v1986
        %v1988 = vmul.f32 %v1987, 1.442695
        %v1989 = vpow.pop %v1988
        %v1990 = vsel %vm1031, %v1989, 0.0
        %1991 = vadd.xlane.f32.xlu0 %v1990
        %v1992 = vpop.xlane.xlu0 %1991
        %v1993 = vrcp.pop %v1992
        %v1994 = vmul.f32 %v1989, %v1993
        %v1995 = vpack.c.bf16 %v1994, %v1994
        %1996 = vrot.lane.b32.xlu0 %v1822, 56
        %v1997 = vpop.permute.xlu0 %1996
        %v1999 = vsel %vm1046, %v1995, 0
        %v2002 = vand.u32 %v1997, %v1053
        %2004 = vmatprep.subr.bf16.mxu0 0
        %2005 = vmatpush1.bf16.msra.mxu0 %v2002
        %2006 = vmatprep.subr.bf16.mxu0 0
        %2007 = vmatpush1.bf16.msra.mxu0 0
        %2008 = vmatprep.subr.bf16.mxu0 0
        %2009 = vmatpush1.bf16.msra.mxu0 0
        %2010 = vmatprep.subr.bf16.mxu0 0
        %2011 = vmatpush1.bf16.msra.mxu0 0
        %2012 = vmatprep.subr.bf16.mxu0 0
        %2013 = vmatpush1.bf16.msra.mxu0 0
        %2014 = vmatprep.subr.bf16.mxu0 0
        %2015 = vmatpush1.bf16.msra.mxu0 0
        %2016 = vmatprep.subr.bf16.mxu0 0
        %2017 = vmatpush1.bf16.msra.mxu0 0
        %2018 = vmatprep.subr.bf16.mxu0 0
        %2019 = vmatpush1.bf16.msra.mxu0 0
        %2020 = vmatprep.subr.bf16.mxu0 0
        %2021 = vmatpush1.bf16.msra.mxu0 0
        %2022 = vmatprep.subr.bf16.mxu0 0
        %2023 = vmatpush1.bf16.msra.mxu0 0
        %2024 = vmatprep.subr.bf16.mxu0 0
        %2025 = vmatpush1.bf16.msra.mxu0 0
        %2026 = vmatprep.subr.bf16.mxu0 0
        %2027 = vmatpush1.bf16.msra.mxu0 0
        %2028 = vmatprep.subr.bf16.mxu0 0
        %2029 = vmatpush1.bf16.msra.mxu0 0
        %2030 = vmatprep.subr.bf16.mxu0 0
        %2031 = vmatpush1.bf16.msra.mxu0 0
        %2032 = vmatprep.subr.bf16.mxu0 0
        %2033 = vmatpush1.bf16.msra.mxu0 0
        %2034 = vmatprep.subr.bf16.mxu0 0
        %2035 = vmatpush1.bf16.msra.mxu0 0
        %2036 = vmatprep.mubr.bf16.mxu0 0
        %2037 = vmatmul.mubr.bf16.gmra.mrb[0].mxu0 %v1999
        %v2038 = vpop.f32.mrb[0].mxu0
        %v2039 = vadd.f32 0.0, %v2038
        %v2040 = vpop.f32.mrb[0].mxu0
        %v2041 = vpop.f32.mrb[0].mxu0
        %v2042 = vpop.f32.mrb[0].mxu0
        %2043 = vdwg.mxu0
        %2044 = vrot.lane.b32.xlu0 %v1822, 112
        %v2045 = vpop.permute.xlu0 %2044
        %2046 = vrot.lane.b32.xlu0 %v1822, 80
        %v2047 = vpop.permute.xlu0 %2046
        %v2049 = vsel %vm983, %v2045, 0
        %v2052 = vsel %vm983, %v2047, 0
        %2054 = vmatprep.subr.bf16.mxu0 0
        %2055 = vmatpush1.bf16.xpose.msra.mxu0 %v2052
        %2056 = vmatprep.subr.bf16.mxu0 0
        %2057 = vmatpush1.bf16.xpose.msra.mxu0 0
        %2058 = vmatprep.subr.bf16.mxu0 0
        %2059 = vmatpush1.bf16.xpose.msra.mxu0 0
        %2060 = vmatprep.subr.bf16.mxu0 0
        %2061 = vmatpush1.bf16.xpose.msra.mxu0 0
        %2062 = vmatprep.subr.bf16.mxu0 0
        %2063 = vmatpush1.bf16.xpose.msra.mxu0 0
        %2064 = vmatprep.subr.bf16.mxu0 0
        %2065 = vmatpush1.bf16.xpose.msra.mxu0 0
        %2066 = vmatprep.subr.bf16.mxu0 0
        %2067 = vmatpush1.bf16.xpose.msra.mxu0 0
        %2068 = vmatprep.subr.bf16.mxu0 0
        %2069 = vmatpush1.bf16.xpose.msra.mxu0 0
        %2070 = vmatprep.subr.bf16.mxu0 0
        %2071 = vmatpush1.bf16.xpose.msra.mxu0 0
        %2072 = vmatprep.subr.bf16.mxu0 0
        %2073 = vmatpush1.bf16.xpose.msra.mxu0 0
        %2074 = vmatprep.subr.bf16.mxu0 0
        %2075 = vmatpush1.bf16.xpose.msra.mxu0 0
        %2076 = vmatprep.subr.bf16.mxu0 0
        %2077 = vmatpush1.bf16.xpose.msra.mxu0 0
        %2078 = vmatprep.subr.bf16.mxu0 0
        %2079 = vmatpush1.bf16.xpose.msra.mxu0 0
        %2080 = vmatprep.subr.bf16.mxu0 0
        %2081 = vmatpush1.bf16.xpose.msra.mxu0 0
        %2082 = vmatprep.subr.bf16.mxu0 0
        %2083 = vmatpush1.bf16.xpose.msra.mxu0 0
        %2084 = vmatprep.subr.bf16.mxu0 0
        %2085 = vmatpush1.bf16.xpose.msra.mxu0 0
        %2086 = vmatprep.mubr.bf16.mxu0 0
        %2087 = vmatmul.mubr.bf16.gmra.mrb[0].mxu0 %v2049
        %v2088 = vpop.f32.mrb[0].mxu0
        %v2089 = vadd.f32 0.0, %v2088
        %v2090 = vpop.f32.mrb[0].mxu0
        %v2091 = vpop.f32.mrb[0].mxu0
        %v2092 = vpop.f32.mrb[0].mxu0
        %2093 = vdwg.mxu0
        %v2094 = vmul.f32 %v2089, 0.35355338
        %v2095 = vsel %vm1031, %v2094, -inf
        %2096 = vmax.xlane.f32.xlu0 %v2095
        %v2097 = vpop.xlane.xlu0 %2096
        %v2098 = vsub.f32 %v2094, %v2097
        %v2099 = vmul.f32 %v2098, 1.442695
        %v2100 = vpow.pop %v2099
        %v2101 = vsel %vm1031, %v2100, 0.0
        %2102 = vadd.xlane.f32.xlu0 %v2101
        %v2103 = vpop.xlane.xlu0 %2102
        %v2104 = vrcp.pop %v2103
        %v2105 = vmul.f32 %v2100, %v2104
        %v2106 = vpack.c.bf16 %v2105, %v2105
        %2107 = vrot.lane.b32.xlu0 %v1822, 48
        %v2108 = vpop.permute.xlu0 %2107
        %v2110 = vsel %vm1046, %v2106, 0
        %v2113 = vand.u32 %v2108, %v1053
        %2115 = vmatprep.subr.bf16.mxu0 0
        %2116 = vmatpush1.bf16.msra.mxu0 %v2113
        %2117 = vmatprep.subr.bf16.mxu0 0
        %2118 = vmatpush1.bf16.msra.mxu0 0
        %2119 = vmatprep.subr.bf16.mxu0 0
        %2120 = vmatpush1.bf16.msra.mxu0 0
        %2121 = vmatprep.subr.bf16.mxu0 0
        %2122 = vmatpush1.bf16.msra.mxu0 0
        %2123 = vmatprep.subr.bf16.mxu0 0
        %2124 = vmatpush1.bf16.msra.mxu0 0
        %2125 = vmatprep.subr.bf16.mxu0 0
        %2126 = vmatpush1.bf16.msra.mxu0 0
        %2127 = vmatprep.subr.bf16.mxu0 0
        %2128 = vmatpush1.bf16.msra.mxu0 0
        %2129 = vmatprep.subr.bf16.mxu0 0
        %2130 = vmatpush1.bf16.msra.mxu0 0
        %2131 = vmatprep.subr.bf16.mxu0 0
        %2132 = vmatpush1.bf16.msra.mxu0 0
        %2133 = vmatprep.subr.bf16.mxu0 0
        %2134 = vmatpush1.bf16.msra.mxu0 0
        %2135 = vmatprep.subr.bf16.mxu0 0
        %2136 = vmatpush1.bf16.msra.mxu0 0
        %2137 = vmatprep.subr.bf16.mxu0 0
        %2138 = vmatpush1.bf16.msra.mxu0 0
        %2139 = vmatprep.subr.bf16.mxu0 0
        %2140 = vmatpush1.bf16.msra.mxu0 0
        %2141 = vmatprep.subr.bf16.mxu0 0
        %2142 = vmatpush1.bf16.msra.mxu0 0
        %2143 = vmatprep.subr.bf16.mxu0 0
        %2144 = vmatpush1.bf16.msra.mxu0 0
        %2145 = vmatprep.subr.bf16.mxu0 0
        %2146 = vmatpush1.bf16.msra.mxu0 0
        %2147 = vmatprep.mubr.bf16.mxu0 0
        %2148 = vmatmul.mubr.bf16.gmra.mrb[0].mxu0 %v2110
        %v2149 = vpop.f32.mrb[0].mxu0
        %v2150 = vadd.f32 0.0, %v2149
        %v2151 = vpop.f32.mrb[0].mxu0
        %v2152 = vpop.f32.mrb[0].mxu0
        %v2153 = vpop.f32.mrb[0].mxu0
        %2154 = vdwg.mxu0
        %2155 = vrot.lane.b32.xlu0 %v1822, 104
        %v2156 = vpop.permute.xlu0 %2155
        %2157 = vrot.lane.b32.xlu0 %v1822, 72
        %v2158 = vpop.permute.xlu0 %2157
        %v2160 = vsel %vm983, %v2156, 0
        %v2163 = vsel %vm983, %v2158, 0
        %2165 = vmatprep.subr.bf16.mxu0 0
        %2166 = vmatpush1.bf16.xpose.msra.mxu0 %v2163
        %2167 = vmatprep.subr.bf16.mxu0 0
        %2168 = vmatpush1.bf16.xpose.msra.mxu0 0
        %2169 = vmatprep.subr.bf16.mxu0 0
        %2170 = vmatpush1.bf16.xpose.msra.mxu0 0
        %2171 = vmatprep.subr.bf16.mxu0 0
        %2172 = vmatpush1.bf16.xpose.msra.mxu0 0
        %2173 = vmatprep.subr.bf16.mxu0 0
        %2174 = vmatpush1.bf16.xpose.msra.mxu0 0
        %2175 = vmatprep.subr.bf16.mxu0 0
        %2176 = vmatpush1.bf16.xpose.msra.mxu0 0
        %2177 = vmatprep.subr.bf16.mxu0 0
        %2178 = vmatpush1.bf16.xpose.msra.mxu0 0
        %2179 = vmatprep.subr.bf16.mxu0 0
        %2180 = vmatpush1.bf16.xpose.msra.mxu0 0
        %2181 = vmatprep.subr.bf16.mxu0 0
        %2182 = vmatpush1.bf16.xpose.msra.mxu0 0
        %2183 = vmatprep.subr.bf16.mxu0 0
        %2184 = vmatpush1.bf16.xpose.msra.mxu0 0
        %2185 = vmatprep.subr.bf16.mxu0 0
        %2186 = vmatpush1.bf16.xpose.msra.mxu0 0
        %2187 = vmatprep.subr.bf16.mxu0 0
        %2188 = vmatpush1.bf16.xpose.msra.mxu0 0
        %2189 = vmatprep.subr.bf16.mxu0 0
        %2190 = vmatpush1.bf16.xpose.msra.mxu0 0
        %2191 = vmatprep.subr.bf16.mxu0 0
        %2192 = vmatpush1.bf16.xpose.msra.mxu0 0
        %2193 = vmatprep.subr.bf16.mxu0 0
        %2194 = vmatpush1.bf16.xpose.msra.mxu0 0
        %2195 = vmatprep.subr.bf16.mxu0 0
        %2196 = vmatpush1.bf16.xpose.msra.mxu0 0
        %2197 = vmatprep.mubr.bf16.mxu0 0
        %2198 = vmatmul.mubr.bf16.gmra.mrb[0].mxu0 %v2160
        %v2199 = vpop.f32.mrb[0].mxu0
        %v2200 = vadd.f32 0.0, %v2199
        %v2201 = vpop.f32.mrb[0].mxu0
        %v2202 = vpop.f32.mrb[0].mxu0
        %v2203 = vpop.f32.mrb[0].mxu0
        %2204 = vdwg.mxu0
        %v2205 = vmul.f32 %v2200, 0.35355338
        %v2206 = vsel %vm1031, %v2205, -inf
        %2207 = vmax.xlane.f32.xlu0 %v2206
        %v2208 = vpop.xlane.xlu0 %2207
        %v2209 = vsub.f32 %v2205, %v2208
        %v2210 = vmul.f32 %v2209, 1.442695
        %v2211 = vpow.pop %v2210
        %v2212 = vsel %vm1031, %v2211, 0.0
        %2213 = vadd.xlane.f32.xlu0 %v2212
        %v2214 = vpop.xlane.xlu0 %2213
        %v2215 = vrcp.pop %v2214
        %v2216 = vmul.f32 %v2211, %v2215
        %v2217 = vpack.c.bf16 %v2216, %v2216
        %2218 = vrot.lane.b32.xlu0 %v1822, 40
        %v2219 = vpop.permute.xlu0 %2218
        %v2221 = vsel %vm1046, %v2217, 0
        %v2224 = vand.u32 %v2219, %v1053
        %2226 = vmatprep.subr.bf16.mxu0 0
        %2227 = vmatpush1.bf16.msra.mxu0 %v2224
        %2228 = vmatprep.subr.bf16.mxu0 0
        %2229 = vmatpush1.bf16.msra.mxu0 0
        %2230 = vmatprep.subr.bf16.mxu0 0
        %2231 = vmatpush1.bf16.msra.mxu0 0
        %2232 = vmatprep.subr.bf16.mxu0 0
        %2233 = vmatpush1.bf16.msra.mxu0 0
        %2234 = vmatprep.subr.bf16.mxu0 0
        %2235 = vmatpush1.bf16.msra.mxu0 0
        %2236 = vmatprep.subr.bf16.mxu0 0
        %2237 = vmatpush1.bf16.msra.mxu0 0
        %2238 = vmatprep.subr.bf16.mxu0 0
        %2239 = vmatpush1.bf16.msra.mxu0 0
        %2240 = vmatprep.subr.bf16.mxu0 0
        %2241 = vmatpush1.bf16.msra.mxu0 0
        %2242 = vmatprep.subr.bf16.mxu0 0
        %2243 = vmatpush1.bf16.msra.mxu0 0
        %2244 = vmatprep.subr.bf16.mxu0 0
        %2245 = vmatpush1.bf16.msra.mxu0 0
        %2246 = vmatprep.subr.bf16.mxu0 0
        %2247 = vmatpush1.bf16.msra.mxu0 0
        %2248 = vmatprep.subr.bf16.mxu0 0
        %2249 = vmatpush1.bf16.msra.mxu0 0
        %2250 = vmatprep.subr.bf16.mxu0 0
        %2251 = vmatpush1.bf16.msra.mxu0 0
        %2252 = vmatprep.subr.bf16.mxu0 0
        %2253 = vmatpush1.bf16.msra.mxu0 0
        %2254 = vmatprep.subr.bf16.mxu0 0
        %2255 = vmatpush1.bf16.msra.mxu0 0
        %2256 = vmatprep.subr.bf16.mxu0 0
        %2257 = vmatpush1.bf16.msra.mxu0 0
        %2258 = vmatprep.mubr.bf16.mxu0 0
        %2259 = vmatmul.mubr.bf16.gmra.mrb[0].mxu0 %v2221
        %v2260 = vpop.f32.mrb[0].mxu0
        %v2261 = vadd.f32 0.0, %v2260
        %v2262 = vpop.f32.mrb[0].mxu0
        %v2263 = vpop.f32.mrb[0].mxu0
        %v2264 = vpop.f32.mrb[0].mxu0
        %2265 = vdwg.mxu0
        %2267 = vrot.lane.b32.xlu0 %v2039, 8
        %v2268 = vpop.permute.xlu0 %2267
        %2271 = vrot.lane.b32.xlu0 %v2150, 16
        %v2272 = vpop.permute.xlu0 %2271
        %2275 = vrot.lane.b32.xlu0 %v2261, 24
        %v2276 = vpop.permute.xlu0 %2275
        %v2278 = vsel %vm983, %v1928, %v2268
        %v2279 = vsel %vm1443, %v2278, %v2272
        %v2280 = vsel %vm1445, %v2279, %v2276
        %s2281 = scalar_lea.vmem %s8, 16
        %v2282 = vld [vmem:[%s2281] sm:$0xf]
        %v2283 = vld [vmem:[%s2281 + $0x4] sm:$0xf]
        %v2284 = vld [vmem:[%s2281 + $0x8] sm:$0xf]
        %v2285 = vld [vmem:[%s2281 + $0xc] sm:$0xf]
        %s2286 = scalar_lea.vmem %s9, 1
        %v2287 = vld [vmem:[%s2286] sm:$0x1]
        %v2288 = vpack.c.bf16 %v2280, %v2280
        %v2290 = vlaneseq
        %v2291 = vshrl.u32 %v2290, 7
        %v2292 = vsub.s32 0, %v2291
        %v2293 = vrot.slane %v2287, %v2292
        %v2299 = vunpack.c.l.b16 %v2282
        %v2300 = vunpack.c.l.b16 %v2283
        %v2301 = vunpack.c.l.b16 %v2284
        %v2302 = vunpack.c.l.b16 %v2285
        %v2303 = vpack.c.b16 %v2300, %v2299
        %v2304 = vpack.c.b16 %v2302, %v2301
        %v2308 = vsel %vm935, %v2288, 0
        %2310 = vmatprep.subr.bf16.mxu0 0
        %2311 = vmatpush1.bf16.msra.mxu0 %v2303
        %2312 = vmatprep.subr.bf16.mxu0 0
        %2313 = vmatpush1.bf16.msra.mxu0 %v2304
        %2314 = vmatprep.subr.bf16.mxu0 0
        %2315 = vmatpush1.bf16.msra.mxu0 0
        %2316 = vmatprep.subr.bf16.mxu0 0
        %2317 = vmatpush1.bf16.msra.mxu0 0
        %2318 = vmatprep.subr.bf16.mxu0 0
        %2319 = vmatpush1.bf16.msra.mxu0 0
        %2320 = vmatprep.subr.bf16.mxu0 0
        %2321 = vmatpush1.bf16.msra.mxu0 0
        %2322 = vmatprep.subr.bf16.mxu0 0
        %2323 = vmatpush1.bf16.msra.mxu0 0
        %2324 = vmatprep.subr.bf16.mxu0 0
        %2325 = vmatpush1.bf16.msra.mxu0 0
        %2326 = vmatprep.subr.bf16.mxu0 0
        %2327 = vmatpush1.bf16.msra.mxu0 0
        %2328 = vmatprep.subr.bf16.mxu0 0
        %2329 = vmatpush1.bf16.msra.mxu0 0
        %2330 = vmatprep.subr.bf16.mxu0 0
        %2331 = vmatpush1.bf16.msra.mxu0 0
        %2332 = vmatprep.subr.bf16.mxu0 0
        %2333 = vmatpush1.bf16.msra.mxu0 0
        %2334 = vmatprep.subr.bf16.mxu0 0
        %2335 = vmatpush1.bf16.msra.mxu0 0
        %2336 = vmatprep.subr.bf16.mxu0 0
        %2337 = vmatpush1.bf16.msra.mxu0 0
        %2338 = vmatprep.subr.bf16.mxu0 0
        %2339 = vmatpush1.bf16.msra.mxu0 0
        %2340 = vmatprep.subr.bf16.mxu0 0
        %2341 = vmatpush1.bf16.msra.mxu0 0
        %2342 = vmatprep.mubr.bf16.mxu0 0
        %2343 = vmatmul.mubr.bf16.gmra.mrb[0].mxu0 %v2308
        %v2344 = vpop.f32.mrb[0].mxu0
        %v2345 = vadd.f32 %v2293, %v2344
        %v2346 = vpop.f32.mrb[0].mxu0
        %v2347 = vpop.f32.mrb[0].mxu0
        %v2348 = vpop.f32.mrb[0].mxu0
        %2349 = vdwg.mxu0
        %v2350 = vadd.f32 %v1721, %v2345
        %s2351 = scalar_lea.vmem %s10, 1
        %v2352 = vld [vmem:[%s2351] sm:$0x1]
        %s2353 = scalar_lea.vmem %s11, 1
        %v2354 = vld [vmem:[%s2353] sm:$0x1]
        %v2355 = vsel %vm882, %v2350, 0.0
        %2356 = vadd.xlane.f32.xlu0 %v2355
        %v2357 = vpop.xlane.xlu0 %2356
        %v2358 = vmul.f32 %v2357, %v886
        %v2359 = vsub.f32 %v2350, %v2358
        %v2360 = vmul.f32 %v2359, %v2359
        %v2361 = vsel %vm882, %v2360, 0.0
        %2362 = vadd.xlane.f32.xlu0 %v2361
        %v2363 = vpop.xlane.xlu0 %2362
        %v2364 = vmul.f32 %v2363, %v886
        %v2365 = vadd.f32 %v2364, 1e-06
        %v2366 = vrsqrt.pop %v2365
        %v2367 = vmul.f32 %v2359, %v2366
        %v2369 = vlaneseq
        %v2370 = vshrl.u32 %v2369, 7
        %v2371 = vsub.s32 0, %v2370
        %v2372 = vrot.slane %v2352, %v2371
        %v2374 = vmul.f32 %v2367, %v2372
        %v2376 = vlaneseq
        %v2377 = vshrl.u32 %v2376, 7
        %v2378 = vsub.s32 0, %v2377
        %v2379 = vrot.slane %v2354, %v2378
        %v2381 = vadd.f32 %v2374, %v2379
        %s2382 = scalar_lea.vmem %s12, 16
        %v2383 = vld [vmem:[%s2382] sm:$0xf]
        %v2384 = vld [vmem:[%s2382 + $0x4] sm:$0xf]
        %v2385 = vld [vmem:[%s2382 + $0x8] sm:$0xf]
        %v2386 = vld [vmem:[%s2382 + $0xc] sm:$0xf]
        %s2387 = scalar_lea.vmem %s13, 1
        %v2388 = vld [vmem:[%s2387] sm:$0x1]
        %v2389 = vpack.c.bf16 %v2381, %v2381
        %v2391 = vlaneseq
        %v2392 = vshrl.u32 %v2391, 7
        %v2393 = vsub.s32 0, %v2392
        %v2394 = vrot.slane %v2388, %v2393
        %v2400 = vunpack.c.l.b16 %v2383
        %v2401 = vunpack.c.l.b16 %v2384
        %v2402 = vunpack.c.l.b16 %v2385
        %v2403 = vunpack.c.l.b16 %v2386
        %v2404 = vpack.c.b16 %v2401, %v2400
        %v2405 = vpack.c.b16 %v2403, %v2402
        %v2409 = vsel %vm935, %v2389, 0
        %2411 = vmatprep.subr.bf16.mxu0 0
        %2412 = vmatpush1.bf16.msra.mxu0 %v2404
        %2413 = vmatprep.subr.bf16.mxu0 0
        %2414 = vmatpush1.bf16.msra.mxu0 %v2405
        %2415 = vmatprep.subr.bf16.mxu0 0
        %2416 = vmatpush1.bf16.msra.mxu0 0
        %2417 = vmatprep.subr.bf16.mxu0 0
        %2418 = vmatpush1.bf16.msra.mxu0 0
        %2419 = vmatprep.subr.bf16.mxu0 0
        %2420 = vmatpush1.bf16.msra.mxu0 0
        %2421 = vmatprep.subr.bf16.mxu0 0
        %2422 = vmatpush1.bf16.msra.mxu0 0
        %2423 = vmatprep.subr.bf16.mxu0 0
        %2424 = vmatpush1.bf16.msra.mxu0 0
        %2425 = vmatprep.subr.bf16.mxu0 0
        %2426 = vmatpush1.bf16.msra.mxu0 0
        %2427 = vmatprep.subr.bf16.mxu0 0
        %2428 = vmatpush1.bf16.msra.mxu0 0
        %2429 = vmatprep.subr.bf16.mxu0 0
        %2430 = vmatpush1.bf16.msra.mxu0 0
        %2431 = vmatprep.subr.bf16.mxu0 0
        %2432 = vmatpush1.bf16.msra.mxu0 0
        %2433 = vmatprep.subr.bf16.mxu0 0
        %2434 = vmatpush1.bf16.msra.mxu0 0
        %2435 = vmatprep.subr.bf16.mxu0 0
        %2436 = vmatpush1.bf16.msra.mxu0 0
        %2437 = vmatprep.subr.bf16.mxu0 0
        %2438 = vmatpush1.bf16.msra.mxu0 0
        %2439 = vmatprep.subr.bf16.mxu0 0
        %2440 = vmatpush1.bf16.msra.mxu0 0
        %2441 = vmatprep.subr.bf16.mxu0 0
        %2442 = vmatpush1.bf16.msra.mxu0 0
        %2443 = vmatprep.mubr.bf16.mxu0 0
        %2444 = vmatmul.mubr.bf16.gmra.mrb[0].mxu0 %v2409
        %v2445 = vpop.f32.mrb[0].mxu0
        %v2446 = vadd.f32 %v2394, %v2445
        %v2447 = vpop.f32.mrb[0].mxu0
        %v2448 = vpop.f32.mrb[0].mxu0
        %v2449 = vpop.f32.mrb[0].mxu0
        %2450 = vdwg.mxu0
        %v2451 = vmul.f32 %v2446, 0.5
        %v2452 = vmul.f32 %v2446, 0.70710677
        %vm2453 = vcmp.ge.f32.partialorder %v2452, 0.0
        %v2454 = vsel %vm2453, 1.0, -1.0
        %v2455 = vand.u32 2147483647, %v2452
        %v2456 = vmul.f32 %v2455, 0.3275911
        %v2457 = vadd.f32 %v2456, 1.0
        %v2458 = vrcp.pop %v2457
        %v2459 = vmul.f32 1.0, %v2458
        %v2460 = vmul.f32 %v2459, 1.0614054
        %v2461 = vadd.f32 %v2460, -1.4531521
        %v2462 = vmul.f32 %v2459, %v2461
        %v2463 = vadd.f32 %v2462, 1.4214138
        %v2464 = vmul.f32 %v2459, %v2463
        %v2465 = vadd.f32 %v2464, -0.28449672
        %v2466 = vmul.f32 %v2459, %v2465
        %v2467 = vadd.f32 %v2466, 0.2548296
        %v2468 = vmul.f32 %v2459, %v2467
        %v2469 = vsub.f32 0.0, %v2455
        %v2470 = vmul.f32 %v2469, %v2455
        %v2471 = vmul.f32 %v2470, 1.442695
        %v2472 = vpow.pop %v2471
        %v2473 = vmul.f32 %v2468, %v2472
        %v2474 = vsub.f32 1.0, %v2473
        %v2475 = vmul.f32 %v2454, %v2474
        %v2476 = vadd.f32 %v2475, 1.0
        %v2477 = vmul.f32 %v2451, %v2476
        %s2478 = scalar_lea.vmem %s14, 32
        %v2479 = vld [vmem:[%s2478] sm:$0xf]
        %v2480 = vld [vmem:[%s2478 + $0x4] sm:$0xf]
        %v2481 = vld [vmem:[%s2478 + $0x8] sm:$0xf]
        %v2482 = vld [vmem:[%s2478 + $0xc] sm:$0xf]
        %v2483 = vld [vmem:[%s2478 + $0x10] sm:$0xf]
        %v2484 = vld [vmem:[%s2478 + $0x14] sm:$0xf]
        %v2485 = vld [vmem:[%s2478 + $0x18] sm:$0xf]
        %v2486 = vld [vmem:[%s2478 + $0x1c] sm:$0xf]
        %s2487 = scalar_lea.vmem %s15, 1
        %v2488 = vld [vmem:[%s2487] sm:$0x1]
        %v2489 = vpack.c.bf16 %v2477, %v2477
        %v2491 = vlaneseq
        %v2492 = vshrl.u32 %v2491, 7
        %v2493 = vsub.s32 0, %v2492
        %v2494 = vrot.slane %v2488, %v2493
        %v2504 = vunpack.c.l.b16 %v2479
        %v2505 = vunpack.c.l.b16 %v2480
        %v2506 = vunpack.c.l.b16 %v2481
        %v2507 = vunpack.c.l.b16 %v2482
        %v2508 = vunpack.c.l.b16 %v2483
        %v2509 = vunpack.c.l.b16 %v2484
        %v2510 = vunpack.c.l.b16 %v2485
        %v2511 = vunpack.c.l.b16 %v2486
        %v2512 = vpack.c.b16 %v2505, %v2504
        %v2513 = vpack.c.b16 %v2507, %v2506
        %v2514 = vpack.c.b16 %v2509, %v2508
        %v2515 = vpack.c.b16 %v2511, %v2510
        %v2521 = vsel %vm829, %v2489, 0
        %2523 = vmatprep.subr.bf16.mxu0 0
        %2524 = vmatpush1.bf16.msra.mxu0 %v2512
        %2525 = vmatprep.subr.bf16.mxu0 0
        %2526 = vmatpush1.bf16.msra.mxu0 %v2513
        %2527 = vmatprep.subr.bf16.mxu0 0
        %2528 = vmatpush1.bf16.msra.mxu0 %v2514
        %2529 = vmatprep.subr.bf16.mxu0 0
        %2530 = vmatpush1.bf16.msra.mxu0 %v2515
        %2531 = vmatprep.subr.bf16.mxu0 0
        %2532 = vmatpush1.bf16.msra.mxu0 0
        %2533 = vmatprep.subr.bf16.mxu0 0
        %2534 = vmatpush1.bf16.msra.mxu0 0
        %2535 = vmatprep.subr.bf16.mxu0 0
        %2536 = vmatpush1.bf16.msra.mxu0 0
        %2537 = vmatprep.subr.bf16.mxu0 0
        %2538 = vmatpush1.bf16.msra.mxu0 0
        %2539 = vmatprep.subr.bf16.mxu0 0
        %2540 = vmatpush1.bf16.msra.mxu0 0
        %2541 = vmatprep.subr.bf16.mxu0 0
        %2542 = vmatpush1.bf16.msra.mxu0 0
        %2543 = vmatprep.subr.bf16.mxu0 0
        %2544 = vmatpush1.bf16.msra.mxu0 0
        %2545 = vmatprep.subr.bf16.mxu0 0
        %2546 = vmatpush1.bf16.msra.mxu0 0
        %2547 = vmatprep.subr.bf16.mxu0 0
        %2548 = vmatpush1.bf16.msra.mxu0 0
        %2549 = vmatprep.subr.bf16.mxu0 0
        %2550 = vmatpush1.bf16.msra.mxu0 0
        %2551 = vmatprep.subr.bf16.mxu0 0
        %2552 = vmatpush1.bf16.msra.mxu0 0
        %2553 = vmatprep.subr.bf16.mxu0 0
        %2554 = vmatpush1.bf16.msra.mxu0 0
        %2555 = vmatprep.mubr.bf16.mxu0 0
        %2556 = vmatmul.mubr.bf16.gmra.mrb[0].mxu0 %v2521
        %v2557 = vpop.f32.mrb[0].mxu0
        %v2558 = vadd.f32 %v2494, %v2557
        %v2559 = vpop.f32.mrb[0].mxu0
        %v2560 = vpop.f32.mrb[0].mxu0
        %v2561 = vpop.f32.mrb[0].mxu0
        %2562 = vdwg.mxu0
        %v2563 = vadd.f32 %v2350, %v2558
        %v2564 = vld [vmem:[%s16] sm:$0x1]
        %v2565 = vld [vmem:[%s17] sm:$0x1]
        %vm2566 = vcmask 253952
        %v2567 = vsel %vm2566, %v2563, 0.0
        %2568 = vadd.xlane.f32.xlu0 %v2567
        %v2569 = vpop.xlane.xlu0 %2568
        %v2570 = vmul.f32 %v2569, %v886
        %v2571 = vsub.f32 %v2563, %v2570
        %v2572 = vmul.f32 %v2571, %v2571
        %v2573 = vsel %vm2566, %v2572, 0.0
        %2574 = vadd.xlane.f32.xlu0 %v2573
        %v2575 = vpop.xlane.xlu0 %2574
        %v2576 = vmul.f32 %v2575, %v886
        %v2577 = vadd.f32 %v2576, 1e-06
        %v2578 = vrsqrt.pop %v2577
        %v2579 = vmul.f32 %v2571, %v2578
        %v2580 = vmul.f32 %v2579, %v2564
        %v2581 = vadd.f32 %v2580, %v2565
        %v2582 = vld [vmem:[%s18] sm:$0xff]
        %v2583 = vld [vmem:[%s18 + $0x8] sm:$0xff]
        %v2584 = vld [vmem:[%s18 + $0x10] sm:$0xff]
        %v2585 = vld [vmem:[%s18 + $0x18] sm:$0xff]
        %v2586 = vld [vmem:[%s18 + $0x20] sm:$0xff]
        %v2587 = vld [vmem:[%s18 + $0x28] sm:$0xff]
        %v2588 = vld [vmem:[%s18 + $0x30] sm:$0xff]
        %v2589 = vld [vmem:[%s18 + $0x38] sm:$0xff]
        %v2590 = vld [vmem:[%s18 + $0x40] sm:$0xff]
        %v2591 = vld [vmem:[%s18 + $0x48] sm:$0xff]
        %v2592 = vld [vmem:[%s18 + $0x50] sm:$0xff]
        %v2593 = vld [vmem:[%s18 + $0x58] sm:$0xff]
        %v2594 = vld [vmem:[%s18 + $0x60] sm:$0xff]
        %v2595 = vld [vmem:[%s18 + $0x68] sm:$0xff]
        %v2596 = vld [vmem:[%s18 + $0x70] sm:$0xff]
        %v2597 = vld [vmem:[%s18 + $0x78] sm:$0xff]
        %v2598 = vld [vmem:[%s19] sm:$0xff]
        %v2599 = vpack.c.bf16 %v2581, %v2581
        %v2616 = vunpack.c.l.b16 %v2582
        %v2617 = vunpack.c.h.b16 %v2582
        %v2618 = vunpack.c.l.b16 %v2583
        %v2619 = vunpack.c.h.b16 %v2583
        %v2620 = vunpack.c.l.b16 %v2584
        %v2621 = vunpack.c.h.b16 %v2584
        %v2622 = vunpack.c.l.b16 %v2585
        %v2623 = vunpack.c.h.b16 %v2585
        %v2624 = vunpack.c.l.b16 %v2586
        %v2625 = vunpack.c.h.b16 %v2586
        %v2626 = vunpack.c.l.b16 %v2587
        %v2627 = vunpack.c.h.b16 %v2587
        %v2628 = vunpack.c.l.b16 %v2588
        %v2629 = vunpack.c.h.b16 %v2588
        %v2630 = vunpack.c.l.b16 %v2589
        %v2631 = vunpack.c.h.b16 %v2589
        %v2632 = vunpack.c.l.b16 %v2590
        %v2633 = vunpack.c.h.b16 %v2590
        %v2634 = vunpack.c.l.b16 %v2591
        %v2635 = vunpack.c.h.b16 %v2591
        %v2636 = vunpack.c.l.b16 %v2592
        %v2637 = vunpack.c.h.b16 %v2592
        %v2638 = vunpack.c.l.b16 %v2593
        %v2639 = vunpack.c.h.b16 %v2593
        %v2640 = vunpack.c.l.b16 %v2594
        %v2641 = vunpack.c.h.b16 %v2594
        %v2642 = vunpack.c.l.b16 %v2595
        %v2643 = vunpack.c.h.b16 %v2595
        %v2644 = vunpack.c.l.b16 %v2596
        %v2645 = vunpack.c.h.b16 %v2596
        %v2646 = vunpack.c.l.b16 %v2597
        %v2647 = vunpack.c.h.b16 %v2597
        %v2648 = vpack.c.b16 %v2624, %v2616
        %v2649 = vpack.c.b16 %v2625, %v2617
        %v2650 = vpack.c.b16 %v2626, %v2618
        %v2651 = vpack.c.b16 %v2627, %v2619
        %v2652 = vpack.c.b16 %v2628, %v2620
        %v2653 = vpack.c.b16 %v2629, %v2621
        %v2654 = vpack.c.b16 %v2630, %v2622
        %v2655 = vpack.c.b16 %v2631, %v2623
        %v2656 = vpack.c.b16 %v2640, %v2632
        %v2657 = vpack.c.b16 %v2641, %v2633
        %v2658 = vpack.c.b16 %v2642, %v2634
        %v2659 = vpack.c.b16 %v2643, %v2635
        %v2660 = vpack.c.b16 %v2644, %v2636
        %v2661 = vpack.c.b16 %v2645, %v2637
        %v2662 = vpack.c.b16 %v2646, %v2638
        %v2663 = vpack.c.b16 %v2647, %v2639
        %v2681 = vlaneseq
        %v2682 = vshrl.u32 %v2681, 7
        %v2683 = vsub.s32 0, %v2682
        %v2684 = vrot.slane %v2598, %v2683
        %v2685 = vlaneseq
        %v2686 = vshrl.u32 %v2685, 7
        %v2687 = vsub.s32 1, %v2686
        %v2688 = vrot.slane %v2598, %v2687
        %v2689 = vlaneseq
        %v2690 = vshrl.u32 %v2689, 7
        %v2691 = vsub.s32 2, %v2690
        %v2692 = vrot.slane %v2598, %v2691
        %v2693 = vlaneseq
        %v2694 = vshrl.u32 %v2693, 7
        %v2695 = vsub.s32 3, %v2694
        %v2696 = vrot.slane %v2598, %v2695
        %v2697 = vlaneseq
        %v2698 = vshrl.u32 %v2697, 7
        %v2699 = vsub.s32 4, %v2698
        %v2700 = vrot.slane %v2598, %v2699
        %v2701 = vlaneseq
        %v2702 = vshrl.u32 %v2701, 7
        %v2703 = vsub.s32 5, %v2702
        %v2704 = vrot.slane %v2598, %v2703
        %v2705 = vlaneseq
        %v2706 = vshrl.u32 %v2705, 7
        %v2707 = vsub.s32 6, %v2706
        %v2708 = vrot.slane %v2598, %v2707
        %v2709 = vlaneseq
        %v2710 = vshrl.u32 %v2709, 7
        %v2711 = vsub.s32 7, %v2710
        %v2712 = vrot.slane %v2598, %v2711
        %v2722 = vsel %vm935, %v2599, 0
        %2724 = vmatprep.subr.bf16.mxu0 %v2649
        %2725 = vmatpush1.bf16.msra.mxu0 %v2648
        %2726 = vmatprep.subr.bf16.mxu0 %v2657
        %2727 = vmatpush1.bf16.msra.mxu0 %v2656
        %2728 = vmatprep.subr.bf16.mxu0 0
        %2729 = vmatpush1.bf16.msra.mxu0 0
        %2730 = vmatprep.subr.bf16.mxu0 0
        %2731 = vmatpush1.bf16.msra.mxu0 0
        %2732 = vmatprep.subr.bf16.mxu0 0
        %2733 = vmatpush1.bf16.msra.mxu0 0
        %2734 = vmatprep.subr.bf16.mxu0 0
        %2735 = vmatpush1.bf16.msra.mxu0 0
        %2736 = vmatprep.subr.bf16.mxu0 0
        %2737 = vmatpush1.bf16.msra.mxu0 0
        %2738 = vmatprep.subr.bf16.mxu0 0
        %2739 = vmatpush1.bf16.msra.mxu0 0
        %2740 = vmatprep.subr.bf16.mxu0 0
        %2741 = vmatpush1.bf16.msra.mxu0 0
        %2742 = vmatprep.subr.bf16.mxu0 0
        %2743 = vmatpush1.bf16.msra.mxu0 0
        %2744 = vmatprep.subr.bf16.mxu0 0
        %2745 = vmatpush1.bf16.msra.mxu0 0
        %2746 = vmatprep.subr.bf16.mxu0 0
        %2747 = vmatpush1.bf16.msra.mxu0 0
        %2748 = vmatprep.subr.bf16.mxu0 0
        %2749 = vmatpush1.bf16.msra.mxu0 0
        %2750 = vmatprep.subr.bf16.mxu0 0
        %2751 = vmatpush1.bf16.msra.mxu0 0
        %2752 = vmatprep.subr.bf16.mxu0 0
        %2753 = vmatpush1.bf16.msra.mxu0 0
        %2754 = vmatprep.subr.bf16.mxu0 0
        %2755 = vmatpush1.bf16.msra.mxu0 0
        %2756 = vmatprep.mubr.bf16.mxu0 0
        %2757 = vmatmul.mubr.bf16.gmra.mrb[0].mxu0 %v2722
        %v2758 = vpop.f32.mrb[0].mxu0
        %v2759 = vadd.f32 %v2684, %v2758
        %v2760 = vpop.f32.mrb[0].mxu0
        %v2761 = vadd.f32 %v2688, %v2760
        %v2762 = vpop.f32.mrb[0].mxu0
        %v2763 = vpop.f32.mrb[0].mxu0
        %2764 = vdwg.mxu0
        %2765 = vmatprep.subr.bf16.mxu0 %v2651
        %2766 = vmatpush1.bf16.msra.mxu0 %v2650
        %2767 = vmatprep.subr.bf16.mxu0 %v2659
        %2768 = vmatpush1.bf16.msra.mxu0 %v2658
        %2769 = vmatprep.subr.bf16.mxu0 0
        %2770 = vmatpush1.bf16.msra.mxu0 0
        %2771 = vmatprep.subr.bf16.mxu0 0
        %2772 = vmatpush1.bf16.msra.mxu0 0
        %2773 = vmatprep.subr.bf16.mxu0 0
        %2774 = vmatpush1.bf16.msra.mxu0 0
        %2775 = vmatprep.subr.bf16.mxu0 0
        %2776 = vmatpush1.bf16.msra.mxu0 0
        %2777 = vmatprep.subr.bf16.mxu0 0
        %2778 = vmatpush1.bf16.msra.mxu0 0
        %2779 = vmatprep.subr.bf16.mxu0 0
        %2780 = vmatpush1.bf16.msra.mxu0 0
        %2781 = vmatprep.subr.bf16.mxu0 0
        %2782 = vmatpush1.bf16.msra.mxu0 0
        %2783 = vmatprep.subr.bf16.mxu0 0
        %2784 = vmatpush1.bf16.msra.mxu0 0
        %2785 = vmatprep.subr.bf16.mxu0 0
        %2786 = vmatpush1.bf16.msra.mxu0 0
        %2787 = vmatprep.subr.bf16.mxu0 0
        %2788 = vmatpush1.bf16.msra.mxu0 0
        %2789 = vmatprep.subr.bf16.mxu0 0
        %2790 = vmatpush1.bf16.msra.mxu0 0
        %2791 = vmatprep.subr.bf16.mxu0 0
        %2792 = vmatpush1.bf16.msra.mxu0 0
        %2793 = vmatprep.subr.bf16.mxu0 0
        %2794 = vmatpush1.bf16.msra.mxu0 0
        %2795 = vmatprep.subr.bf16.mxu0 0
        %2796 = vmatpush1.bf16.msra.mxu0 0
        %2797 = vmatprep.mubr.bf16.mxu0 0
        %2798 = vmatmul.mubr.bf16.gmra.mrb[0].mxu0 %v2722
        %v2799 = vpop.f32.mrb[0].mxu0
        %v2800 = vadd.f32 %v2692, %v2799
        %v2801 = vpop.f32.mrb[0].mxu0
        %v2802 = vadd.f32 %v2696, %v2801
        %v2803 = vpop.f32.mrb[0].mxu0
        %v2804 = vpop.f32.mrb[0].mxu0
        %2805 = vdwg.mxu0
        %2806 = vmatprep.subr.bf16.mxu0 %v2653
        %2807 = vmatpush1.bf16.msra.mxu0 %v2652
        %2808 = vmatprep.subr.bf16.mxu0 %v2661
        %2809 = vmatpush1.bf16.msra.mxu0 %v2660
        %2810 = vmatprep.subr.bf16.mxu0 0
        %2811 = vmatpush1.bf16.msra.mxu0 0
        %2812 = vmatprep.subr.bf16.mxu0 0
        %2813 = vmatpush1.bf16.msra.mxu0 0
        %2814 = vmatprep.subr.bf16.mxu0 0
        %2815 = vmatpush1.bf16.msra.mxu0 0
        %2816 = vmatprep.subr.bf16.mxu0 0
        %2817 = vmatpush1.bf16.msra.mxu0 0
        %2818 = vmatprep.subr.bf16.mxu0 0
        %2819 = vmatpush1.bf16.msra.mxu0 0
        %2820 = vmatprep.subr.bf16.mxu0 0
        %2821 = vmatpush1.bf16.msra.mxu0 0
        %2822 = vmatprep.subr.bf16.mxu0 0
        %2823 = vmatpush1.bf16.msra.mxu0 0
        %2824 = vmatprep.subr.bf16.mxu0 0
        %2825 = vmatpush1.bf16.msra.mxu0 0
        %2826 = vmatprep.subr.bf16.mxu0 0
        %2827 = vmatpush1.bf16.msra.mxu0 0
        %2828 = vmatprep.subr.bf16.mxu0 0
        %2829 = vmatpush1.bf16.msra.mxu0 0
        %2830 = vmatprep.subr.bf16.mxu0 0
        %2831 = vmatpush1.bf16.msra.mxu0 0
        %2832 = vmatprep.subr.bf16.mxu0 0
        %2833 = vmatpush1.bf16.msra.mxu0 0
        %2834 = vmatprep.subr.bf16.mxu0 0
        %2835 = vmatpush1.bf16.msra.mxu0 0
        %2836 = vmatprep.subr.bf16.mxu0 0
        %2837 = vmatpush1.bf16.msra.mxu0 0
        %2838 = vmatprep.mubr.bf16.mxu0 0
        %2839 = vmatmul.mubr.bf16.gmra.mrb[0].mxu0 %v2722
        %v2840 = vpop.f32.mrb[0].mxu0
        %v2841 = vadd.f32 %v2700, %v2840
        %v2842 = vpop.f32.mrb[0].mxu0
        %v2843 = vadd.f32 %v2704, %v2842
        %v2844 = vpop.f32.mrb[0].mxu0
        %v2845 = vpop.f32.mrb[0].mxu0
        %2846 = vdwg.mxu0
        %2847 = vmatprep.subr.bf16.mxu0 %v2655
        %2848 = vmatpush1.bf16.msra.mxu0 %v2654
        %2849 = vmatprep.subr.bf16.mxu0 %v2663
        %2850 = vmatpush1.bf16.msra.mxu0 %v2662
        %2851 = vmatprep.subr.bf16.mxu0 0
        %2852 = vmatpush1.bf16.msra.mxu0 0
        %2853 = vmatprep.subr.bf16.mxu0 0
        %2854 = vmatpush1.bf16.msra.mxu0 0
        %2855 = vmatprep.subr.bf16.mxu0 0
        %2856 = vmatpush1.bf16.msra.mxu0 0
        %2857 = vmatprep.subr.bf16.mxu0 0
        %2858 = vmatpush1.bf16.msra.mxu0 0
        %2859 = vmatprep.subr.bf16.mxu0 0
        %2860 = vmatpush1.bf16.msra.mxu0 0
        %2861 = vmatprep.subr.bf16.mxu0 0
        %2862 = vmatpush1.bf16.msra.mxu0 0
        %2863 = vmatprep.subr.bf16.mxu0 0
        %2864 = vmatpush1.bf16.msra.mxu0 0
        %2865 = vmatprep.subr.bf16.mxu0 0
        %2866 = vmatpush1.bf16.msra.mxu0 0
        %2867 = vmatprep.subr.bf16.mxu0 0
        %2868 = vmatpush1.bf16.msra.mxu0 0
        %2869 = vmatprep.subr.bf16.mxu0 0
        %2870 = vmatpush1.bf16.msra.mxu0 0
        %2871 = vmatprep.subr.bf16.mxu0 0
        %2872 = vmatpush1.bf16.msra.mxu0 0
        %2873 = vmatprep.subr.bf16.mxu0 0
        %2874 = vmatpush1.bf16.msra.mxu0 0
        %2875 = vmatprep.subr.bf16.mxu0 0
        %2876 = vmatpush1.bf16.msra.mxu0 0
        %2877 = vmatprep.subr.bf16.mxu0 0
        %2878 = vmatpush1.bf16.msra.mxu0 0
        %2879 = vmatprep.mubr.bf16.mxu0 0
        %2880 = vmatmul.mubr.bf16.gmra.mrb[0].mxu0 %v2722
        %v2881 = vpop.f32.mrb[0].mxu0
        %v2882 = vadd.f32 %v2708, %v2881
        %v2883 = vpop.f32.mrb[0].mxu0
        %v2884 = vadd.f32 %v2712, %v2883
        %v2885 = vpop.f32.mrb[0].mxu0
        %v2886 = vpop.f32.mrb[0].mxu0
        %2887 = vdwg.mxu0
        %v2896 = vcombine.low %v2759, %v2761
        %v2897 = vcombine.low %v2800, %v2802
        %v2898 = vcombine.low %v2841, %v2843
        %v2899 = vcombine.low %v2882, %v2884
        %v2901 = vunpack.c.l.s4 1966171168
        %v2902 = vunpack.c.0.s8 %v2901
        %v2903 = vlaneseq
        %v2904 = vshrl.u32 %v2903, 7
        %v2905 = vsub.s32 %v2902, %v2904
        %v2906 = vrot.slane %v2896, %v2905
        %v2908 = vunpack.c.l.s4 1966171168
        %v2909 = vunpack.c.0.s8 %v2908
        %v2910 = vlaneseq
        %v2911 = vshrl.u32 %v2910, 7
        %v2912 = vsub.s32 %v2909, %v2911
        %v2913 = vrot.slane %v2897, %v2912
        %v2915 = vunpack.c.l.s4 1966171168
        %v2916 = vunpack.c.0.s8 %v2915
        %v2917 = vlaneseq
        %v2918 = vshrl.u32 %v2917, 7
        %v2919 = vsub.s32 %v2916, %v2918
        %v2920 = vrot.slane %v2898, %v2919
        %v2922 = vunpack.c.l.s4 1966171168
        %v2923 = vunpack.c.0.s8 %v2922
        %v2924 = vlaneseq
        %v2925 = vshrl.u32 %v2924, 7
        %v2926 = vsub.s32 %v2923, %v2925
        %v2927 = vrot.slane %v2899, %v2926
        %v2928 = vcombine.low %v2906, %v2913
        %v2929 = vcombine.low %v2920, %v2927
        %v2931 = vunpack.c.l.s4 1966171168
        %v2932 = vunpack.c.0.s8 %v2931
        %v2933 = vlaneseq
        %v2934 = vshrl.u32 %v2933, 7
        %v2935 = vsub.s32 %v2932, %v2934
        %v2936 = vrot.slane %v2928, %v2935
        %v2938 = vunpack.c.l.s4 1966171168
        %v2939 = vunpack.c.0.s8 %v2938
        %v2940 = vlaneseq
        %v2941 = vshrl.u32 %v2940, 7
        %v2942 = vsub.s32 %v2939, %v2941
        %v2943 = vrot.slane %v2929, %v2942
        %v2944 = vcombine.low %v2936, %v2943
        %2946 = vst [vmem:[%s707] sm:$0xff] %v2944
        %v2947 = vld [vmem:[%s20] sm:$0xf]
        %v2948 = vld [vmem:[%s20 + $0x4] sm:$0xf]
        %v2949 = vld [vmem:[%s20 + $0x8] sm:$0xf]
        %v2950 = vld [vmem:[%s20 + $0xc] sm:$0xf]
        %v2951 = vld [vmem:[%s20 + $0x10] sm:$0xf]
        %v2952 = vld [vmem:[%s20 + $0x14] sm:$0xf]
        %v2953 = vld [vmem:[%s20 + $0x18] sm:$0xf]
        %v2954 = vld [vmem:[%s20 + $0x1c] sm:$0xf]
        %v2955 = vld [vmem:[%s20 + $0x20] sm:$0xf]
        %v2956 = vld [vmem:[%s20 + $0x24] sm:$0xf]
        %v2957 = vld [vmem:[%s20 + $0x28] sm:$0xf]
        %v2958 = vld [vmem:[%s20 + $0x2c] sm:$0xf]
        %v2959 = vld [vmem:[%s20 + $0x30] sm:$0xf]
        %v2960 = vld [vmem:[%s20 + $0x34] sm:$0xf]
        %v2961 = vld [vmem:[%s20 + $0x38] sm:$0xf]
        %v2962 = vld [vmem:[%s20 + $0x3c] sm:$0xf]
        %v2963 = vld [vmem:[%s20 + $0x40] sm:$0xf]
        %v2964 = vld [vmem:[%s20 + $0x44] sm:$0xf]
        %v2965 = vld [vmem:[%s20 + $0x48] sm:$0xf]
        %v2966 = vld [vmem:[%s20 + $0x4c] sm:$0xf]
        %v2967 = vld [vmem:[%s20 + $0x50] sm:$0xf]
        %v2968 = vld [vmem:[%s20 + $0x54] sm:$0xf]
        %v2969 = vld [vmem:[%s20 + $0x58] sm:$0xf]
        %v2970 = vld [vmem:[%s20 + $0x5c] sm:$0xf]
        %v2971 = vld [vmem:[%s20 + $0x60] sm:$0xf]
        %v2972 = vld [vmem:[%s20 + $0x64] sm:$0xf]
        %v2973 = vld [vmem:[%s20 + $0x68] sm:$0xf]
        %v2974 = vld [vmem:[%s20 + $0x6c] sm:$0xf]
        %v2975 = vld [vmem:[%s20 + $0x70] sm:$0xf]
        %v2976 = vld [vmem:[%s20 + $0x74] sm:$0xf]
        %v2977 = vld [vmem:[%s20 + $0x78] sm:$0xf]
        %v2978 = vld [vmem:[%s20 + $0x7c] sm:$0xf]
        %v2979 = vld [vmem:[%s20 + $0x80] sm:$0xf]
        %v2980 = vld [vmem:[%s20 + $0x84] sm:$0xf]
        %v2981 = vld [vmem:[%s20 + $0x88] sm:$0xf]
        %v2982 = vld [vmem:[%s20 + $0x8c] sm:$0xf]
        %v2983 = vld [vmem:[%s20 + $0x90] sm:$0xf]
        %v2984 = vld [vmem:[%s20 + $0x94] sm:$0xf]
        %v2985 = vld [vmem:[%s20 + $0x98] sm:$0xf]
        %v2986 = vld [vmem:[%s20 + $0x9c] sm:$0xf]
        %v2987 = vld [vmem:[%s20 + $0xa0] sm:$0xf]
        %v2988 = vld [vmem:[%s20 + $0xa4] sm:$0xf]
        %v2989 = vld [vmem:[%s20 + $0xa8] sm:$0xf]
        %v2990 = vld [vmem:[%s20 + $0xac] sm:$0xf]
        %v2991 = vld [vmem:[%s20 + $0xb0] sm:$0xf]
        %v2992 = vld [vmem:[%s20 + $0xb4] sm:$0xf]
        %v2993 = vld [vmem:[%s20 + $0xb8] sm:$0xf]
        %v2994 = vld [vmem:[%s20 + $0xbc] sm:$0xf]
        %v2995 = vld [vmem:[%s20 + $0xc0] sm:$0xf]
        %v2996 = vld [vmem:[%s20 + $0xc4] sm:$0xf]
        %v2997 = vld [vmem:[%s20 + $0xc8] sm:$0xf]
        %v2998 = vld [vmem:[%s20 + $0xcc] sm:$0xf]
        %v2999 = vld [vmem:[%s20 + $0xd0] sm:$0xf]
        %v3000 = vld [vmem:[%s20 + $0xd4] sm:$0xf]
        %v3001 = vld [vmem:[%s20 + $0xd8] sm:$0xf]
        %v3002 = vld [vmem:[%s20 + $0xdc] sm:$0xf]
        %v3003 = vld [vmem:[%s20 + $0xe0] sm:$0xf]
        %v3004 = vld [vmem:[%s20 + $0xe4] sm:$0xf]
        %v3005 = vld [vmem:[%s20 + $0xe8] sm:$0xf]
        %v3006 = vld [vmem:[%s20 + $0xec] sm:$0xf]
        %v3007 = vld [vmem:[%s20 + $0xf0] sm:$0xf]
        %v3008 = vld [vmem:[%s20 + $0xf4] sm:$0xf]
        %v3009 = vld [vmem:[%s20 + $0xf8] sm:$0xf]
        %v3010 = vld [vmem:[%s20 + $0xfc] sm:$0xf]
        %v3011 = vld [vmem:[%s20 + $0x100] sm:$0xf]
        %v3012 = vld [vmem:[%s20 + $0x104] sm:$0xf]
        %v3013 = vld [vmem:[%s20 + $0x108] sm:$0xf]
        %v3014 = vld [vmem:[%s20 + $0x10c] sm:$0xf]
        %v3015 = vld [vmem:[%s20 + $0x110] sm:$0xf]
        %v3016 = vld [vmem:[%s20 + $0x114] sm:$0xf]
        %v3017 = vld [vmem:[%s20 + $0x118] sm:$0xf]
        %v3018 = vld [vmem:[%s20 + $0x11c] sm:$0xf]
        %v3019 = vld [vmem:[%s20 + $0x120] sm:$0xf]
        %v3020 = vld [vmem:[%s20 + $0x124] sm:$0xf]
        %v3021 = vld [vmem:[%s20 + $0x128] sm:$0xf]
        %v3022 = vld [vmem:[%s20 + $0x12c] sm:$0xf]
        %v3023 = vld [vmem:[%s20 + $0x130] sm:$0xf]
        %v3024 = vld [vmem:[%s20 + $0x134] sm:$0xf]
        %v3025 = vld [vmem:[%s20 + $0x138] sm:$0xf]
        %v3026 = vld [vmem:[%s20 + $0x13c] sm:$0xf]
        %v3027 = vld [vmem:[%s20 + $0x140] sm:$0xf]
        %v3028 = vld [vmem:[%s20 + $0x144] sm:$0xf]
        %v3029 = vld [vmem:[%s20 + $0x148] sm:$0xf]
        %v3030 = vld [vmem:[%s20 + $0x14c] sm:$0xf]
        %v3031 = vld [vmem:[%s20 + $0x150] sm:$0xf]
        %v3032 = vld [vmem:[%s20 + $0x154] sm:$0xf]
        %v3033 = vld [vmem:[%s20 + $0x158] sm:$0xf]
        %v3034 = vld [vmem:[%s20 + $0x15c] sm:$0xf]
        %v3035 = vld [vmem:[%s20 + $0x160] sm:$0xf]
        %v3036 = vld [vmem:[%s20 + $0x164] sm:$0xf]
        %v3037 = vld [vmem:[%s20 + $0x168] sm:$0xf]
        %v3038 = vld [vmem:[%s20 + $0x16c] sm:$0xf]
        %v3039 = vld [vmem:[%s20 + $0x170] sm:$0xf]
        %v3040 = vld [vmem:[%s20 + $0x174] sm:$0xf]
        %v3041 = vld [vmem:[%s20 + $0x178] sm:$0xf]
        %v3042 = vld [vmem:[%s20 + $0x17c] sm:$0xf]
        %v3043 = vld [vmem:[%s20 + $0x180] sm:$0xf]
        %v3044 = vld [vmem:[%s20 + $0x184] sm:$0xf]
        %v3045 = vld [vmem:[%s20 + $0x188] sm:$0xf]
        %v3046 = vld [vmem:[%s20 + $0x18c] sm:$0xf]
        %v3047 = vld [vmem:[%s20 + $0x190] sm:$0xf]
        %v3048 = vld [vmem:[%s20 + $0x194] sm:$0xf]
        %v3049 = vld [vmem:[%s20 + $0x198] sm:$0xf]
        %v3050 = vld [vmem:[%s20 + $0x19c] sm:$0xf]
        %v3051 = vld [vmem:[%s20 + $0x1a0] sm:$0xf]
        %v3052 = vld [vmem:[%s20 + $0x1a4] sm:$0xf]
        %v3053 = vld [vmem:[%s20 + $0x1a8] sm:$0xf]
        %v3054 = vld [vmem:[%s20 + $0x1ac] sm:$0xf]
        %v3055 = vld [vmem:[%s20 + $0x1b0] sm:$0xf]
        %v3056 = vld [vmem:[%s20 + $0x1b4] sm:$0xf]
        %v3057 = vld [vmem:[%s20 + $0x1b8] sm:$0xf]
        %v3058 = vld [vmem:[%s20 + $0x1bc] sm:$0xf]
        %v3059 = vld [vmem:[%s20 + $0x1c0] sm:$0xf]
        %v3060 = vld [vmem:[%s20 + $0x1c4] sm:$0xf]
        %v3061 = vld [vmem:[%s20 + $0x1c8] sm:$0xf]
        %v3062 = vld [vmem:[%s20 + $0x1cc] sm:$0xf]
        %v3063 = vld [vmem:[%s20 + $0x1d0] sm:$0xf]
        %v3064 = vld [vmem:[%s20 + $0x1d4] sm:$0xf]
        %v3065 = vld [vmem:[%s20 + $0x1d8] sm:$0xf]
        %v3066 = vld [vmem:[%s20 + $0x1dc] sm:$0xf]
        %v3067 = vld [vmem:[%s20 + $0x1e0] sm:$0xf]
        %v3068 = vld [vmem:[%s20 + $0x1e4] sm:$0xf]
        %v3069 = vld [vmem:[%s20 + $0x1e8] sm:$0xf]
        %v3070 = vld [vmem:[%s20 + $0x1ec] sm:$0xf]
        %v3071 = vld [vmem:[%s20 + $0x1f0] sm:$0xf]
        %v3072 = vld [vmem:[%s20 + $0x1f4] sm:$0xf]
        %v3073 = vld [vmem:[%s20 + $0x1f8] sm:$0xf]
        %v3074 = vld [vmem:[%s20 + $0x1fc] sm:$0xf]
        %v3075 = vld [vmem:[%s21] sm:$0x1]
        %v3076 = vpack.c.bf16 %v2759, %v2759
        %v3077 = vpack.c.bf16 %v2761, %v2761
        %v3078 = vpack.c.bf16 %v2800, %v2800
        %v3079 = vpack.c.bf16 %v2802, %v2802
        %v3080 = vpack.c.bf16 %v2841, %v2841
        %v3081 = vpack.c.bf16 %v2843, %v2843
        %v3082 = vpack.c.bf16 %v2882, %v2882
        %v3083 = vpack.c.bf16 %v2884, %v2884
        %v3212 = vunpack.c.l.b16 %v2947
        %v3213 = vunpack.c.l.b16 %v2948
        %v3214 = vunpack.c.l.b16 %v2949
        %v3215 = vunpack.c.l.b16 %v2950
        %v3216 = vunpack.c.l.b16 %v2951
        %v3217 = vunpack.c.l.b16 %v2952
        %v3218 = vunpack.c.l.b16 %v2953
        %v3219 = vunpack.c.l.b16 %v2954
        %v3220 = vunpack.c.l.b16 %v2955
        %v3221 = vunpack.c.l.b16 %v2956
        %v3222 = vunpack.c.l.b16 %v2957
        %v3223 = vunpack.c.l.b16 %v2958
        %v3224 = vunpack.c.l.b16 %v2959
        %v3225 = vunpack.c.l.b16 %v2960
        %v3226 = vunpack.c.l.b16 %v2961
        %v3227 = vunpack.c.l.b16 %v2962
        %v3228 = vunpack.c.l.b16 %v2963
        %v3229 = vunpack.c.l.b16 %v2964
        %v3230 = vunpack.c.l.b16 %v2965
        %v3231 = vunpack.c.l.b16 %v2966
        %v3232 = vunpack.c.l.b16 %v2967
        %v3233 = vunpack.c.l.b16 %v2968
        %v3234 = vunpack.c.l.b16 %v2969
        %v3235 = vunpack.c.l.b16 %v2970
        %v3236 = vunpack.c.l.b16 %v2971
        %v3237 = vunpack.c.l.b16 %v2972
        %v3238 = vunpack.c.l.b16 %v2973
        %v3239 = vunpack.c.l.b16 %v2974
        %v3240 = vunpack.c.l.b16 %v2975
        %v3241 = vunpack.c.l.b16 %v2976
        %v3242 = vunpack.c.l.b16 %v2977
        %v3243 = vunpack.c.l.b16 %v2978
        %v3244 = vunpack.c.l.b16 %v2979
        %v3245 = vunpack.c.l.b16 %v2980
        %v3246 = vunpack.c.l.b16 %v2981
        %v3247 = vunpack.c.l.b16 %v2982
        %v3248 = vunpack.c.l.b16 %v2983
        %v3249 = vunpack.c.l.b16 %v2984
        %v3250 = vunpack.c.l.b16 %v2985
        %v3251 = vunpack.c.l.b16 %v2986
        %v3252 = vunpack.c.l.b16 %v2987
        %v3253 = vunpack.c.l.b16 %v2988
        %v3254 = vunpack.c.l.b16 %v2989
        %v3255 = vunpack.c.l.b16 %v2990
        %v3256 = vunpack.c.l.b16 %v2991
        %v3257 = vunpack.c.l.b16 %v2992
        %v3258 = vunpack.c.l.b16 %v2993
        %v3259 = vunpack.c.l.b16 %v2994
        %v3260 = vunpack.c.l.b16 %v2995
        %v3261 = vunpack.c.l.b16 %v2996
        %v3262 = vunpack.c.l.b16 %v2997
        %v3263 = vunpack.c.l.b16 %v2998
        %v3264 = vunpack.c.l.b16 %v2999
        %v3265 = vunpack.c.l.b16 %v3000
        %v3266 = vunpack.c.l.b16 %v3001
        %v3267 = vunpack.c.l.b16 %v3002
        %v3268 = vunpack.c.l.b16 %v3003
        %v3269 = vunpack.c.l.b16 %v3004
        %v3270 = vunpack.c.l.b16 %v3005
        %v3271 = vunpack.c.l.b16 %v3006
        %v3272 = vunpack.c.l.b16 %v3007
        %v3273 = vunpack.c.l.b16 %v3008
        %v3274 = vunpack.c.l.b16 %v3009
        %v3275 = vunpack.c.l.b16 %v3010
        %v3276 = vunpack.c.l.b16 %v3011
        %v3277 = vunpack.c.l.b16 %v3012
        %v3278 = vunpack.c.l.b16 %v3013
        %v3279 = vunpack.c.l.b16 %v3014
        %v3280 = vunpack.c.l.b16 %v3015
        %v3281 = vunpack.c.l.b16 %v3016
        %v3282 = vunpack.c.l.b16 %v3017
        %v3283 = vunpack.c.l.b16 %v3018
        %v3284 = vunpack.c.l.b16 %v3019
        %v3285 = vunpack.c.l.b16 %v3020
        %v3286 = vunpack.c.l.b16 %v3021
        %v3287 = vunpack.c.l.b16 %v3022
        %v3288 = vunpack.c.l.b16 %v3023
        %v3289 = vunpack.c.l.b16 %v3024
        %v3290 = vunpack.c.l.b16 %v3025
        %v3291 = vunpack.c.l.b16 %v3026
        %v3292 = vunpack.c.l.b16 %v3027
        %v3293 = vunpack.c.l.b16 %v3028
        %v3294 = vunpack.c.l.b16 %v3029
        %v3295 = vunpack.c.l.b16 %v3030
        %v3296 = vunpack.c.l.b16 %v3031
        %v3297 = vunpack.c.l.b16 %v3032
        %v3298 = vunpack.c.l.b16 %v3033
        %v3299 = vunpack.c.l.b16 %v3034
        %v3300 = vunpack.c.l.b16 %v3035
        %v3301 = vunpack.c.l.b16 %v3036
        %v3302 = vunpack.c.l.b16 %v3037
        %v3303 = vunpack.c.l.b16 %v3038
        %v3304 = vunpack.c.l.b16 %v3039
        %v3305 = vunpack.c.l.b16 %v3040
        %v3306 = vunpack.c.l.b16 %v3041
        %v3307 = vunpack.c.l.b16 %v3042
        %v3308 = vunpack.c.l.b16 %v3043
        %v3309 = vunpack.c.l.b16 %v3044
        %v3310 = vunpack.c.l.b16 %v3045
        %v3311 = vunpack.c.l.b16 %v3046
        %v3312 = vunpack.c.l.b16 %v3047
        %v3313 = vunpack.c.l.b16 %v3048
        %v3314 = vunpack.c.l.b16 %v3049
        %v3315 = vunpack.c.l.b16 %v3050
        %v3316 = vunpack.c.l.b16 %v3051
        %v3317 = vunpack.c.l.b16 %v3052
        %v3318 = vunpack.c.l.b16 %v3053
        %v3319 = vunpack.c.l.b16 %v3054
        %v3320 = vunpack.c.l.b16 %v3055
        %v3321 = vunpack.c.l.b16 %v3056
        %v3322 = vunpack.c.l.b16 %v3057
        %v3323 = vunpack.c.l.b16 %v3058
        %v3324 = vunpack.c.l.b16 %v3059
        %v3325 = vunpack.c.l.b16 %v3060
        %v3326 = vunpack.c.l.b16 %v3061
        %v3327 = vunpack.c.l.b16 %v3062
        %v3328 = vunpack.c.l.b16 %v3063
        %v3329 = vunpack.c.l.b16 %v3064
        %v3330 = vunpack.c.l.b16 %v3065
        %v3331 = vunpack.c.l.b16 %v3066
        %v3332 = vunpack.c.l.b16 %v3067
        %v3333 = vunpack.c.l.b16 %v3068
        %v3334 = vunpack.c.l.b16 %v3069
        %v3335 = vunpack.c.l.b16 %v3070
        %v3336 = vunpack.c.l.b16 %v3071
        %v3337 = vunpack.c.l.b16 %v3072
        %v3338 = vunpack.c.l.b16 %v3073
        %v3339 = vunpack.c.l.b16 %v3074
        %v3340 = vpack.c.b16 %v3213, %v3212
        %v3341 = vpack.c.b16 %v3215, %v3214
        %v3342 = vpack.c.b16 %v3217, %v3216
        %v3343 = vpack.c.b16 %v3219, %v3218
        %v3344 = vpack.c.b16 %v3221, %v3220
        %v3345 = vpack.c.b16 %v3223, %v3222
        %v3346 = vpack.c.b16 %v3225, %v3224
        %v3347 = vpack.c.b16 %v3227, %v3226
        %v3348 = vpack.c.b16 %v3229, %v3228
        %v3349 = vpack.c.b16 %v3231, %v3230
        %v3350 = vpack.c.b16 %v3233, %v3232
        %v3351 = vpack.c.b16 %v3235, %v3234
        %v3352 = vpack.c.b16 %v3237, %v3236
        %v3353 = vpack.c.b16 %v3239, %v3238
        %v3354 = vpack.c.b16 %v3241, %v3240
        %v3355 = vpack.c.b16 %v3243, %v3242
        %v3356 = vpack.c.b16 %v3245, %v3244
        %v3357 = vpack.c.b16 %v3247, %v3246
        %v3358 = vpack.c.b16 %v3249, %v3248
        %v3359 = vpack.c.b16 %v3251, %v3250
        %v3360 = vpack.c.b16 %v3253, %v3252
        %v3361 = vpack.c.b16 %v3255, %v3254
        %v3362 = vpack.c.b16 %v3257, %v3256
        %v3363 = vpack.c.b16 %v3259, %v3258
        %v3364 = vpack.c.b16 %v3261, %v3260
        %v3365 = vpack.c.b16 %v3263, %v3262
        %v3366 = vpack.c.b16 %v3265, %v3264
        %v3367 = vpack.c.b16 %v3267, %v3266
        %v3368 = vpack.c.b16 %v3269, %v3268
        %v3369 = vpack.c.b16 %v3271, %v3270
        %v3370 = vpack.c.b16 %v3273, %v3272
        %v3371 = vpack.c.b16 %v3275, %v3274
        %v3372 = vpack.c.b16 %v3277, %v3276
        %v3373 = vpack.c.b16 %v3279, %v3278
        %v3374 = vpack.c.b16 %v3281, %v3280
        %v3375 = vpack.c.b16 %v3283, %v3282
        %v3376 = vpack.c.b16 %v3285, %v3284
        %v3377 = vpack.c.b16 %v3287, %v3286
        %v3378 = vpack.c.b16 %v3289, %v3288
        %v3379 = vpack.c.b16 %v3291, %v3290
        %v3380 = vpack.c.b16 %v3293, %v3292
        %v3381 = vpack.c.b16 %v3295, %v3294
        %v3382 = vpack.c.b16 %v3297, %v3296
        %v3383 = vpack.c.b16 %v3299, %v3298
        %v3384 = vpack.c.b16 %v3301, %v3300
        %v3385 = vpack.c.b16 %v3303, %v3302
        %v3386 = vpack.c.b16 %v3305, %v3304
        %v3387 = vpack.c.b16 %v3307, %v3306
        %v3388 = vpack.c.b16 %v3309, %v3308
        %v3389 = vpack.c.b16 %v3311, %v3310
        %v3390 = vpack.c.b16 %v3313, %v3312
        %v3391 = vpack.c.b16 %v3315, %v3314
        %v3392 = vpack.c.b16 %v3317, %v3316
        %v3393 = vpack.c.b16 %v3319, %v3318
        %v3394 = vpack.c.b16 %v3321, %v3320
        %v3395 = vpack.c.b16 %v3323, %v3322
        %v3396 = vpack.c.b16 %v3325, %v3324
        %v3397 = vpack.c.b16 %v3327, %v3326
        %v3398 = vpack.c.b16 %v3329, %v3328
        %v3399 = vpack.c.b16 %v3331, %v3330
        %v3400 = vpack.c.b16 %v3333, %v3332
        %v3401 = vpack.c.b16 %v3335, %v3334
        %v3402 = vpack.c.b16 %v3337, %v3336
        %v3403 = vpack.c.b16 %v3339, %v3338
        %3468 = vmatprep.subr.bf16.mxu0 0
        %3469 = vmatpush1.bf16.msra.mxu0 %v3340
        %3470 = vmatprep.subr.bf16.mxu0 0
        %3471 = vmatpush1.bf16.msra.mxu0 %v3341
        %3472 = vmatprep.subr.bf16.mxu0 0
        %3473 = vmatpush1.bf16.msra.mxu0 %v3342
        %3474 = vmatprep.subr.bf16.mxu0 0
        %3475 = vmatpush1.bf16.msra.mxu0 %v3343
        %3476 = vmatprep.subr.bf16.mxu0 0
        %3477 = vmatpush1.bf16.msra.mxu0 %v3344
        %3478 = vmatprep.subr.bf16.mxu0 0
        %3479 = vmatpush1.bf16.msra.mxu0 %v3345
        %3480 = vmatprep.subr.bf16.mxu0 0
        %3481 = vmatpush1.bf16.msra.mxu0 %v3346
        %3482 = vmatprep.subr.bf16.mxu0 0
        %3483 = vmatpush1.bf16.msra.mxu0 %v3347
        %3484 = vmatprep.subr.bf16.mxu0 0
        %3485 = vmatpush1.bf16.msra.mxu0 %v3348
        %3486 = vmatprep.subr.bf16.mxu0 0
        %3487 = vmatpush1.bf16.msra.mxu0 %v3349
        %3488 = vmatprep.subr.bf16.mxu0 0
        %3489 = vmatpush1.bf16.msra.mxu0 %v3350
        %3490 = vmatprep.subr.bf16.mxu0 0
        %3491 = vmatpush1.bf16.msra.mxu0 %v3351
        %3492 = vmatprep.subr.bf16.mxu0 0
        %3493 = vmatpush1.bf16.msra.mxu0 %v3352
        %3494 = vmatprep.subr.bf16.mxu0 0
        %3495 = vmatpush1.bf16.msra.mxu0 %v3353
        %3496 = vmatprep.subr.bf16.mxu0 0
        %3497 = vmatpush1.bf16.msra.mxu0 %v3354
        %3498 = vmatprep.subr.bf16.mxu0 0
        %3499 = vmatpush1.bf16.msra.mxu0 %v3355
        %3500 = vmatprep.mubr.bf16.mxu0 %v3077
        %3501 = vmatmul.mubr.bf16.gmra.mrb[0].mxu0 %v3076
        %v3502 = vpop.f32.mrb[0].mxu0
        %v3503 = vadd.f32 %v3075, %v3502
        %v3504 = vpop.f32.mrb[0].mxu0
        %v3505 = vpop.f32.mrb[0].mxu0
        %v3506 = vpop.f32.mrb[0].mxu0
        %3507 = vdwg.mxu0
        %3508 = vmatprep.subr.bf16.mxu0 0
        %3509 = vmatpush1.bf16.msra.mxu0 %v3356
        %3510 = vmatprep.subr.bf16.mxu0 0
        %3511 = vmatpush1.bf16.msra.mxu0 %v3357
        %3512 = vmatprep.subr.bf16.mxu0 0
        %3513 = vmatpush1.bf16.msra.mxu0 %v3358
        %3514 = vmatprep.subr.bf16.mxu0 0
        %3515 = vmatpush1.bf16.msra.mxu0 %v3359
        %3516 = vmatprep.subr.bf16.mxu0 0
        %3517 = vmatpush1.bf16.msra.mxu0 %v3360
        %3518 = vmatprep.subr.bf16.mxu0 0
        %3519 = vmatpush1.bf16.msra.mxu0 %v3361
        %3520 = vmatprep.subr.bf16.mxu0 0
        %3521 = vmatpush1.bf16.msra.mxu0 %v3362
        %3522 = vmatprep.subr.bf16.mxu0 0
        %3523 = vmatpush1.bf16.msra.mxu0 %v3363
        %3524 = vmatprep.subr.bf16.mxu0 0
        %3525 = vmatpush1.bf16.msra.mxu0 %v3364
        %3526 = vmatprep.subr.bf16.mxu0 0
        %3527 = vmatpush1.bf16.msra.mxu0 %v3365
        %3528 = vmatprep.subr.bf16.mxu0 0
        %3529 = vmatpush1.bf16.msra.mxu0 %v3366
        %3530 = vmatprep.subr.bf16.mxu0 0
        %3531 = vmatpush1.bf16.msra.mxu0 %v3367
        %3532 = vmatprep.subr.bf16.mxu0 0
        %3533 = vmatpush1.bf16.msra.mxu0 %v3368
        %3534 = vmatprep.subr.bf16.mxu0 0
        %3535 = vmatpush1.bf16.msra.mxu0 %v3369
        %3536 = vmatprep.subr.bf16.mxu0 0
        %3537 = vmatpush1.bf16.msra.mxu0 %v3370
        %3538 = vmatprep.subr.bf16.mxu0 0
        %3539 = vmatpush1.bf16.msra.mxu0 %v3371
        %3540 = vmatprep.mubr.bf16.mxu0 %v3079
        %3541 = vmatmul.mubr.bf16.gmra.mrb[0].mxu0 %v3078
        %v3542 = vpop.f32.mrb[0].mxu0
        %v3543 = vadd.f32 %v3503, %v3542
        %v3544 = vpop.f32.mrb[0].mxu0
        %v3545 = vpop.f32.mrb[0].mxu0
        %v3546 = vpop.f32.mrb[0].mxu0
        %3547 = vdwg.mxu0
        %3548 = vmatprep.subr.bf16.mxu0 0
        %3549 = vmatpush1.bf16.msra.mxu0 %v3372
        %3550 = vmatprep.subr.bf16.mxu0 0
        %3551 = vmatpush1.bf16.msra.mxu0 %v3373
        %3552 = vmatprep.subr.bf16.mxu0 0
        %3553 = vmatpush1.bf16.msra.mxu0 %v3374
        %3554 = vmatprep.subr.bf16.mxu0 0
        %3555 = vmatpush1.bf16.msra.mxu0 %v3375
        %3556 = vmatprep.subr.bf16.mxu0 0
        %3557 = vmatpush1.bf16.msra.mxu0 %v3376
        %3558 = vmatprep.subr.bf16.mxu0 0
        %3559 = vmatpush1.bf16.msra.mxu0 %v3377
        %3560 = vmatprep.subr.bf16.mxu0 0
        %3561 = vmatpush1.bf16.msra.mxu0 %v3378
        %3562 = vmatprep.subr.bf16.mxu0 0
        %3563 = vmatpush1.bf16.msra.mxu0 %v3379
        %3564 = vmatprep.subr.bf16.mxu0 0
        %3565 = vmatpush1.bf16.msra.mxu0 %v3380
        %3566 = vmatprep.subr.bf16.mxu0 0
        %3567 = vmatpush1.bf16.msra.mxu0 %v3381
        %3568 = vmatprep.subr.bf16.mxu0 0
        %3569 = vmatpush1.bf16.msra.mxu0 %v3382
        %3570 = vmatprep.subr.bf16.mxu0 0
        %3571 = vmatpush1.bf16.msra.mxu0 %v3383
        %3572 = vmatprep.subr.bf16.mxu0 0
        %3573 = vmatpush1.bf16.msra.mxu0 %v3384
        %3574 = vmatprep.subr.bf16.mxu0 0
        %3575 = vmatpush1.bf16.msra.mxu0 %v3385
        %3576 = vmatprep.subr.bf16.mxu0 0
        %3577 = vmatpush1.bf16.msra.mxu0 %v3386
        %3578 = vmatprep.subr.bf16.mxu0 0
        %3579 = vmatpush1.bf16.msra.mxu0 %v3387
        %3580 = vmatprep.mubr.bf16.mxu0 %v3081
        %3581 = vmatmul.mubr.bf16.gmra.mrb[0].mxu0 %v3080
        %v3582 = vpop.f32.mrb[0].mxu0
        %v3583 = vadd.f32 %v3543, %v3582
        %v3584 = vpop.f32.mrb[0].mxu0
        %v3585 = vpop.f32.mrb[0].mxu0
        %v3586 = vpop.f32.mrb[0].mxu0
        %3587 = vdwg.mxu0
        %3588 = vmatprep.subr.bf16.mxu0 0
        %3589 = vmatpush1.bf16.msra.mxu0 %v3388
        %3590 = vmatprep.subr.bf16.mxu0 0
        %3591 = vmatpush1.bf16.msra.mxu0 %v3389
        %3592 = vmatprep.subr.bf16.mxu0 0
        %3593 = vmatpush1.bf16.msra.mxu0 %v3390
        %3594 = vmatprep.subr.bf16.mxu0 0
        %3595 = vmatpush1.bf16.msra.mxu0 %v3391
        %3596 = vmatprep.subr.bf16.mxu0 0
        %3597 = vmatpush1.bf16.msra.mxu0 %v3392
        %3598 = vmatprep.subr.bf16.mxu0 0
        %3599 = vmatpush1.bf16.msra.mxu0 %v3393
        %3600 = vmatprep.subr.bf16.mxu0 0
        %3601 = vmatpush1.bf16.msra.mxu0 %v3394
        %3602 = vmatprep.subr.bf16.mxu0 0
        %3603 = vmatpush1.bf16.msra.mxu0 %v3395
        %3604 = vmatprep.subr.bf16.mxu0 0
        %3605 = vmatpush1.bf16.msra.mxu0 %v3396
        %3606 = vmatprep.subr.bf16.mxu0 0
        %3607 = vmatpush1.bf16.msra.mxu0 %v3397
        %3608 = vmatprep.subr.bf16.mxu0 0
        %3609 = vmatpush1.bf16.msra.mxu0 %v3398
        %3610 = vmatprep.subr.bf16.mxu0 0
        %3611 = vmatpush1.bf16.msra.mxu0 %v3399
        %3612 = vmatprep.subr.bf16.mxu0 0
        %3613 = vmatpush1.bf16.msra.mxu0 %v3400
        %3614 = vmatprep.subr.bf16.mxu0 0
        %3615 = vmatpush1.bf16.msra.mxu0 %v3401
        %3616 = vmatprep.subr.bf16.mxu0 0
        %3617 = vmatpush1.bf16.msra.mxu0 %v3402
        %3618 = vmatprep.subr.bf16.mxu0 0
        %3619 = vmatpush1.bf16.msra.mxu0 %v3403
        %3620 = vmatprep.mubr.bf16.mxu0 %v3083
        %3621 = vmatmul.mubr.bf16.gmra.mrb[0].mxu0 %v3082
        %v3622 = vpop.f32.mrb[0].mxu0
        %v3623 = vadd.f32 %v3583, %v3622
        %v3624 = vpop.f32.mrb[0].mxu0
        %v3625 = vpop.f32.mrb[0].mxu0
        %v3626 = vpop.f32.mrb[0].mxu0
        %3627 = vdwg.mxu0
        %3628 = vst [vmem:[%s713] sm:$0x1] %v3623
        %s3629 = sand.u32 %s516, 1
        %s3630 = scalar_lea.sflag [#allocation3], %s3629
        %s3631 = sand.u32 %s516, 1
        %s3632 = smul.addr %s3631, 8
        %s3633 = scalar_lea.vmem [#allocation2], %s3632
        %s3634 = sand.u32 %s542, 1
        %s3635 = scalar_lea.sflag [#allocation5], %s3634
        %s3636 = sand.u32 %s542, 1
        %s3637 = scalar_lea.vmem [#allocation4], %s3636
        // Predicated region
        $region109: #{streetviewnet_forward.1} parent=107 // pred_check
          %p3638 = pneg %p526
        $region110: #{streetviewnet_forward.1} parent=107 // pred_check_branch
          %3640 = sbr.rel (%p3638) target = $region112
        $region111: #{streetviewnet_forward.1} parent=107 // pred_region
          %s3642 = ssub.s32 128, 128
          %3643 = vsyncadd %s3630, %s3642
          %s3644 = smul.addr %s41, 8
          %s3645 = smul.addr %s3644, 16
          %s3646 = scalar_lea.hbm %s22, %s3645
          %s3648 = sshll.u32 %s3633, 4
          %s3649 = int_to_ptr.vmem [resolvable:$true] %s3648
          %3651 = dma.vmem_to_hbm [thread:$0]  %s3649, 128, %s3646, %s3630
        $region112: #{streetviewnet_forward.1} parent=107 // pred_fallthru
          _
        // Predicated region
        $region113: #{streetviewnet_forward.1} parent=107 // pred_check
          %p3652 = pneg %p552
        $region114: #{streetviewnet_forward.1} parent=107 // pred_check_branch
          %3654 = sbr.rel (%p3652) target = $region116
        $region115: #{streetviewnet_forward.1} parent=107 // pred_region
          %s3656 = ssub.s32 16, 16
          %3657 = vsyncadd %s3635, %s3656
          %s3658 = smul.addr %s41, 16
          %s3659 = scalar_lea.hbm %s23, %s3658
          %s3661 = sshll.u32 %s3637, 4
          %s3662 = int_to_ptr.vmem [resolvable:$true] %s3661
          %3664 = dma.vmem_to_hbm [thread:$0]  %s3662, 16, %s3659, %s3635
        $region116: #{streetviewnet_forward.1} parent=107 // pred_fallthru
          _
      $region108: #{streetviewnet_forward.1} parent=5 // pred_fallthru
        _
      %p3665 = scmp.le.s32.totalorder 2, %s36
      // Predicated region
      $region117: #{streetviewnet_forward.1} parent=5 // pred_check
        %p3666 = pneg %p3665
      $region118: #{streetviewnet_forward.1} parent=5 // pred_check_branch
        %3668 = sbr.rel (%p3666) target = $region120
      $region119: #{streetviewnet_forward.1} parent=5 // pred_region
        %s3669 = ssub.s32 %s36, 2
        // Predicated region
        $region121: #{streetviewnet_forward.1} parent=119 // pred_check
          %p3670 = pneg %p532
        $region122: #{streetviewnet_forward.1} parent=119 // pred_check_branch
          %3672 = sbr.rel (%p3670) target = $region124
        $region123: #{streetviewnet_forward.1} parent=119 // pred_region
          %s3673 = sand.u32 %s517, 1
          %s3674 = scalar_lea.sflag [#allocation3], %s3673
          %s3675 = sand.u32 %s517, 1
          %s3676 = smul.addr %s3675, 8
          %s3677 = scalar_lea.vmem [#allocation2], %s3676
          %3678 = dma.done %s3674, 128
        $region124: #{streetviewnet_forward.1} parent=119 // pred_fallthru
          _
        // Predicated region
        $region125: #{streetviewnet_forward.1} parent=119 // pred_check
          %p3679 = pneg %p558
        $region126: #{streetviewnet_forward.1} parent=119 // pred_check_branch
          %3681 = sbr.rel (%p3679) target = $region128
        $region127: #{streetviewnet_forward.1} parent=119 // pred_region
          %s3682 = sand.u32 %s543, 1
          %s3683 = scalar_lea.sflag [#allocation5], %s3682
          %s3684 = sand.u32 %s543, 1
          %s3685 = scalar_lea.vmem [#allocation4], %s3684
          %3686 = dma.done %s3683, 16
        $region128: #{streetviewnet_forward.1} parent=119 // pred_fallthru
          _
      $region120: #{streetviewnet_forward.1} parent=5 // pred_fallthru
        _
    $region6: #{streetviewnet_forward.1} parent=1 // loop_footer
      %s40 = sadd.s32 1, %s36
    $region7: #{streetviewnet_forward.1} parent=1 // loop_footer_branch
      %35 = sbr.rel target = $region3
    $region8: #{streetviewnet_forward.1} parent=1 // loop_exit
      _
    %3687 = vsyncpa [#allocation3], 1
    %s3688 = scalar_lea.sflag [#allocation3], 1
    %3689 = vsyncpa %s3688, 1
    %3690 = vsyncpa [#allocation5], 1
    %s3691 = scalar_lea.sflag [#allocation5], 1
    %3692 = vsyncpa %s3691, 1

</llo_original>
